<compile_context>
chip_gen: v5e
topology: v5e:2x2
jax: 0.10.0
libtpu: 0.0.40
codegen_flags: <defaults>
</compile_context>

<pallas_src>
import jax
import jax.numpy as jnp
from jax.experimental import pallas as pl
from jax.experimental.pallas import tpu as pltpu

# Reproduce the action vocabulary size from the PyTorch module.
ALL_ACTIONS = ['pass',
               *[str(i) for i in range(1, 10)],
               *[f'{i}{i}' for i in range(1, 10)],
               *[f'{i}{i}{i}{j}' for i in range(1, 10) for j in range(1, 10) if j != i]]
OUTPUT_SIZE = len(ALL_ACTIONS)          # = 91
HIDDEN = 1024
OUT_PAD = 128                           # lane-aligned padded output width
DEFAULT_BATCH_TILE = 1024               # rows per grid step
BATCH_ALIGN = 16                        # bf16 sublane packing


def _round_up(x, m):
    return ((x + m - 1) // m) * m


def dqn_kernel(x_ref, w1_ref, b1_ref, w2_ref, b2_ref, w3_ref, b3_ref, o_ref):
    bf16 = jnp.bfloat16
    # fc1 + ReLU   (bf16 x bf16 on the MXU, f32 accumulate; x already bf16)
    h1 = jnp.dot(x_ref[...], w1_ref[...], preferred_element_type=jnp.float32)
    h1 = jnp.maximum(h1 + b1_ref[...], 0.0)
    # fc2 + ReLU
    h2 = jnp.dot(h1.astype(bf16), w2_ref[...], preferred_element_type=jnp.float32)
    h2 = jnp.maximum(h2 + b2_ref[...], 0.0)
    # fc3 (no activation)
    h3 = jnp.dot(h2.astype(bf16), w3_ref[...], preferred_element_type=jnp.float32)
    o_ref[...] = (h3 + b3_ref[...]).astype(o_ref.dtype)


def dqn_forward(x, params, *, batch_tile=DEFAULT_BATCH_TILE):
    """x: (B, input_size) f32 (or bf16). params: dict from init_params."""
    B, in_size = x.shape
    w1, b1 = params["w1"], params["b1"]
    w2, b2 = params["w2"], params["b2"]
    w3p, b3p = params["w3p"], params["b3p"]

    # Halve the x DMA stream; matmul operands are bf16 anyway.
    x = x.astype(jnp.bfloat16)

    # Pick a 16-row-aligned batch tile. For B >= 32, guarantee at least two
    # grid steps so both v7x TensorCores get work ("parallel" batch axis).
    tb = min(batch_tile, _round_up(B, BATCH_ALIGN))
    if B >= 2 * BATCH_ALIGN:
        tb = min(tb, _round_up((B + 1) // 2, BATCH_ALIGN))
    tb = max(BATCH_ALIGN, tb)

    b_pad = _round_up(B, tb)
    if b_pad != B:
        x = jnp.pad(x, ((0, b_pad - B), (0, 0)))
    num_tiles = b_pad // tb

    # Weights / biases: constant index maps => VMEM-resident across batch
    # tiles; Buffered(1) => no dead second buffer for blocks that never change.
    def const(shape):
        nd = len(shape)
        return pl.BlockSpec(shape, lambda *_: (0,) * nd,
                            pipeline_mode=pl.Buffered(1))

    out_pad = pl.pallas_call(
        dqn_kernel,
        out_shape=jax.ShapeDtypeStruct((b_pad, OUT_PAD), jnp.float32),
        grid_spec=pltpu.PrefetchScalarGridSpec(
            num_scalar_prefetch=0,
            grid=(num_tiles,),
            in_specs=[
                pl.BlockSpec((tb, in_size), lambda i: (i, 0)),  # x (batch tiled)
                const(w1.shape),            # w1 (in, 1024) bf16
                const((1, HIDDEN)),         # b1 f32
                const((HIDDEN, HIDDEN)),    # w2 (1024, 1024) bf16
                const((1, HIDDEN)),         # b2 f32
                const((HIDDEN, OUT_PAD)),   # w3 padded bf16
                const((1, OUT_PAD)),        # b3 padded f32
            ],
            out_specs=pl.BlockSpec((tb, OUT_PAD), lambda i: (i, 0)),
        ),
        compiler_params=pltpu.CompilerParams(
            dimension_semantics=("parallel",),
            # tb=1024 footprint (~16-20 MiB incl. f32 intermediates) exceeds
            # v5e's 16 MiB default scoped limit; 48 MiB clears every
            # generation and stays under v7x's 64 MiB physical per-TC VMEM.
            vmem_limit_bytes=48 * 1024 * 1024,
        ),
    )(x, w1, b1, w2, b2, w3p, b3p)

    # Module semantics: return (B, 91). Downstream consumers that can take the
    # padded (b_pad, 128) slab directly (e.g. fused argmax with cols >= 91
    # masked to -inf) should use out_pad and skip this extra HBM pass.
    return out_pad[:B, :OUTPUT_SIZE]


def init_params(input_size, key):
    """Deterministic init mimicking nn.Linear's U(-1/sqrt(fan_in), 1/sqrt(fan_in)).

    Weights are stored bf16 (halves the HBM weight stream; the kernel is
    weight-DMA bound at small batch); biases stay f32. fc3 weight/bias are
    pre-padded to OUT_PAD lanes once here, not per forward call.
    """
    ks = jax.random.split(key, 6)

    def linear(kw, kb, fan_in, fan_out):
        bound = 1.0 / jnp.sqrt(fan_in)
        w = jax.random.uniform(kw, (fan_in, fan_out), jnp.float32, -bound, bound)
        b = jax.random.uniform(kb, (fan_out,), jnp.float32, -bound, bound)
        return w, b

    w1, b1 = linear(ks[0], ks[1], input_size, HIDDEN)
    w2, b2 = linear(ks[2], ks[3], HIDDEN, HIDDEN)
    w3, b3 = linear(ks[4], ks[5], HIDDEN, OUTPUT_SIZE)

    w3p = jnp.zeros((HIDDEN, OUT_PAD), jnp.float32).at[:, :OUTPUT_SIZE].set(w3)
    b3p = jnp.zeros((1, OUT_PAD), jnp.float32).at[:, :OUTPUT_SIZE].set(b3)

    return dict(
        w1=w1.astype(jnp.bfloat16), b1=b1.reshape(1, HIDDEN),
        w2=w2.astype(jnp.bfloat16), b2=b2.reshape(1, HIDDEN),
        w3p=w3p.astype(jnp.bfloat16), b3p=b3p,
    )


def _ref_forward(x, params):
    """Pure-JAX reference mirroring the kernel math (bf16 operands, f32 acc)."""
    bf16 = jnp.bfloat16
    h = jnp.dot(x.astype(bf16), params["w1"],
                preferred_element_type=jnp.float32) + params["b1"]
    h = jnp.maximum(h, 0.0)
    h = jnp.dot(h.astype(bf16), params["w2"],
                preferred_element_type=jnp.float32) + params["b2"]
    h = jnp.maximum(h, 0.0)
    out = jnp.dot(h.astype(bf16), params["w3p"],
                  preferred_element_type=jnp.float32) + params["b3p"]
    return out[:, :OUTPUT_SIZE]


if __name__ == "__main__":
    key = jax.random.PRNGKey(0)
    k_x, k_p = jax.random.split(key)

    B, INPUT_SIZE = 8, 32
    x = jax.random.normal(k_x, (B, INPUT_SIZE), jnp.float32)
    params = init_params(INPUT_SIZE, k_p)

    out = dqn_forward(x, params)
    out = jax.block_until_ready(out)

    ref = _ref_forward(x, params)
    assert out.shape == (B, OUTPUT_SIZE), out.shape
    assert jnp.allclose(out, ref, atol=1e-2, rtol=1e-2), float(
        jnp.max(jnp.abs(out - ref)))

    print("KERNEL_OK")
</pallas_src>

<mosaic_0001>
module attributes {stable_mosaic.version = 11 : i64} {
  func.func @dqn_kernel(%arg0: i32, %arg1: memref<16x32xbf16, #tpu.memory_space<vmem>>, %arg2: memref<32x1024xbf16, #tpu.memory_space<vmem>>, %arg3: memref<1x1024xf32, #tpu.memory_space<vmem>>, %arg4: memref<1024x1024xbf16, #tpu.memory_space<vmem>>, %arg5: memref<1x1024xf32, #tpu.memory_space<vmem>>, %arg6: memref<1024x128xbf16, #tpu.memory_space<vmem>>, %arg7: memref<1x128xf32, #tpu.memory_space<vmem>>, %arg8: memref<16x128xf32, #tpu.memory_space<vmem>>) attributes {dimension_semantics = [#tpu.dimension_semantics<parallel>], iteration_bounds = array<i64: 1>, scalar_prefetch = 0 : i64, scratch_operands = 0 : i64, tpu.core_type = #tpu.core_type<tc>, window_params = [{transform_indices = @transform_0, window_bounds = array<i64: 16, 32>}, {pipeline_mode = #tpu.pipeline_mode<synchronous>, transform_indices = @transform_1, window_bounds = array<i64: 32, 1024>}, {pipeline_mode = #tpu.pipeline_mode<synchronous>, transform_indices = @transform_2, window_bounds = array<i64: 1, 1024>}, {pipeline_mode = #tpu.pipeline_mode<synchronous>, transform_indices = @transform_3, window_bounds = array<i64: 1024, 1024>}, {pipeline_mode = #tpu.pipeline_mode<synchronous>, transform_indices = @transform_4, window_bounds = array<i64: 1, 1024>}, {pipeline_mode = #tpu.pipeline_mode<synchronous>, transform_indices = @transform_5, window_bounds = array<i64: 1024, 128>}, {pipeline_mode = #tpu.pipeline_mode<synchronous>, transform_indices = @transform_6, window_bounds = array<i64: 1, 128>}, {transform_indices = @transform_7, window_bounds = array<i64: 16, 128>}]} {
    %c0 = arith.constant 0 : index
    %c0_0 = arith.constant 0 : index
    %0 = vector.load %arg1[%c0, %c0_0] : memref<16x32xbf16, #tpu.memory_space<vmem>>, vector<16x32xbf16>
    %c0_1 = arith.constant 0 : index
    %c0_2 = arith.constant 0 : index
    %1 = vector.load %arg2[%c0_1, %c0_2] : memref<32x1024xbf16, #tpu.memory_space<vmem>>, vector<32x1024xbf16>
    %cst = arith.constant dense<0.000000e+00> : vector<16x1024xf32>
    %2 = tpu.matmul %0, %1, %cst {dimension_numbers = #tpu.dot_dimension_numbers<[1], [0], [0], [1], [0, 0, 1, 1], [], []>} : vector<16x32xbf16>, vector<32x1024xbf16>, vector<16x1024xf32> -> vector<16x1024xf32>
    %c0_3 = arith.constant 0 : index
    %c0_4 = arith.constant 0 : index
    %3 = vector.load %arg3[%c0_3, %c0_4] : memref<1x1024xf32, #tpu.memory_space<vmem>>, vector<1x1024xf32>
    %4 = vector.broadcast %3 : vector<1x1024xf32> to vector<16x1024xf32>
    %5 = arith.addf %2, %4 : vector<16x1024xf32>
    %cst_5 = arith.constant 0.000000e+00 : f32
    %6 = vector.broadcast %cst_5 : f32 to vector<16x1024xf32>
    %7 = arith.maximumf %5, %6 : vector<16x1024xf32>
    %8 = arith.truncf %7 : vector<16x1024xf32> to vector<16x1024xbf16>
    %c0_6 = arith.constant 0 : index
    %c0_7 = arith.constant 0 : index
    %9 = vector.load %arg4[%c0_6, %c0_7] : memref<1024x1024xbf16, #tpu.memory_space<vmem>>, vector<1024x1024xbf16>
    %cst_8 = arith.constant dense<0.000000e+00> : vector<16x1024xf32>
    %10 = tpu.matmul %8, %9, %cst_8 {dimension_numbers = #tpu.dot_dimension_numbers<[1], [0], [0], [1], [0, 0, 1, 1], [], []>} : vector<16x1024xbf16>, vector<1024x1024xbf16>, vector<16x1024xf32> -> vector<16x1024xf32>
    %c0_9 = arith.constant 0 : index
    %c0_10 = arith.constant 0 : index
    %11 = vector.load %arg5[%c0_9, %c0_10] : memref<1x1024xf32, #tpu.memory_space<vmem>>, vector<1x1024xf32>
    %12 = vector.broadcast %11 : vector<1x1024xf32> to vector<16x1024xf32>
    %13 = arith.addf %10, %12 : vector<16x1024xf32>
    %cst_11 = arith.constant 0.000000e+00 : f32
    %14 = vector.broadcast %cst_11 : f32 to vector<16x1024xf32>
    %15 = arith.maximumf %13, %14 : vector<16x1024xf32>
    %16 = arith.truncf %15 : vector<16x1024xf32> to vector<16x1024xbf16>
    %c0_12 = arith.constant 0 : index
    %c0_13 = arith.constant 0 : index
    %17 = vector.load %arg6[%c0_12, %c0_13] : memref<1024x128xbf16, #tpu.memory_space<vmem>>, vector<1024x128xbf16>
    %cst_14 = arith.constant dense<0.000000e+00> : vector<16x128xf32>
    %18 = tpu.matmul %16, %17, %cst_14 {dimension_numbers = #tpu.dot_dimension_numbers<[1], [0], [0], [1], [0, 0, 1, 1], [], []>} : vector<16x1024xbf16>, vector<1024x128xbf16>, vector<16x128xf32> -> vector<16x128xf32>
    %c0_15 = arith.constant 0 : index
    %c0_16 = arith.constant 0 : index
    %19 = vector.load %arg7[%c0_15, %c0_16] : memref<1x128xf32, #tpu.memory_space<vmem>>, vector<1x128xf32>
    %20 = vector.broadcast %19 : vector<1x128xf32> to vector<16x128xf32>
    %21 = arith.addf %18, %20 : vector<16x128xf32>
    %c0_17 = arith.constant 0 : index
    %c0_18 = arith.constant 0 : index
    %22 = vector.load %arg8[%c0_17, %c0_18] : memref<16x128xf32, #tpu.memory_space<vmem>>, vector<16x128xf32>
    tpu.vector_store %arg8[%c0_17, %c0_18], %21 {strides = array<i32>} : memref<16x128xf32, #tpu.memory_space<vmem>>, vector<16x128xf32>,
    return
  }
  func.func @transform_0(%arg0: i32) -> (i32, i32) {
    %c0_i32 = arith.constant 0 : i32
    %c0_i32_0 = arith.constant 0 : i32
    return %arg0, %c0_i32 : i32, i32
  }
  func.func @transform_1(%arg0: i32) -> (i32, i32) {
    %c0_i32 = arith.constant 0 : i32
    %c0_i32_0 = arith.constant 0 : i32
    %c0_i32_1 = arith.constant 0 : i32
    return %c0_i32, %c0_i32_0 : i32, i32
  }
  func.func @transform_2(%arg0: i32) -> (i32, i32) {
    %c0_i32 = arith.constant 0 : i32
    %c0_i32_0 = arith.constant 0 : i32
    %c0_i32_1 = arith.constant 0 : i32
    return %c0_i32, %c0_i32_0 : i32, i32
  }
  func.func @transform_3(%arg0: i32) -> (i32, i32) {
    %c0_i32 = arith.constant 0 : i32
    %c0_i32_0 = arith.constant 0 : i32
    %c0_i32_1 = arith.constant 0 : i32
    return %c0_i32, %c0_i32_0 : i32, i32
  }
  func.func @transform_4(%arg0: i32) -> (i32, i32) {
    %c0_i32 = arith.constant 0 : i32
    %c0_i32_0 = arith.constant 0 : i32
    %c0_i32_1 = arith.constant 0 : i32
    return %c0_i32, %c0_i32_0 : i32, i32
  }
  func.func @transform_5(%arg0: i32) -> (i32, i32) {
    %c0_i32 = arith.constant 0 : i32
    %c0_i32_0 = arith.constant 0 : i32
    %c0_i32_1 = arith.constant 0 : i32
    return %c0_i32, %c0_i32_0 : i32, i32
  }
  func.func @transform_6(%arg0: i32) -> (i32, i32) {
    %c0_i32 = arith.constant 0 : i32
    %c0_i32_0 = arith.constant 0 : i32
    %c0_i32_1 = arith.constant 0 : i32
    return %c0_i32, %c0_i32_0 : i32, i32
  }
  func.func @transform_7(%arg0: i32) -> (i32, i32) {
    %c0_i32 = arith.constant 0 : i32
    %c0_i32_0 = arith.constant 0 : i32
    return %arg0, %c0_i32 : i32, i32
  }
}

</mosaic_0001>

<llo_original>
// kernel: tpu_custom_call.1
$region0: #{tpu_custom_call.1}
  #allocation0 [shape = 'u32[]', space=smem, size = 0x4, offset = 0x4, fixed_abs, tag = 'smem constant byte address 0x4 - core index']
  #allocation1 [shape = 'u32[72,128]{1,0:T(1,128)}', space=vmem, size = 0x9000, scoped, tag = 'internal scratch']
  %s0 = inlined_call_operand.hbm [shape: bf16[16,32], index: 0, kind: input, shape index: {}]
  %s1 = inlined_call_operand.hbm [shape: bf16[32,1024], index: 1, kind: input, shape index: {}]
  %s2 = inlined_call_operand.hbm [shape: f32[1,1024], index: 2, kind: input, shape index: {}]
  %s3 = inlined_call_operand.hbm [shape: bf16[1024,1024], index: 3, kind: input, shape index: {}]
  %s4 = inlined_call_operand.hbm [shape: f32[1,1024], index: 4, kind: input, shape index: {}]
  %s5 = inlined_call_operand.hbm [shape: bf16[1024,128], index: 5, kind: input, shape index: {}]
  %s6 = inlined_call_operand.hbm [shape: f32[1,128], index: 6, kind: input, shape index: {}]
  %s7 = inlined_call_operand.hbm [shape: f32[16,128], index: 7, kind: output, shape index: {}]
  %s8 = sld [smem:[#allocation0]]
  $region66: #{tpu_custom_call.1} parent=0
    _
  %s10 = ssub.s32 1, %s8
  %s11 = scalar_select 0, %s10, %s8
  $region1: #{tpu_custom_call.1} parent=0
    #allocation2 [shape = 'u8[4096]{0}', space=vmem, size = 0x1000, scoped, tag = 'input window, operand 0, single buffered']
    #allocation3 [shape = 's32[1]{0}', space=sflag, size = 0x4, scoped, tag = 'scoped memory for tpu_custom_call.1']
    #allocation4 [shape = 's32[1]{0}', space=sflag, size = 0x4, scoped, tag = 'scoped memory for tpu_custom_call.1']
    #allocation5 [shape = 'u8[65536]{0}', space=vmem, size = 0x10000, scoped, tag = 'input window, operand 1, single buffered']
    #allocation6 [shape = 's32[1]{0}', space=sflag, size = 0x4, scoped, tag = 'scoped memory for tpu_custom_call.1']
    #allocation7 [shape = 'u8[4096]{0}', space=vmem, size = 0x1000, scoped, tag = 'input window, operand 2, single buffered']
    #allocation8 [shape = 'u8[2097152]{0}', space=vmem, size = 0x200000, scoped, tag = 'input window, operand 3, single buffered']
    #allocation9 [shape = 's32[1]{0}', space=sflag, size = 0x4, scoped, tag = 'scoped memory for tpu_custom_call.1']
    #allocation10 [shape = 'u8[4096]{0}', space=vmem, size = 0x1000, scoped, tag = 'input window, operand 4, single buffered']
    #allocation11 [shape = 'u8[262144]{0}', space=vmem, size = 0x40000, scoped, tag = 'input window, operand 5, single buffered']
    #allocation12 [shape = 's32[1]{0}', space=sflag, size = 0x4, scoped, tag = 'scoped memory for tpu_custom_call.1']
    #allocation13 [shape = 'u8[512]{0}', space=vmem, size = 0x400, scoped, tag = 'input window, operand 6, single buffered']
    #allocation14 [shape = 'u8[8192]{0}', space=vmem, size = 0x2000, scoped, tag = 'output window, operand 0, single buffered']
    %12 = vsyncpa [#allocation3], 0
    %13 = vsyncpa [#allocation6], 0
    %14 = vsyncpa [#allocation9], 0
    %15 = vsyncpa [#allocation12], 0
    %16 = vsyncpa [#allocation4], 0
    // Predicated region
    $region2: #{tpu_custom_call.1} parent=1 // pred_check
      _
    $region3: #{tpu_custom_call.1} parent=1 // pred_check_branch
      %18 = sbr.rel (0) target = $region5
    $region4: #{tpu_custom_call.1} parent=1 // pred_region
      %20 = vsyncadd [#allocation3], 0
      %s21 = sshll.u32 %s0, 4
      %s22 = int_to_ptr.hbm [resolvable:$true] %s21
      %s23 = sshll.u32 [#allocation2], 4
      %s24 = int_to_ptr.vmem [resolvable:$true] %s23
      %29 = dma.hbm_to_vmem [thread:$0]  %s22, 128, %s24, [#allocation3], 64, 64, 4
    $region5: #{tpu_custom_call.1} parent=1 // pred_fallthru
      _
    // Predicated region
    $region6: #{tpu_custom_call.1} parent=1 // pred_check
      _
    $region7: #{tpu_custom_call.1} parent=1 // pred_check_branch
      %31 = sbr.rel (0) target = $region9
    $region8: #{tpu_custom_call.1} parent=1 // pred_region
      %33 = vsyncadd [#allocation6], 0
      %s34 = sshll.u32 %s1, 4
      %s35 = int_to_ptr.hbm [resolvable:$true] %s34
      %s36 = sshll.u32 [#allocation5], 4
      %s37 = int_to_ptr.vmem [resolvable:$true] %s36
      %42 = dma.hbm_to_vmem [thread:$0]  %s35, 2048, %s37, [#allocation6], 512, 512, 32
    $region9: #{tpu_custom_call.1} parent=1 // pred_fallthru
      _
    // Predicated region
    $region10: #{tpu_custom_call.1} parent=1 // pred_check
      _
    $region11: #{tpu_custom_call.1} parent=1 // pred_check_branch
      %44 = sbr.rel (0) target = $region13
    $region12: #{tpu_custom_call.1} parent=1 // pred_region
      %46 = vsyncadd [#allocation6], 0
      %s48 = sshll.u32 %s2, 4
      %s49 = int_to_ptr.hbm [resolvable:$true] %s48
      %s50 = sshll.u32 [#allocation7], 4
      %s51 = int_to_ptr.vmem [resolvable:$true] %s50
      %53 = dma.hbm_to_vmem [thread:$0]  %s49, 128, %s51, [#allocation6]
    $region13: #{tpu_custom_call.1} parent=1 // pred_fallthru
      _
    // Predicated region
    $region14: #{tpu_custom_call.1} parent=1 // pred_check
      _
    $region15: #{tpu_custom_call.1} parent=1 // pred_check_branch
      %55 = sbr.rel (0) target = $region17
    $region16: #{tpu_custom_call.1} parent=1 // pred_region
      %57 = vsyncadd [#allocation9], 0
      %s58 = sshll.u32 %s3, 4
      %s59 = int_to_ptr.hbm [resolvable:$true] %s58
      %s60 = sshll.u32 [#allocation8], 4
      %s61 = int_to_ptr.vmem [resolvable:$true] %s60
      %66 = dma.hbm_to_vmem [thread:$0]  %s59, 65536, %s61, [#allocation9], 512, 512, 32
    $region17: #{tpu_custom_call.1} parent=1 // pred_fallthru
      _
    // Predicated region
    $region18: #{tpu_custom_call.1} parent=1 // pred_check
      _
    $region19: #{tpu_custom_call.1} parent=1 // pred_check_branch
      %68 = sbr.rel (0) target = $region21
    $region20: #{tpu_custom_call.1} parent=1 // pred_region
      %70 = vsyncadd [#allocation9], 0
      %s72 = sshll.u32 %s4, 4
      %s73 = int_to_ptr.hbm [resolvable:$true] %s72
      %s74 = sshll.u32 [#allocation10], 4
      %s75 = int_to_ptr.vmem [resolvable:$true] %s74
      %77 = dma.hbm_to_vmem [thread:$0]  %s73, 128, %s75, [#allocation9]
    $region21: #{tpu_custom_call.1} parent=1 // pred_fallthru
      _
    // Predicated region
    $region22: #{tpu_custom_call.1} parent=1 // pred_check
      _
    $region23: #{tpu_custom_call.1} parent=1 // pred_check_branch
      %79 = sbr.rel (0) target = $region25
    $region24: #{tpu_custom_call.1} parent=1 // pred_region
      %81 = vsyncadd [#allocation12], 0
      %s82 = sshll.u32 %s5, 4
      %s83 = int_to_ptr.hbm [resolvable:$true] %s82
      %s84 = sshll.u32 [#allocation11], 4
      %s85 = int_to_ptr.vmem [resolvable:$true] %s84
      %90 = dma.hbm_to_vmem [thread:$0]  %s83, 8192, %s85, [#allocation12], 64, 64, 4
    $region25: #{tpu_custom_call.1} parent=1 // pred_fallthru
      _
    // Predicated region
    $region26: #{tpu_custom_call.1} parent=1 // pred_check
      _
    $region27: #{tpu_custom_call.1} parent=1 // pred_check_branch
      %92 = sbr.rel (0) target = $region29
    $region28: #{tpu_custom_call.1} parent=1 // pred_region
      %94 = vsyncadd [#allocation12], 0
      %s96 = sshll.u32 %s6, 4
      %s97 = int_to_ptr.hbm [resolvable:$true] %s96
      %s98 = sshll.u32 [#allocation13], 4
      %s99 = int_to_ptr.vmem [resolvable:$true] %s98
      %101 = dma.hbm_to_vmem [thread:$0]  %s97, 16, %s99, [#allocation12]
    $region29: #{tpu_custom_call.1} parent=1 // pred_fallthru
      _
    // Predicated region
    $region30: #{tpu_custom_call.1} parent=1 // pred_check
      _
    $region31: #{tpu_custom_call.1} parent=1 // pred_check_branch
      %103 = sbr.rel (0) target = $region33
    $region32: #{tpu_custom_call.1} parent=1 // pred_region
      %105 = dma.done [#allocation3], 128
    $region33: #{tpu_custom_call.1} parent=1 // pred_fallthru
      _
    // Predicated region
    $region34: #{tpu_custom_call.1} parent=1 // pred_check
      _
    $region35: #{tpu_custom_call.1} parent=1 // pred_check_branch
      %107 = sbr.rel (0) target = $region37
    $region36: #{tpu_custom_call.1} parent=1 // pred_region
      %109 = dma.done [#allocation6], 2048
    $region37: #{tpu_custom_call.1} parent=1 // pred_fallthru
      _
    // Predicated region
    $region38: #{tpu_custom_call.1} parent=1 // pred_check
      _
    $region39: #{tpu_custom_call.1} parent=1 // pred_check_branch
      %111 = sbr.rel (0) target = $region41
    $region40: #{tpu_custom_call.1} parent=1 // pred_region
      %113 = dma.done [#allocation6], 128
    $region41: #{tpu_custom_call.1} parent=1 // pred_fallthru
      _
    // Predicated region
    $region42: #{tpu_custom_call.1} parent=1 // pred_check
      _
    $region43: #{tpu_custom_call.1} parent=1 // pred_check_branch
      %115 = sbr.rel (0) target = $region45
    $region44: #{tpu_custom_call.1} parent=1 // pred_region
      %117 = dma.done [#allocation9], 65536
    $region45: #{tpu_custom_call.1} parent=1 // pred_fallthru
      _
    // Predicated region
    $region46: #{tpu_custom_call.1} parent=1 // pred_check
      _
    $region47: #{tpu_custom_call.1} parent=1 // pred_check_branch
      %119 = sbr.rel (0) target = $region49
    $region48: #{tpu_custom_call.1} parent=1 // pred_region
      %121 = dma.done [#allocation9], 128
    $region49: #{tpu_custom_call.1} parent=1 // pred_fallthru
      _
    // Predicated region
    $region50: #{tpu_custom_call.1} parent=1 // pred_check
      _
    $region51: #{tpu_custom_call.1} parent=1 // pred_check_branch
      %123 = sbr.rel (0) target = $region53
    $region52: #{tpu_custom_call.1} parent=1 // pred_region
      %125 = dma.done [#allocation12], 8192
    $region53: #{tpu_custom_call.1} parent=1 // pred_fallthru
      _
    // Predicated region
    $region54: #{tpu_custom_call.1} parent=1 // pred_check
      _
    $region55: #{tpu_custom_call.1} parent=1 // pred_check_branch
      %127 = sbr.rel (0) target = $region57
    $region56: #{tpu_custom_call.1} parent=1 // pred_region
      %129 = dma.done [#allocation12], 16
    $region57: #{tpu_custom_call.1} parent=1 // pred_fallthru
      _
    %v131 = vld [vmem:[#allocation2] sm:$0xf]
    %v132 = vld [vmem:[#allocation2 + $0x4] sm:$0xf]
    %v133 = vld [vmem:[#allocation5] sm:$0xff]
    %v134 = vld [vmem:[#allocation5 + $0x8] sm:$0xff]
    %v135 = vld [vmem:[#allocation5 + $0x10] sm:$0xff]
    %v136 = vld [vmem:[#allocation5 + $0x18] sm:$0xff]
    %v137 = vld [vmem:[#allocation5 + $0x20] sm:$0xff]
    %v138 = vld [vmem:[#allocation5 + $0x28] sm:$0xff]
    %v139 = vld [vmem:[#allocation5 + $0x30] sm:$0xff]
    %v140 = vld [vmem:[#allocation5 + $0x38] sm:$0xff]
    %v141 = vld [vmem:[#allocation5 + $0x40] sm:$0xff]
    %v142 = vld [vmem:[#allocation5 + $0x48] sm:$0xff]
    %v143 = vld [vmem:[#allocation5 + $0x50] sm:$0xff]
    %v144 = vld [vmem:[#allocation5 + $0x58] sm:$0xff]
    %v145 = vld [vmem:[#allocation5 + $0x60] sm:$0xff]
    %v146 = vld [vmem:[#allocation5 + $0x68] sm:$0xff]
    %v147 = vld [vmem:[#allocation5 + $0x70] sm:$0xff]
    %v148 = vld [vmem:[#allocation5 + $0x78] sm:$0xff]
    %v149 = vld [vmem:[#allocation7] sm:$0xff]
    %v151 = vperm.slane %v149, 0
    %v152 = vperm.slane %v149, 1
    %v153 = vperm.slane %v149, 2
    %v154 = vperm.slane %v149, 3
    %v155 = vperm.slane %v149, 4
    %v156 = vperm.slane %v149, 5
    %v157 = vperm.slane %v149, 6
    %v158 = vperm.slane %v149, 7
    %v169 = vunpack.c.l.b16 %v131
    %v170 = vunpack.c.l.b16 %v132
    %v171 = vpack.c.b16 %v170, %v169
    %v188 = vunpack.c.l.b16 %v133
    %v189 = vunpack.c.h.b16 %v133
    %v190 = vunpack.c.l.b16 %v134
    %v191 = vunpack.c.h.b16 %v134
    %v192 = vunpack.c.l.b16 %v135
    %v193 = vunpack.c.h.b16 %v135
    %v194 = vunpack.c.l.b16 %v136
    %v195 = vunpack.c.h.b16 %v136
    %v196 = vunpack.c.l.b16 %v137
    %v197 = vunpack.c.h.b16 %v137
    %v198 = vunpack.c.l.b16 %v138
    %v199 = vunpack.c.h.b16 %v138
    %v200 = vunpack.c.l.b16 %v139
    %v201 = vunpack.c.h.b16 %v139
    %v202 = vunpack.c.l.b16 %v140
    %v203 = vunpack.c.h.b16 %v140
    %v204 = vunpack.c.l.b16 %v141
    %v205 = vunpack.c.h.b16 %v141
    %v206 = vunpack.c.l.b16 %v142
    %v207 = vunpack.c.h.b16 %v142
    %v208 = vunpack.c.l.b16 %v143
    %v209 = vunpack.c.h.b16 %v143
    %v210 = vunpack.c.l.b16 %v144
    %v211 = vunpack.c.h.b16 %v144
    %v212 = vunpack.c.l.b16 %v145
    %v213 = vunpack.c.h.b16 %v145
    %v214 = vunpack.c.l.b16 %v146
    %v215 = vunpack.c.h.b16 %v146
    %v216 = vunpack.c.l.b16 %v147
    %v217 = vunpack.c.h.b16 %v147
    %v218 = vunpack.c.l.b16 %v148
    %v219 = vunpack.c.h.b16 %v148
    %v220 = vpack.c.b16 %v196, %v188
    %v221 = vpack.c.b16 %v197, %v189
    %v222 = vpack.c.b16 %v198, %v190
    %v223 = vpack.c.b16 %v199, %v191
    %v224 = vpack.c.b16 %v200, %v192
    %v225 = vpack.c.b16 %v201, %v193
    %v226 = vpack.c.b16 %v202, %v194
    %v227 = vpack.c.b16 %v203, %v195
    %v228 = vpack.c.b16 %v212, %v204
    %v229 = vpack.c.b16 %v213, %v205
    %v230 = vpack.c.b16 %v214, %v206
    %v231 = vpack.c.b16 %v215, %v207
    %v232 = vpack.c.b16 %v216, %v208
    %v233 = vpack.c.b16 %v217, %v209
    %v234 = vpack.c.b16 %v218, %v210
    %v235 = vpack.c.b16 %v219, %v211
    %vm252 = vcmask 261120
    %v254 = vsel %vm252, %v171, 0
    %256 = vmatpush.bf16.msra.mxu0 0
    %257 = vmatpush.bf16.msra.mxu0 0
    %258 = vmatpush.bf16.msra.mxu0 0
    %259 = vmatpush.bf16.msra.mxu0 0
    %260 = vmatpush.bf16.msra.mxu0 0
    %261 = vmatpush.bf16.msra.mxu0 0
    %262 = vmatpush.bf16.msra.mxu0 %v228
    %263 = vmatpush.bf16.msra.mxu0 %v220
    %264 = vmatmul.bf16.gmra.mxu0 %v254
    %v265 = vpop.f32.mrf.mxu0
    %v266 = vadd.f32 %v151, %v265
    %v267 = vpop.f32.mrf.mxu0
    %v268 = vadd.f32 %v151, %v267
    %269 = vdwg.mxu0
    %270 = vmatpush.bf16.msra.mxu0 0
    %271 = vmatpush.bf16.msra.mxu0 0
    %272 = vmatpush.bf16.msra.mxu0 0
    %273 = vmatpush.bf16.msra.mxu0 0
    %274 = vmatpush.bf16.msra.mxu0 0
    %275 = vmatpush.bf16.msra.mxu0 0
    %276 = vmatpush.bf16.msra.mxu0 %v229
    %277 = vmatpush.bf16.msra.mxu0 %v221
    %278 = vmatmul.bf16.gmra.mxu0 %v254
    %v279 = vpop.f32.mrf.mxu0
    %v280 = vadd.f32 %v152, %v279
    %v281 = vpop.f32.mrf.mxu0
    %v282 = vadd.f32 %v152, %v281
    %283 = vdwg.mxu0
    %284 = vmatpush.bf16.msra.mxu0 0
    %285 = vmatpush.bf16.msra.mxu0 0
    %286 = vmatpush.bf16.msra.mxu0 0
    %287 = vmatpush.bf16.msra.mxu0 0
    %288 = vmatpush.bf16.msra.mxu0 0
    %289 = vmatpush.bf16.msra.mxu0 0
    %290 = vmatpush.bf16.msra.mxu0 %v230
    %291 = vmatpush.bf16.msra.mxu0 %v222
    %292 = vmatmul.bf16.gmra.mxu0 %v254
    %v293 = vpop.f32.mrf.mxu0
    %v294 = vadd.f32 %v153, %v293
    %v295 = vpop.f32.mrf.mxu0
    %v296 = vadd.f32 %v153, %v295
    %297 = vdwg.mxu0
    %298 = vmatpush.bf16.msra.mxu0 0
    %299 = vmatpush.bf16.msra.mxu0 0
    %300 = vmatpush.bf16.msra.mxu0 0
    %301 = vmatpush.bf16.msra.mxu0 0
    %302 = vmatpush.bf16.msra.mxu0 0
    %303 = vmatpush.bf16.msra.mxu0 0
    %304 = vmatpush.bf16.msra.mxu0 %v231
    %305 = vmatpush.bf16.msra.mxu0 %v223
    %306 = vmatmul.bf16.gmra.mxu0 %v254
    %v307 = vpop.f32.mrf.mxu0
    %v308 = vadd.f32 %v154, %v307
    %v309 = vpop.f32.mrf.mxu0
    %v310 = vadd.f32 %v154, %v309
    %311 = vdwg.mxu0
    %312 = vmatpush.bf16.msra.mxu0 0
    %313 = vmatpush.bf16.msra.mxu0 0
    %314 = vmatpush.bf16.msra.mxu0 0
    %315 = vmatpush.bf16.msra.mxu0 0
    %316 = vmatpush.bf16.msra.mxu0 0
    %317 = vmatpush.bf16.msra.mxu0 0
    %318 = vmatpush.bf16.msra.mxu0 %v232
    %319 = vmatpush.bf16.msra.mxu0 %v224
    %320 = vmatmul.bf16.gmra.mxu0 %v254
    %v321 = vpop.f32.mrf.mxu0
    %v322 = vadd.f32 %v155, %v321
    %v323 = vpop.f32.mrf.mxu0
    %v324 = vadd.f32 %v155, %v323
    %325 = vdwg.mxu0
    %326 = vmatpush.bf16.msra.mxu0 0
    %327 = vmatpush.bf16.msra.mxu0 0
    %328 = vmatpush.bf16.msra.mxu0 0
    %329 = vmatpush.bf16.msra.mxu0 0
    %330 = vmatpush.bf16.msra.mxu0 0
    %331 = vmatpush.bf16.msra.mxu0 0
    %332 = vmatpush.bf16.msra.mxu0 %v233
    %333 = vmatpush.bf16.msra.mxu0 %v225
    %334 = vmatmul.bf16.gmra.mxu0 %v254
    %v335 = vpop.f32.mrf.mxu0
    %v336 = vadd.f32 %v156, %v335
    %v337 = vpop.f32.mrf.mxu0
    %v338 = vadd.f32 %v156, %v337
    %339 = vdwg.mxu0
    %340 = vmatpush.bf16.msra.mxu0 0
    %341 = vmatpush.bf16.msra.mxu0 0
    %342 = vmatpush.bf16.msra.mxu0 0
    %343 = vmatpush.bf16.msra.mxu0 0
    %344 = vmatpush.bf16.msra.mxu0 0
    %345 = vmatpush.bf16.msra.mxu0 0
    %346 = vmatpush.bf16.msra.mxu0 %v234
    %347 = vmatpush.bf16.msra.mxu0 %v226
    %348 = vmatmul.bf16.gmra.mxu0 %v254
    %v349 = vpop.f32.mrf.mxu0
    %v350 = vadd.f32 %v157, %v349
    %v351 = vpop.f32.mrf.mxu0
    %v352 = vadd.f32 %v157, %v351
    %353 = vdwg.mxu0
    %354 = vmatpush.bf16.msra.mxu0 0
    %355 = vmatpush.bf16.msra.mxu0 0
    %356 = vmatpush.bf16.msra.mxu0 0
    %357 = vmatpush.bf16.msra.mxu0 0
    %358 = vmatpush.bf16.msra.mxu0 0
    %359 = vmatpush.bf16.msra.mxu0 0
    %360 = vmatpush.bf16.msra.mxu0 %v235
    %361 = vmatpush.bf16.msra.mxu0 %v227
    %362 = vmatmul.bf16.gmra.mxu0 %v254
    %v363 = vpop.f32.mrf.mxu0
    %v364 = vadd.f32 %v158, %v363
    %v365 = vpop.f32.mrf.mxu0
    %v366 = vadd.f32 %v158, %v365
    %367 = vdwg.mxu0
    %v368 = vmax.f32 %v266, 0.0
    %v369 = vmax.f32 %v280, 0.0
    %v370 = vmax.f32 %v294, 0.0
    %v371 = vmax.f32 %v308, 0.0
    %v372 = vmax.f32 %v322, 0.0
    %v373 = vmax.f32 %v336, 0.0
    %v374 = vmax.f32 %v350, 0.0
    %v375 = vmax.f32 %v364, 0.0
    %v376 = vmax.f32 %v268, 0.0
    %v377 = vmax.f32 %v282, 0.0
    %v378 = vmax.f32 %v296, 0.0
    %v379 = vmax.f32 %v310, 0.0
    %v380 = vmax.f32 %v324, 0.0
    %v381 = vmax.f32 %v338, 0.0
    %v382 = vmax.f32 %v352, 0.0
    %v383 = vmax.f32 %v366, 0.0
    %v384 = vpack.c.bf16 %v376, %v368
    %v385 = vpack.c.bf16 %v377, %v369
    %v386 = vpack.c.bf16 %v378, %v370
    %v387 = vpack.c.bf16 %v379, %v371
    %v388 = vpack.c.bf16 %v380, %v372
    %v389 = vpack.c.bf16 %v381, %v373
    %v390 = vpack.c.bf16 %v382, %v374
    %v391 = vpack.c.bf16 %v383, %v375
    %v392 = vld [vmem:[#allocation8] sm:$0xff]
    %v393 = vld [vmem:[#allocation8 + $0x8] sm:$0xff]
    %v394 = vld [vmem:[#allocation8 + $0x10] sm:$0xff]
    %v395 = vld [vmem:[#allocation8 + $0x18] sm:$0xff]
    %v396 = vld [vmem:[#allocation8 + $0x20] sm:$0xff]
    %v397 = vld [vmem:[#allocation8 + $0x28] sm:$0xff]
    %v398 = vld [vmem:[#allocation8 + $0x30] sm:$0xff]
    %v399 = vld [vmem:[#allocation8 + $0x38] sm:$0xff]
    %v400 = vld [vmem:[#allocation8 + $0x40] sm:$0xff]
    %v401 = vld [vmem:[#allocation8 + $0x48] sm:$0xff]
    %v402 = vld [vmem:[#allocation8 + $0x50] sm:$0xff]
    %v403 = vld [vmem:[#allocation8 + $0x58] sm:$0xff]
    %v404 = vld [vmem:[#allocation8 + $0x60] sm:$0xff]
    %v405 = vld [vmem:[#allocation8 + $0x68] sm:$0xff]
    %v406 = vld [vmem:[#allocation8 + $0x70] sm:$0xff]
    %v407 = vld [vmem:[#allocation8 + $0x78] sm:$0xff]
    %v408 = vld [vmem:[#allocation8 + $0x80] sm:$0xff]
    %v409 = vld [vmem:[#allocation8 + $0x88] sm:$0xff]
    %v410 = vld [vmem:[#allocation8 + $0x90] sm:$0xff]
    %v411 = vld [vmem:[#allocation8 + $0x98] sm:$0xff]
    %v412 = vld [vmem:[#allocation8 + $0xa0] sm:$0xff]
    %v413 = vld [vmem:[#allocation8 + $0xa8] sm:$0xff]
    %v414 = vld [vmem:[#allocation8 + $0xb0] sm:$0xff]
    %v415 = vld [vmem:[#allocation8 + $0xb8] sm:$0xff]
    %v416 = vld [vmem:[#allocation8 + $0xc0] sm:$0xff]
    %v417 = vld [vmem:[#allocation8 + $0xc8] sm:$0xff]
    %v418 = vld [vmem:[#allocation8 + $0xd0] sm:$0xff]
    %v419 = vld [vmem:[#allocation8 + $0xd8] sm:$0xff]
    %v420 = vld [vmem:[#allocation8 + $0xe0] sm:$0xff]
    %v421 = vld [vmem:[#allocation8 + $0xe8] sm:$0xff]
    %v422 = vld [vmem:[#allocation8 + $0xf0] sm:$0xff]
    %v423 = vld [vmem:[#allocation8 + $0xf8] sm:$0xff]
    %v424 = vld [vmem:[#allocation8 + $0x100] sm:$0xff]
    %v425 = vld [vmem:[#allocation8 + $0x108] sm:$0xff]
    %v426 = vld [vmem:[#allocation8 + $0x110] sm:$0xff]
    %v427 = vld [vmem:[#allocation8 + $0x118] sm:$0xff]
    %v428 = vld [vmem:[#allocation8 + $0x120] sm:$0xff]
    %v429 = vld [vmem:[#allocation8 + $0x128] sm:$0xff]
    %v430 = vld [vmem:[#allocation8 + $0x130] sm:$0xff]
    %v431 = vld [vmem:[#allocation8 + $0x138] sm:$0xff]
    %v432 = vld [vmem:[#allocation8 + $0x140] sm:$0xff]
    %v433 = vld [vmem:[#allocation8 + $0x148] sm:$0xff]
    %v434 = vld [vmem:[#allocation8 + $0x150] sm:$0xff]
    %v435 = vld [vmem:[#allocation8 + $0x158] sm:$0xff]
    %v436 = vld [vmem:[#allocation8 + $0x160] sm:$0xff]
    %v437 = vld [vmem:[#allocation8 + $0x168] sm:$0xff]
    %v438 = vld [vmem:[#allocation8 + $0x170] sm:$0xff]
    %v439 = vld [vmem:[#allocation8 + $0x178] sm:$0xff]
    %v440 = vld [vmem:[#allocation8 + $0x180] sm:$0xff]
    %v441 = vld [vmem:[#allocation8 + $0x188] sm:$0xff]
    %v442 = vld [vmem:[#allocation8 + $0x190] sm:$0xff]
    %v443 = vld [vmem:[#allocation8 + $0x198] sm:$0xff]
    %v444 = vld [vmem:[#allocation8 + $0x1a0] sm:$0xff]
    %v445 = vld [vmem:[#allocation8 + $0x1a8] sm:$0xff]
    %v446 = vld [vmem:[#allocation8 + $0x1b0] sm:$0xff]
    %v447 = vld [vmem:[#allocation8 + $0x1b8] sm:$0xff]
    %v448 = vld [vmem:[#allocation8 + $0x1c0] sm:$0xff]
    %v449 = vld [vmem:[#allocation8 + $0x1c8] sm:$0xff]
    %v450 = vld [vmem:[#allocation8 + $0x1d0] sm:$0xff]
    %v451 = vld [vmem:[#allocation8 + $0x1d8] sm:$0xff]
    %v452 = vld [vmem:[#allocation8 + $0x1e0] sm:$0xff]
    %v453 = vld [vmem:[#allocation8 + $0x1e8] sm:$0xff]
    %v454 = vld [vmem:[#allocation8 + $0x1f0] sm:$0xff]
    %v455 = vld [vmem:[#allocation8 + $0x1f8] sm:$0xff]
    %v456 = vld [vmem:[#allocation8 + $0x200] sm:$0xff]
    %v457 = vld [vmem:[#allocation8 + $0x208] sm:$0xff]
    %v458 = vld [vmem:[#allocation8 + $0x210] sm:$0xff]
    %v459 = vld [vmem:[#allocation8 + $0x218] sm:$0xff]
    %v460 = vld [vmem:[#allocation8 + $0x220] sm:$0xff]
    %v461 = vld [vmem:[#allocation8 + $0x228] sm:$0xff]
    %v462 = vld [vmem:[#allocation8 + $0x230] sm:$0xff]
    %v463 = vld [vmem:[#allocation8 + $0x238] sm:$0xff]
    %v464 = vld [vmem:[#allocation8 + $0x240] sm:$0xff]
    %v465 = vld [vmem:[#allocation8 + $0x248] sm:$0xff]
    %v466 = vld [vmem:[#allocation8 + $0x250] sm:$0xff]
    %v467 = vld [vmem:[#allocation8 + $0x258] sm:$0xff]
    %v468 = vld [vmem:[#allocation8 + $0x260] sm:$0xff]
    %v469 = vld [vmem:[#allocation8 + $0x268] sm:$0xff]
    %v470 = vld [vmem:[#allocation8 + $0x270] sm:$0xff]
    %v471 = vld [vmem:[#allocation8 + $0x278] sm:$0xff]
    %v472 = vld [vmem:[#allocation8 + $0x280] sm:$0xff]
    %v473 = vld [vmem:[#allocation8 + $0x288] sm:$0xff]
    %v474 = vld [vmem:[#allocation8 + $0x290] sm:$0xff]
    %v475 = vld [vmem:[#allocation8 + $0x298] sm:$0xff]
    %v476 = vld [vmem:[#allocation8 + $0x2a0] sm:$0xff]
    %v477 = vld [vmem:[#allocation8 + $0x2a8] sm:$0xff]
    %v478 = vld [vmem:[#allocation8 + $0x2b0] sm:$0xff]
    %v479 = vld [vmem:[#allocation8 + $0x2b8] sm:$0xff]
    %v480 = vld [vmem:[#allocation8 + $0x2c0] sm:$0xff]
    %v481 = vld [vmem:[#allocation8 + $0x2c8] sm:$0xff]
    %v482 = vld [vmem:[#allocation8 + $0x2d0] sm:$0xff]
    %v483 = vld [vmem:[#allocation8 + $0x2d8] sm:$0xff]
    %v484 = vld [vmem:[#allocation8 + $0x2e0] sm:$0xff]
    %v485 = vld [vmem:[#allocation8 + $0x2e8] sm:$0xff]
    %v486 = vld [vmem:[#allocation8 + $0x2f0] sm:$0xff]
    %v487 = vld [vmem:[#allocation8 + $0x2f8] sm:$0xff]
    %v488 = vld [vmem:[#allocation8 + $0x300] sm:$0xff]
    %v489 = vld [vmem:[#allocation8 + $0x308] sm:$0xff]
    %v490 = vld [vmem:[#allocation8 + $0x310] sm:$0xff]
    %v491 = vld [vmem:[#allocation8 + $0x318] sm:$0xff]
    %v492 = vld [vmem:[#allocation8 + $0x320] sm:$0xff]
    %v493 = vld [vmem:[#allocation8 + $0x328] sm:$0xff]
    %v494 = vld [vmem:[#allocation8 + $0x330] sm:$0xff]
    %v495 = vld [vmem:[#allocation8 + $0x338] sm:$0xff]
    %v496 = vld [vmem:[#allocation8 + $0x340] sm:$0xff]
    %v497 = vld [vmem:[#allocation8 + $0x348] sm:$0xff]
    %v498 = vld [vmem:[#allocation8 + $0x350] sm:$0xff]
    %v499 = vld [vmem:[#allocation8 + $0x358] sm:$0xff]
    %v500 = vld [vmem:[#allocation8 + $0x360] sm:$0xff]
    %v501 = vld [vmem:[#allocation8 + $0x368] sm:$0xff]
    %v502 = vld [vmem:[#allocation8 + $0x370] sm:$0xff]
    %v503 = vld [vmem:[#allocation8 + $0x378] sm:$0xff]
    %v504 = vld [vmem:[#allocation8 + $0x380] sm:$0xff]
    %v505 = vld [vmem:[#allocation8 + $0x388] sm:$0xff]
    %v506 = vld [vmem:[#allocation8 + $0x390] sm:$0xff]
    %v507 = vld [vmem:[#allocation8 + $0x398] sm:$0xff]
    %v508 = vld [vmem:[#allocation8 + $0x3a0] sm:$0xff]
    %v509 = vld [vmem:[#allocation8 + $0x3a8] sm:$0xff]
    %v510 = vld [vmem:[#allocation8 + $0x3b0] sm:$0xff]
    %v511 = vld [vmem:[#allocation8 + $0x3b8] sm:$0xff]
    %v512 = vld [vmem:[#allocation8 + $0x3c0] sm:$0xff]
    %v513 = vld [vmem:[#allocation8 + $0x3c8] sm:$0xff]
    %v514 = vld [vmem:[#allocation8 + $0x3d0] sm:$0xff]
    %v515 = vld [vmem:[#allocation8 + $0x3d8] sm:$0xff]
    %v516 = vld [vmem:[#allocation8 + $0x3e0] sm:$0xff]
    %v517 = vld [vmem:[#allocation8 + $0x3e8] sm:$0xff]
    %v518 = vld [vmem:[#allocation8 + $0x3f0] sm:$0xff]
    %v519 = vld [vmem:[#allocation8 + $0x3f8] sm:$0xff]
    %v520 = vld [vmem:[#allocation8 + $0x400] sm:$0xff]
    %v521 = vld [vmem:[#allocation8 + $0x408] sm:$0xff]
    %v522 = vld [vmem:[#allocation8 + $0x410] sm:$0xff]
    %v523 = vld [vmem:[#allocation8 + $0x418] sm:$0xff]
    %v524 = vld [vmem:[#allocation8 + $0x420] sm:$0xff]
    %v525 = vld [vmem:[#allocation8 + $0x428] sm:$0xff]
    %v526 = vld [vmem:[#allocation8 + $0x430] sm:$0xff]
    %v527 = vld [vmem:[#allocation8 + $0x438] sm:$0xff]
    %v528 = vld [vmem:[#allocation8 + $0x440] sm:$0xff]
    %v529 = vld [vmem:[#allocation8 + $0x448] sm:$0xff]
    %v530 = vld [vmem:[#allocation8 + $0x450] sm:$0xff]
    %v531 = vld [vmem:[#allocation8 + $0x458] sm:$0xff]
    %v532 = vld [vmem:[#allocation8 + $0x460] sm:$0xff]
    %v533 = vld [vmem:[#allocation8 + $0x468] sm:$0xff]
    %v534 = vld [vmem:[#allocation8 + $0x470] sm:$0xff]
    %v535 = vld [vmem:[#allocation8 + $0x478] sm:$0xff]
    %v536 = vld [vmem:[#allocation8 + $0x480] sm:$0xff]
    %v537 = vld [vmem:[#allocation8 + $0x488] sm:$0xff]
    %v538 = vld [vmem:[#allocation8 + $0x490] sm:$0xff]
    %v539 = vld [vmem:[#allocation8 + $0x498] sm:$0xff]
    %v540 = vld [vmem:[#allocation8 + $0x4a0] sm:$0xff]
    %v541 = vld [vmem:[#allocation8 + $0x4a8] sm:$0xff]
    %v542 = vld [vmem:[#allocation8 + $0x4b0] sm:$0xff]
    %v543 = vld [vmem:[#allocation8 + $0x4b8] sm:$0xff]
    %v544 = vld [vmem:[#allocation8 + $0x4c0] sm:$0xff]
    %v545 = vld [vmem:[#allocation8 + $0x4c8] sm:$0xff]
    %v546 = vld [vmem:[#allocation8 + $0x4d0] sm:$0xff]
    %v547 = vld [vmem:[#allocation8 + $0x4d8] sm:$0xff]
    %v548 = vld [vmem:[#allocation8 + $0x4e0] sm:$0xff]
    %v549 = vld [vmem:[#allocation8 + $0x4e8] sm:$0xff]
    %v550 = vld [vmem:[#allocation8 + $0x4f0] sm:$0xff]
    %v551 = vld [vmem:[#allocation8 + $0x4f8] sm:$0xff]
    %v552 = vld [vmem:[#allocation8 + $0x500] sm:$0xff]
    %v553 = vld [vmem:[#allocation8 + $0x508] sm:$0xff]
    %v554 = vld [vmem:[#allocation8 + $0x510] sm:$0xff]
    %v555 = vld [vmem:[#allocation8 + $0x518] sm:$0xff]
    %v556 = vld [vmem:[#allocation8 + $0x520] sm:$0xff]
    %v557 = vld [vmem:[#allocation8 + $0x528] sm:$0xff]
    %v558 = vld [vmem:[#allocation8 + $0x530] sm:$0xff]
    %v559 = vld [vmem:[#allocation8 + $0x538] sm:$0xff]
    %v560 = vld [vmem:[#allocation8 + $0x540] sm:$0xff]
    %v561 = vld [vmem:[#allocation8 + $0x548] sm:$0xff]
    %v562 = vld [vmem:[#allocation8 + $0x550] sm:$0xff]
    %v563 = vld [vmem:[#allocation8 + $0x558] sm:$0xff]
    %v564 = vld [vmem:[#allocation8 + $0x560] sm:$0xff]
    %v565 = vld [vmem:[#allocation8 + $0x568] sm:$0xff]
    %v566 = vld [vmem:[#allocation8 + $0x570] sm:$0xff]
    %v567 = vld [vmem:[#allocation8 + $0x578] sm:$0xff]
    %v568 = vld [vmem:[#allocation8 + $0x580] sm:$0xff]
    %v569 = vld [vmem:[#allocation8 + $0x588] sm:$0xff]
    %v570 = vld [vmem:[#allocation8 + $0x590] sm:$0xff]
    %v571 = vld [vmem:[#allocation8 + $0x598] sm:$0xff]
    %v572 = vld [vmem:[#allocation8 + $0x5a0] sm:$0xff]
    %v573 = vld [vmem:[#allocation8 + $0x5a8] sm:$0xff]
    %v574 = vld [vmem:[#allocation8 + $0x5b0] sm:$0xff]
    %v575 = vld [vmem:[#allocation8 + $0x5b8] sm:$0xff]
    %v576 = vld [vmem:[#allocation8 + $0x5c0] sm:$0xff]
    %v577 = vld [vmem:[#allocation8 + $0x5c8] sm:$0xff]
    %v578 = vld [vmem:[#allocation8 + $0x5d0] sm:$0xff]
    %v579 = vld [vmem:[#allocation8 + $0x5d8] sm:$0xff]
    %v580 = vld [vmem:[#allocation8 + $0x5e0] sm:$0xff]
    %v581 = vld [vmem:[#allocation8 + $0x5e8] sm:$0xff]
    %v582 = vld [vmem:[#allocation8 + $0x5f0] sm:$0xff]
    %v583 = vld [vmem:[#allocation8 + $0x5f8] sm:$0xff]
    %v584 = vld [vmem:[#allocation8 + $0x600] sm:$0xff]
    %v585 = vld [vmem:[#allocation8 + $0x608] sm:$0xff]
    %v586 = vld [vmem:[#allocation8 + $0x610] sm:$0xff]
    %v587 = vld [vmem:[#allocation8 + $0x618] sm:$0xff]
    %v588 = vld [vmem:[#allocation8 + $0x620] sm:$0xff]
    %v589 = vld [vmem:[#allocation8 + $0x628] sm:$0xff]
    %v590 = vld [vmem:[#allocation8 + $0x630] sm:$0xff]
    %v591 = vld [vmem:[#allocation8 + $0x638] sm:$0xff]
    %v592 = vld [vmem:[#allocation8 + $0x640] sm:$0xff]
    %v593 = vld [vmem:[#allocation8 + $0x648] sm:$0xff]
    %v594 = vld [vmem:[#allocation8 + $0x650] sm:$0xff]
    %v595 = vld [vmem:[#allocation8 + $0x658] sm:$0xff]
    %v596 = vld [vmem:[#allocation8 + $0x660] sm:$0xff]
    %v597 = vld [vmem:[#allocation8 + $0x668] sm:$0xff]
    %v598 = vld [vmem:[#allocation8 + $0x670] sm:$0xff]
    %v599 = vld [vmem:[#allocation8 + $0x678] sm:$0xff]
    %v600 = vld [vmem:[#allocation8 + $0x680] sm:$0xff]
    %v601 = vld [vmem:[#allocation8 + $0x688] sm:$0xff]
    %v602 = vld [vmem:[#allocation8 + $0x690] sm:$0xff]
    %v603 = vld [vmem:[#allocation8 + $0x698] sm:$0xff]
    %v604 = vld [vmem:[#allocation8 + $0x6a0] sm:$0xff]
    %v605 = vld [vmem:[#allocation8 + $0x6a8] sm:$0xff]
    %v606 = vld [vmem:[#allocation8 + $0x6b0] sm:$0xff]
    %v607 = vld [vmem:[#allocation8 + $0x6b8] sm:$0xff]
    %v608 = vld [vmem:[#allocation8 + $0x6c0] sm:$0xff]
    %v609 = vld [vmem:[#allocation8 + $0x6c8] sm:$0xff]
    %v610 = vld [vmem:[#allocation8 + $0x6d0] sm:$0xff]
    %v611 = vld [vmem:[#allocation8 + $0x6d8] sm:$0xff]
    %v612 = vld [vmem:[#allocation8 + $0x6e0] sm:$0xff]
    %v613 = vld [vmem:[#allocation8 + $0x6e8] sm:$0xff]
    %v614 = vld [vmem:[#allocation8 + $0x6f0] sm:$0xff]
    %v615 = vld [vmem:[#allocation8 + $0x6f8] sm:$0xff]
    %v616 = vld [vmem:[#allocation8 + $0x700] sm:$0xff]
    %v617 = vld [vmem:[#allocation8 + $0x708] sm:$0xff]
    %v618 = vld [vmem:[#allocation8 + $0x710] sm:$0xff]
    %v619 = vld [vmem:[#allocation8 + $0x718] sm:$0xff]
    %v620 = vld [vmem:[#allocation8 + $0x720] sm:$0xff]
    %v621 = vld [vmem:[#allocation8 + $0x728] sm:$0xff]
    %v622 = vld [vmem:[#allocation8 + $0x730] sm:$0xff]
    %v623 = vld [vmem:[#allocation8 + $0x738] sm:$0xff]
    %v624 = vld [vmem:[#allocation8 + $0x740] sm:$0xff]
    %v625 = vld [vmem:[#allocation8 + $0x748] sm:$0xff]
    %v626 = vld [vmem:[#allocation8 + $0x750] sm:$0xff]
    %v627 = vld [vmem:[#allocation8 + $0x758] sm:$0xff]
    %v628 = vld [vmem:[#allocation8 + $0x760] sm:$0xff]
    %v629 = vld [vmem:[#allocation8 + $0x768] sm:$0xff]
    %v630 = vld [vmem:[#allocation8 + $0x770] sm:$0xff]
    %v631 = vld [vmem:[#allocation8 + $0x778] sm:$0xff]
    %v632 = vld [vmem:[#allocation8 + $0x780] sm:$0xff]
    %v633 = vld [vmem:[#allocation8 + $0x788] sm:$0xff]
    %v634 = vld [vmem:[#allocation8 + $0x790] sm:$0xff]
    %v635 = vld [vmem:[#allocation8 + $0x798] sm:$0xff]
    %v636 = vld [vmem:[#allocation8 + $0x7a0] sm:$0xff]
    %v637 = vld [vmem:[#allocation8 + $0x7a8] sm:$0xff]
    %v638 = vld [vmem:[#allocation8 + $0x7b0] sm:$0xff]
    %v639 = vld [vmem:[#allocation8 + $0x7b8] sm:$0xff]
    %v640 = vld [vmem:[#allocation8 + $0x7c0] sm:$0xff]
    %v641 = vld [vmem:[#allocation8 + $0x7c8] sm:$0xff]
    %v642 = vld [vmem:[#allocation8 + $0x7d0] sm:$0xff]
    %v643 = vld [vmem:[#allocation8 + $0x7d8] sm:$0xff]
    %v644 = vld [vmem:[#allocation8 + $0x7e0] sm:$0xff]
    %v645 = vld [vmem:[#allocation8 + $0x7e8] sm:$0xff]
    %v646 = vld [vmem:[#allocation8 + $0x7f0] sm:$0xff]
    %v647 = vld [vmem:[#allocation8 + $0x7f8] sm:$0xff]
    %v648 = vld [vmem:[#allocation8 + $0x800] sm:$0xff]
    %v649 = vld [vmem:[#allocation8 + $0x808] sm:$0xff]
    %v650 = vld [vmem:[#allocation8 + $0x810] sm:$0xff]
    %v651 = vld [vmem:[#allocation8 + $0x818] sm:$0xff]
    %v652 = vld [vmem:[#allocation8 + $0x820] sm:$0xff]
    %v653 = vld [vmem:[#allocation8 + $0x828] sm:$0xff]
    %v654 = vld [vmem:[#allocation8 + $0x830] sm:$0xff]
    %v655 = vld [vmem:[#allocation8 + $0x838] sm:$0xff]
    %v656 = vld [vmem:[#allocation8 + $0x840] sm:$0xff]
    %v657 = vld [vmem:[#allocation8 + $0x848] sm:$0xff]
    %v658 = vld [vmem:[#allocation8 + $0x850] sm:$0xff]
    %v659 = vld [vmem:[#allocation8 + $0x858] sm:$0xff]
    %v660 = vld [vmem:[#allocation8 + $0x860] sm:$0xff]
    %v661 = vld [vmem:[#allocation8 + $0x868] sm:$0xff]
    %v662 = vld [vmem:[#allocation8 + $0x870] sm:$0xff]
    %v663 = vld [vmem:[#allocation8 + $0x878] sm:$0xff]
    %v664 = vld [vmem:[#allocation8 + $0x880] sm:$0xff]
    %v665 = vld [vmem:[#allocation8 + $0x888] sm:$0xff]
    %v666 = vld [vmem:[#allocation8 + $0x890] sm:$0xff]
    %v667 = vld [vmem:[#allocation8 + $0x898] sm:$0xff]
    %v668 = vld [vmem:[#allocation8 + $0x8a0] sm:$0xff]
    %v669 = vld [vmem:[#allocation8 + $0x8a8] sm:$0xff]
    %v670 = vld [vmem:[#allocation8 + $0x8b0] sm:$0xff]
    %v671 = vld [vmem:[#allocation8 + $0x8b8] sm:$0xff]
    %v672 = vld [vmem:[#allocation8 + $0x8c0] sm:$0xff]
    %v673 = vld [vmem:[#allocation8 + $0x8c8] sm:$0xff]
    %v674 = vld [vmem:[#allocation8 + $0x8d0] sm:$0xff]
    %v675 = vld [vmem:[#allocation8 + $0x8d8] sm:$0xff]
    %v676 = vld [vmem:[#allocation8 + $0x8e0] sm:$0xff]
    %v677 = vld [vmem:[#allocation8 + $0x8e8] sm:$0xff]
    %v678 = vld [vmem:[#allocation8 + $0x8f0] sm:$0xff]
    %v679 = vld [vmem:[#allocation8 + $0x8f8] sm:$0xff]
    %v680 = vld [vmem:[#allocation8 + $0x900] sm:$0xff]
    %v681 = vld [vmem:[#allocation8 + $0x908] sm:$0xff]
    %v682 = vld [vmem:[#allocation8 + $0x910] sm:$0xff]
    %v683 = vld [vmem:[#allocation8 + $0x918] sm:$0xff]
    %v684 = vld [vmem:[#allocation8 + $0x920] sm:$0xff]
    %v685 = vld [vmem:[#allocation8 + $0x928] sm:$0xff]
    %v686 = vld [vmem:[#allocation8 + $0x930] sm:$0xff]
    %v687 = vld [vmem:[#allocation8 + $0x938] sm:$0xff]
    %v688 = vld [vmem:[#allocation8 + $0x940] sm:$0xff]
    %v689 = vld [vmem:[#allocation8 + $0x948] sm:$0xff]
    %v690 = vld [vmem:[#allocation8 + $0x950] sm:$0xff]
    %v691 = vld [vmem:[#allocation8 + $0x958] sm:$0xff]
    %v692 = vld [vmem:[#allocation8 + $0x960] sm:$0xff]
    %v693 = vld [vmem:[#allocation8 + $0x968] sm:$0xff]
    %v694 = vld [vmem:[#allocation8 + $0x970] sm:$0xff]
    %v695 = vld [vmem:[#allocation8 + $0x978] sm:$0xff]
    %v696 = vld [vmem:[#allocation8 + $0x980] sm:$0xff]
    %v697 = vld [vmem:[#allocation8 + $0x988] sm:$0xff]
    %v698 = vld [vmem:[#allocation8 + $0x990] sm:$0xff]
    %v699 = vld [vmem:[#allocation8 + $0x998] sm:$0xff]
    %v700 = vld [vmem:[#allocation8 + $0x9a0] sm:$0xff]
    %v701 = vld [vmem:[#allocation8 + $0x9a8] sm:$0xff]
    %v702 = vld [vmem:[#allocation8 + $0x9b0] sm:$0xff]
    %v703 = vld [vmem:[#allocation8 + $0x9b8] sm:$0xff]
    %v704 = vld [vmem:[#allocation8 + $0x9c0] sm:$0xff]
    %v705 = vld [vmem:[#allocation8 + $0x9c8] sm:$0xff]
    %v706 = vld [vmem:[#allocation8 + $0x9d0] sm:$0xff]
    %v707 = vld [vmem:[#allocation8 + $0x9d8] sm:$0xff]
    %v708 = vld [vmem:[#allocation8 + $0x9e0] sm:$0xff]
    %v709 = vld [vmem:[#allocation8 + $0x9e8] sm:$0xff]
    %v710 = vld [vmem:[#allocation8 + $0x9f0] sm:$0xff]
    %v711 = vld [vmem:[#allocation8 + $0x9f8] sm:$0xff]
    %v712 = vld [vmem:[#allocation8 + $0xa00] sm:$0xff]
    %v713 = vld [vmem:[#allocation8 + $0xa08] sm:$0xff]
    %v714 = vld [vmem:[#allocation8 + $0xa10] sm:$0xff]
    %v715 = vld [vmem:[#allocation8 + $0xa18] sm:$0xff]
    %v716 = vld [vmem:[#allocation8 + $0xa20] sm:$0xff]
    %v717 = vld [vmem:[#allocation8 + $0xa28] sm:$0xff]
    %v718 = vld [vmem:[#allocation8 + $0xa30] sm:$0xff]
    %v719 = vld [vmem:[#allocation8 + $0xa38] sm:$0xff]
    %v720 = vld [vmem:[#allocation8 + $0xa40] sm:$0xff]
    %v721 = vld [vmem:[#allocation8 + $0xa48] sm:$0xff]
    %v722 = vld [vmem:[#allocation8 + $0xa50] sm:$0xff]
    %v723 = vld [vmem:[#allocation8 + $0xa58] sm:$0xff]
    %v724 = vld [vmem:[#allocation8 + $0xa60] sm:$0xff]
    %v725 = vld [vmem:[#allocation8 + $0xa68] sm:$0xff]
    %v726 = vld [vmem:[#allocation8 + $0xa70] sm:$0xff]
    %v727 = vld [vmem:[#allocation8 + $0xa78] sm:$0xff]
    %v728 = vld [vmem:[#allocation8 + $0xa80] sm:$0xff]
    %v729 = vld [vmem:[#allocation8 + $0xa88] sm:$0xff]
    %v730 = vld [vmem:[#allocation8 + $0xa90] sm:$0xff]
    %v731 = vld [vmem:[#allocation8 + $0xa98] sm:$0xff]
    %v732 = vld [vmem:[#allocation8 + $0xaa0] sm:$0xff]
    %v733 = vld [vmem:[#allocation8 + $0xaa8] sm:$0xff]
    %v734 = vld [vmem:[#allocation8 + $0xab0] sm:$0xff]
    %v735 = vld [vmem:[#allocation8 + $0xab8] sm:$0xff]
    %v736 = vld [vmem:[#allocation8 + $0xac0] sm:$0xff]
    %v737 = vld [vmem:[#allocation8 + $0xac8] sm:$0xff]
    %v738 = vld [vmem:[#allocation8 + $0xad0] sm:$0xff]
    %v739 = vld [vmem:[#allocation8 + $0xad8] sm:$0xff]
    %v740 = vld [vmem:[#allocation8 + $0xae0] sm:$0xff]
    %v741 = vld [vmem:[#allocation8 + $0xae8] sm:$0xff]
    %v742 = vld [vmem:[#allocation8 + $0xaf0] sm:$0xff]
    %v743 = vld [vmem:[#allocation8 + $0xaf8] sm:$0xff]
    %v744 = vld [vmem:[#allocation8 + $0xb00] sm:$0xff]
    %v745 = vld [vmem:[#allocation8 + $0xb08] sm:$0xff]
    %v746 = vld [vmem:[#allocation8 + $0xb10] sm:$0xff]
    %v747 = vld [vmem:[#allocation8 + $0xb18] sm:$0xff]
    %v748 = vld [vmem:[#allocation8 + $0xb20] sm:$0xff]
    %v749 = vld [vmem:[#allocation8 + $0xb28] sm:$0xff]
    %v750 = vld [vmem:[#allocation8 + $0xb30] sm:$0xff]
    %v751 = vld [vmem:[#allocation8 + $0xb38] sm:$0xff]
    %v752 = vld [vmem:[#allocation8 + $0xb40] sm:$0xff]
    %v753 = vld [vmem:[#allocation8 + $0xb48] sm:$0xff]
    %v754 = vld [vmem:[#allocation8 + $0xb50] sm:$0xff]
    %v755 = vld [vmem:[#allocation8 + $0xb58] sm:$0xff]
    %v756 = vld [vmem:[#allocation8 + $0xb60] sm:$0xff]
    %v757 = vld [vmem:[#allocation8 + $0xb68] sm:$0xff]
    %v758 = vld [vmem:[#allocation8 + $0xb70] sm:$0xff]
    %v759 = vld [vmem:[#allocation8 + $0xb78] sm:$0xff]
    %v760 = vld [vmem:[#allocation8 + $0xb80] sm:$0xff]
    %v761 = vld [vmem:[#allocation8 + $0xb88] sm:$0xff]
    %v762 = vld [vmem:[#allocation8 + $0xb90] sm:$0xff]
    %v763 = vld [vmem:[#allocation8 + $0xb98] sm:$0xff]
    %v764 = vld [vmem:[#allocation8 + $0xba0] sm:$0xff]
    %v765 = vld [vmem:[#allocation8 + $0xba8] sm:$0xff]
    %v766 = vld [vmem:[#allocation8 + $0xbb0] sm:$0xff]
    %v767 = vld [vmem:[#allocation8 + $0xbb8] sm:$0xff]
    %v768 = vld [vmem:[#allocation8 + $0xbc0] sm:$0xff]
    %v769 = vld [vmem:[#allocation8 + $0xbc8] sm:$0xff]
    %v770 = vld [vmem:[#allocation8 + $0xbd0] sm:$0xff]
    %v771 = vld [vmem:[#allocation8 + $0xbd8] sm:$0xff]
    %v772 = vld [vmem:[#allocation8 + $0xbe0] sm:$0xff]
    %v773 = vld [vmem:[#allocation8 + $0xbe8] sm:$0xff]
    %v774 = vld [vmem:[#allocation8 + $0xbf0] sm:$0xff]
    %v775 = vld [vmem:[#allocation8 + $0xbf8] sm:$0xff]
    %v776 = vld [vmem:[#allocation8 + $0xc00] sm:$0xff]
    %v777 = vld [vmem:[#allocation8 + $0xc08] sm:$0xff]
    %v778 = vld [vmem:[#allocation8 + $0xc10] sm:$0xff]
    %v779 = vld [vmem:[#allocation8 + $0xc18] sm:$0xff]
    %v780 = vld [vmem:[#allocation8 + $0xc20] sm:$0xff]
    %v781 = vld [vmem:[#allocation8 + $0xc28] sm:$0xff]
    %v782 = vld [vmem:[#allocation8 + $0xc30] sm:$0xff]
    %v783 = vld [vmem:[#allocation8 + $0xc38] sm:$0xff]
    %v784 = vld [vmem:[#allocation8 + $0xc40] sm:$0xff]
    %v785 = vld [vmem:[#allocation8 + $0xc48] sm:$0xff]
    %v786 = vld [vmem:[#allocation8 + $0xc50] sm:$0xff]
    %v787 = vld [vmem:[#allocation8 + $0xc58] sm:$0xff]
    %v788 = vld [vmem:[#allocation8 + $0xc60] sm:$0xff]
    %v789 = vld [vmem:[#allocation8 + $0xc68] sm:$0xff]
    %v790 = vld [vmem:[#allocation8 + $0xc70] sm:$0xff]
    %v791 = vld [vmem:[#allocation8 + $0xc78] sm:$0xff]
    %v792 = vld [vmem:[#allocation8 + $0xc80] sm:$0xff]
    %v793 = vld [vmem:[#allocation8 + $0xc88] sm:$0xff]
    %v794 = vld [vmem:[#allocation8 + $0xc90] sm:$0xff]
    %v795 = vld [vmem:[#allocation8 + $0xc98] sm:$0xff]
    %v796 = vld [vmem:[#allocation8 + $0xca0] sm:$0xff]
    %v797 = vld [vmem:[#allocation8 + $0xca8] sm:$0xff]
    %v798 = vld [vmem:[#allocation8 + $0xcb0] sm:$0xff]
    %v799 = vld [vmem:[#allocation8 + $0xcb8] sm:$0xff]
    %v800 = vld [vmem:[#allocation8 + $0xcc0] sm:$0xff]
    %v801 = vld [vmem:[#allocation8 + $0xcc8] sm:$0xff]
    %v802 = vld [vmem:[#allocation8 + $0xcd0] sm:$0xff]
    %v803 = vld [vmem:[#allocation8 + $0xcd8] sm:$0xff]
    %v804 = vld [vmem:[#allocation8 + $0xce0] sm:$0xff]
    %v805 = vld [vmem:[#allocation8 + $0xce8] sm:$0xff]
    %v806 = vld [vmem:[#allocation8 + $0xcf0] sm:$0xff]
    %v807 = vld [vmem:[#allocation8 + $0xcf8] sm:$0xff]
    %v808 = vld [vmem:[#allocation8 + $0xd00] sm:$0xff]
    %v809 = vld [vmem:[#allocation8 + $0xd08] sm:$0xff]
    %v810 = vld [vmem:[#allocation8 + $0xd10] sm:$0xff]
    %v811 = vld [vmem:[#allocation8 + $0xd18] sm:$0xff]
    %v812 = vld [vmem:[#allocation8 + $0xd20] sm:$0xff]
    %v813 = vld [vmem:[#allocation8 + $0xd28] sm:$0xff]
    %v814 = vld [vmem:[#allocation8 + $0xd30] sm:$0xff]
    %v815 = vld [vmem:[#allocation8 + $0xd38] sm:$0xff]
    %v816 = vld [vmem:[#allocation8 + $0xd40] sm:$0xff]
    %v817 = vld [vmem:[#allocation8 + $0xd48] sm:$0xff]
    %v818 = vld [vmem:[#allocation8 + $0xd50] sm:$0xff]
    %v819 = vld [vmem:[#allocation8 + $0xd58] sm:$0xff]
    %v820 = vld [vmem:[#allocation8 + $0xd60] sm:$0xff]
    %v821 = vld [vmem:[#allocation8 + $0xd68] sm:$0xff]
    %v822 = vld [vmem:[#allocation8 + $0xd70] sm:$0xff]
    %v823 = vld [vmem:[#allocation8 + $0xd78] sm:$0xff]
    %v824 = vld [vmem:[#allocation8 + $0xd80] sm:$0xff]
    %v825 = vld [vmem:[#allocation8 + $0xd88] sm:$0xff]
    %v826 = vld [vmem:[#allocation8 + $0xd90] sm:$0xff]
    %v827 = vld [vmem:[#allocation8 + $0xd98] sm:$0xff]
    %v828 = vld [vmem:[#allocation8 + $0xda0] sm:$0xff]
    %v829 = vld [vmem:[#allocation8 + $0xda8] sm:$0xff]
    %v830 = vld [vmem:[#allocation8 + $0xdb0] sm:$0xff]
    %v831 = vld [vmem:[#allocation8 + $0xdb8] sm:$0xff]
    %v832 = vld [vmem:[#allocation8 + $0xdc0] sm:$0xff]
    %v833 = vld [vmem:[#allocation8 + $0xdc8] sm:$0xff]
    %v834 = vld [vmem:[#allocation8 + $0xdd0] sm:$0xff]
    %v835 = vld [vmem:[#allocation8 + $0xdd8] sm:$0xff]
    %v836 = vld [vmem:[#allocation8 + $0xde0] sm:$0xff]
    %v837 = vld [vmem:[#allocation8 + $0xde8] sm:$0xff]
    %v838 = vld [vmem:[#allocation8 + $0xdf0] sm:$0xff]
    %v839 = vld [vmem:[#allocation8 + $0xdf8] sm:$0xff]
    %v840 = vld [vmem:[#allocation8 + $0xe00] sm:$0xff]
    %v841 = vld [vmem:[#allocation8 + $0xe08] sm:$0xff]
    %v842 = vld [vmem:[#allocation8 + $0xe10] sm:$0xff]
    %v843 = vld [vmem:[#allocation8 + $0xe18] sm:$0xff]
    %v844 = vld [vmem:[#allocation8 + $0xe20] sm:$0xff]
    %v845 = vld [vmem:[#allocation8 + $0xe28] sm:$0xff]
    %v846 = vld [vmem:[#allocation8 + $0xe30] sm:$0xff]
    %v847 = vld [vmem:[#allocation8 + $0xe38] sm:$0xff]
    %v848 = vld [vmem:[#allocation8 + $0xe40] sm:$0xff]
    %v849 = vld [vmem:[#allocation8 + $0xe48] sm:$0xff]
    %v850 = vld [vmem:[#allocation8 + $0xe50] sm:$0xff]
    %v851 = vld [vmem:[#allocation8 + $0xe58] sm:$0xff]
    %v852 = vld [vmem:[#allocation8 + $0xe60] sm:$0xff]
    %v853 = vld [vmem:[#allocation8 + $0xe68] sm:$0xff]
    %v854 = vld [vmem:[#allocation8 + $0xe70] sm:$0xff]
    %v855 = vld [vmem:[#allocation8 + $0xe78] sm:$0xff]
    %v856 = vld [vmem:[#allocation8 + $0xe80] sm:$0xff]
    %v857 = vld [vmem:[#allocation8 + $0xe88] sm:$0xff]
    %v858 = vld [vmem:[#allocation8 + $0xe90] sm:$0xff]
    %v859 = vld [vmem:[#allocation8 + $0xe98] sm:$0xff]
    %v860 = vld [vmem:[#allocation8 + $0xea0] sm:$0xff]
    %v861 = vld [vmem:[#allocation8 + $0xea8] sm:$0xff]
    %v862 = vld [vmem:[#allocation8 + $0xeb0] sm:$0xff]
    %v863 = vld [vmem:[#allocation8 + $0xeb8] sm:$0xff]
    %v864 = vld [vmem:[#allocation8 + $0xec0] sm:$0xff]
    %v865 = vld [vmem:[#allocation8 + $0xec8] sm:$0xff]
    %v866 = vld [vmem:[#allocation8 + $0xed0] sm:$0xff]
    %v867 = vld [vmem:[#allocation8 + $0xed8] sm:$0xff]
    %v868 = vld [vmem:[#allocation8 + $0xee0] sm:$0xff]
    %v869 = vld [vmem:[#allocation8 + $0xee8] sm:$0xff]
    %v870 = vld [vmem:[#allocation8 + $0xef0] sm:$0xff]
    %v871 = vld [vmem:[#allocation8 + $0xef8] sm:$0xff]
    %v872 = vld [vmem:[#allocation8 + $0xf00] sm:$0xff]
    %v873 = vld [vmem:[#allocation8 + $0xf08] sm:$0xff]
    %v874 = vld [vmem:[#allocation8 + $0xf10] sm:$0xff]
    %v875 = vld [vmem:[#allocation8 + $0xf18] sm:$0xff]
    %v876 = vld [vmem:[#allocation8 + $0xf20] sm:$0xff]
    %v877 = vld [vmem:[#allocation8 + $0xf28] sm:$0xff]
    %v878 = vld [vmem:[#allocation8 + $0xf30] sm:$0xff]
    %v879 = vld [vmem:[#allocation8 + $0xf38] sm:$0xff]
    %v880 = vld [vmem:[#allocation8 + $0xf40] sm:$0xff]
    %v881 = vld [vmem:[#allocation8 + $0xf48] sm:$0xff]
    %v882 = vld [vmem:[#allocation8 + $0xf50] sm:$0xff]
    %v883 = vld [vmem:[#allocation8 + $0xf58] sm:$0xff]
    %v884 = vld [vmem:[#allocation8 + $0xf60] sm:$0xff]
    %v885 = vld [vmem:[#allocation8 + $0xf68] sm:$0xff]
    %v886 = vld [vmem:[#allocation8 + $0xf70] sm:$0xff]
    %v887 = vld [vmem:[#allocation8 + $0xf78] sm:$0xff]
    %v888 = vld [vmem:[#allocation8 + $0xf80] sm:$0xff]
    %v889 = vld [vmem:[#allocation8 + $0xf88] sm:$0xff]
    %v890 = vld [vmem:[#allocation8 + $0xf90] sm:$0xff]
    %v891 = vld [vmem:[#allocation8 + $0xf98] sm:$0xff]
    %v892 = vld [vmem:[#allocation8 + $0xfa0] sm:$0xff]
    %v893 = vld [vmem:[#allocation8 + $0xfa8] sm:$0xff]
    %v894 = vld [vmem:[#allocation8 + $0xfb0] sm:$0xff]
    %v895 = vld [vmem:[#allocation8 + $0xfb8] sm:$0xff]
    %v896 = vld [vmem:[#allocation8 + $0xfc0] sm:$0xff]
    %v897 = vld [vmem:[#allocation8 + $0xfc8] sm:$0xff]
    %v898 = vld [vmem:[#allocation8 + $0xfd0] sm:$0xff]
    %v899 = vld [vmem:[#allocation8 + $0xfd8] sm:$0xff]
    %v900 = vld [vmem:[#allocation8 + $0xfe0] sm:$0xff]
    %v901 = vld [vmem:[#allocation8 + $0xfe8] sm:$0xff]
    %v902 = vld [vmem:[#allocation8 + $0xff0] sm:$0xff]
    %v903 = vld [vmem:[#allocation8 + $0xff8] sm:$0xff]
    %v904 = vld [vmem:[#allocation10] sm:$0xff]
    %v906 = vperm.slane %v904, 0
    %v907 = vperm.slane %v904, 1
    %v908 = vperm.slane %v904, 2
    %v909 = vperm.slane %v904, 3
    %v910 = vperm.slane %v904, 4
    %v911 = vperm.slane %v904, 5
    %v912 = vperm.slane %v904, 6
    %v913 = vperm.slane %v904, 7
    %v1434 = vunpack.c.l.b16 %v392
    %v1435 = vunpack.c.h.b16 %v392
    %v1436 = vunpack.c.l.b16 %v393
    %v1437 = vunpack.c.h.b16 %v393
    %v1438 = vunpack.c.l.b16 %v394
    %v1439 = vunpack.c.h.b16 %v394
    %v1440 = vunpack.c.l.b16 %v395
    %v1441 = vunpack.c.h.b16 %v395
    %v1442 = vunpack.c.l.b16 %v396
    %v1443 = vunpack.c.h.b16 %v396
    %v1444 = vunpack.c.l.b16 %v397
    %v1445 = vunpack.c.h.b16 %v397
    %v1446 = vunpack.c.l.b16 %v398
    %v1447 = vunpack.c.h.b16 %v398
    %v1448 = vunpack.c.l.b16 %v399
    %v1449 = vunpack.c.h.b16 %v399
    %v1450 = vunpack.c.l.b16 %v400
    %v1451 = vunpack.c.h.b16 %v400
    %v1452 = vunpack.c.l.b16 %v401
    %v1453 = vunpack.c.h.b16 %v401
    %v1454 = vunpack.c.l.b16 %v402
    %v1455 = vunpack.c.h.b16 %v402
    %v1456 = vunpack.c.l.b16 %v403
    %v1457 = vunpack.c.h.b16 %v403
    %v1458 = vunpack.c.l.b16 %v404
    %v1459 = vunpack.c.h.b16 %v404
    %v1460 = vunpack.c.l.b16 %v405
    %v1461 = vunpack.c.h.b16 %v405
    %v1462 = vunpack.c.l.b16 %v406
    %v1463 = vunpack.c.h.b16 %v406
    %v1464 = vunpack.c.l.b16 %v407
    %v1465 = vunpack.c.h.b16 %v407
    %v1466 = vunpack.c.l.b16 %v408
    %v1467 = vunpack.c.h.b16 %v408
    %v1468 = vunpack.c.l.b16 %v409
    %v1469 = vunpack.c.h.b16 %v409
    %v1470 = vunpack.c.l.b16 %v410
    %v1471 = vunpack.c.h.b16 %v410
    %v1472 = vunpack.c.l.b16 %v411
    %v1473 = vunpack.c.h.b16 %v411
    %v1474 = vunpack.c.l.b16 %v412
    %v1475 = vunpack.c.h.b16 %v412
    %v1476 = vunpack.c.l.b16 %v413
    %v1477 = vunpack.c.h.b16 %v413
    %v1478 = vunpack.c.l.b16 %v414
    %v1479 = vunpack.c.h.b16 %v414
    %v1480 = vunpack.c.l.b16 %v415
    %v1481 = vunpack.c.h.b16 %v415
    %v1482 = vunpack.c.l.b16 %v416
    %v1483 = vunpack.c.h.b16 %v416
    %v1484 = vunpack.c.l.b16 %v417
    %v1485 = vunpack.c.h.b16 %v417
    %v1486 = vunpack.c.l.b16 %v418
    %v1487 = vunpack.c.h.b16 %v418
    %v1488 = vunpack.c.l.b16 %v419
    %v1489 = vunpack.c.h.b16 %v419
    %v1490 = vunpack.c.l.b16 %v420
    %v1491 = vunpack.c.h.b16 %v420
    %v1492 = vunpack.c.l.b16 %v421
    %v1493 = vunpack.c.h.b16 %v421
    %v1494 = vunpack.c.l.b16 %v422
    %v1495 = vunpack.c.h.b16 %v422
    %v1496 = vunpack.c.l.b16 %v423
    %v1497 = vunpack.c.h.b16 %v423
    %v1498 = vunpack.c.l.b16 %v424
    %v1499 = vunpack.c.h.b16 %v424
    %v1500 = vunpack.c.l.b16 %v425
    %v1501 = vunpack.c.h.b16 %v425
    %v1502 = vunpack.c.l.b16 %v426
    %v1503 = vunpack.c.h.b16 %v426
    %v1504 = vunpack.c.l.b16 %v427
    %v1505 = vunpack.c.h.b16 %v427
    %v1506 = vunpack.c.l.b16 %v428
    %v1507 = vunpack.c.h.b16 %v428
    %v1508 = vunpack.c.l.b16 %v429
    %v1509 = vunpack.c.h.b16 %v429
    %v1510 = vunpack.c.l.b16 %v430
    %v1511 = vunpack.c.h.b16 %v430
    %v1512 = vunpack.c.l.b16 %v431
    %v1513 = vunpack.c.h.b16 %v431
    %v1514 = vunpack.c.l.b16 %v432
    %v1515 = vunpack.c.h.b16 %v432
    %v1516 = vunpack.c.l.b16 %v433
    %v1517 = vunpack.c.h.b16 %v433
    %v1518 = vunpack.c.l.b16 %v434
    %v1519 = vunpack.c.h.b16 %v434
    %v1520 = vunpack.c.l.b16 %v435
    %v1521 = vunpack.c.h.b16 %v435
    %v1522 = vunpack.c.l.b16 %v436
    %v1523 = vunpack.c.h.b16 %v436
    %v1524 = vunpack.c.l.b16 %v437
    %v1525 = vunpack.c.h.b16 %v437
    %v1526 = vunpack.c.l.b16 %v438
    %v1527 = vunpack.c.h.b16 %v438
    %v1528 = vunpack.c.l.b16 %v439
    %v1529 = vunpack.c.h.b16 %v439
    %v1530 = vunpack.c.l.b16 %v440
    %v1531 = vunpack.c.h.b16 %v440
    %v1532 = vunpack.c.l.b16 %v441
    %v1533 = vunpack.c.h.b16 %v441
    %v1534 = vunpack.c.l.b16 %v442
    %v1535 = vunpack.c.h.b16 %v442
    %v1536 = vunpack.c.l.b16 %v443
    %v1537 = vunpack.c.h.b16 %v443
    %v1538 = vunpack.c.l.b16 %v444
    %v1539 = vunpack.c.h.b16 %v444
    %v1540 = vunpack.c.l.b16 %v445
    %v1541 = vunpack.c.h.b16 %v445
    %v1542 = vunpack.c.l.b16 %v446
    %v1543 = vunpack.c.h.b16 %v446
    %v1544 = vunpack.c.l.b16 %v447
    %v1545 = vunpack.c.h.b16 %v447
    %v1546 = vunpack.c.l.b16 %v448
    %v1547 = vunpack.c.h.b16 %v448
    %v1548 = vunpack.c.l.b16 %v449
    %v1549 = vunpack.c.h.b16 %v449
    %v1550 = vunpack.c.l.b16 %v450
    %v1551 = vunpack.c.h.b16 %v450
    %v1552 = vunpack.c.l.b16 %v451
    %v1553 = vunpack.c.h.b16 %v451
    %v1554 = vunpack.c.l.b16 %v452
    %v1555 = vunpack.c.h.b16 %v452
    %v1556 = vunpack.c.l.b16 %v453
    %v1557 = vunpack.c.h.b16 %v453
    %v1558 = vunpack.c.l.b16 %v454
    %v1559 = vunpack.c.h.b16 %v454
    %v1560 = vunpack.c.l.b16 %v455
    %v1561 = vunpack.c.h.b16 %v455
    %v1562 = vunpack.c.l.b16 %v456
    %v1563 = vunpack.c.h.b16 %v456
    %v1564 = vunpack.c.l.b16 %v457
    %v1565 = vunpack.c.h.b16 %v457
    %v1566 = vunpack.c.l.b16 %v458
    %v1567 = vunpack.c.h.b16 %v458
    %v1568 = vunpack.c.l.b16 %v459
    %v1569 = vunpack.c.h.b16 %v459
    %v1570 = vunpack.c.l.b16 %v460
    %v1571 = vunpack.c.h.b16 %v460
    %v1572 = vunpack.c.l.b16 %v461
    %v1573 = vunpack.c.h.b16 %v461
    %v1574 = vunpack.c.l.b16 %v462
    %v1575 = vunpack.c.h.b16 %v462
    %v1576 = vunpack.c.l.b16 %v463
    %v1577 = vunpack.c.h.b16 %v463
    %v1578 = vunpack.c.l.b16 %v464
    %v1579 = vunpack.c.h.b16 %v464
    %v1580 = vunpack.c.l.b16 %v465
    %v1581 = vunpack.c.h.b16 %v465
    %v1582 = vunpack.c.l.b16 %v466
    %v1583 = vunpack.c.h.b16 %v466
    %v1584 = vunpack.c.l.b16 %v467
    %v1585 = vunpack.c.h.b16 %v467
    %v1586 = vunpack.c.l.b16 %v468
    %v1587 = vunpack.c.h.b16 %v468
    %v1588 = vunpack.c.l.b16 %v469
    %v1589 = vunpack.c.h.b16 %v469
    %v1590 = vunpack.c.l.b16 %v470
    %v1591 = vunpack.c.h.b16 %v470
    %v1592 = vunpack.c.l.b16 %v471
    %v1593 = vunpack.c.h.b16 %v471
    %v1594 = vunpack.c.l.b16 %v472
    %v1595 = vunpack.c.h.b16 %v472
    %v1596 = vunpack.c.l.b16 %v473
    %v1597 = vunpack.c.h.b16 %v473
    %v1598 = vunpack.c.l.b16 %v474
    %v1599 = vunpack.c.h.b16 %v474
    %v1600 = vunpack.c.l.b16 %v475
    %v1601 = vunpack.c.h.b16 %v475
    %v1602 = vunpack.c.l.b16 %v476
    %v1603 = vunpack.c.h.b16 %v476
    %v1604 = vunpack.c.l.b16 %v477
    %v1605 = vunpack.c.h.b16 %v477
    %v1606 = vunpack.c.l.b16 %v478
    %v1607 = vunpack.c.h.b16 %v478
    %v1608 = vunpack.c.l.b16 %v479
    %v1609 = vunpack.c.h.b16 %v479
    %v1610 = vunpack.c.l.b16 %v480
    %v1611 = vunpack.c.h.b16 %v480
    %v1612 = vunpack.c.l.b16 %v481
    %v1613 = vunpack.c.h.b16 %v481
    %v1614 = vunpack.c.l.b16 %v482
    %v1615 = vunpack.c.h.b16 %v482
    %v1616 = vunpack.c.l.b16 %v483
    %v1617 = vunpack.c.h.b16 %v483
    %v1618 = vunpack.c.l.b16 %v484
    %v1619 = vunpack.c.h.b16 %v484
    %v1620 = vunpack.c.l.b16 %v485
    %v1621 = vunpack.c.h.b16 %v485
    %v1622 = vunpack.c.l.b16 %v486
    %v1623 = vunpack.c.h.b16 %v486
    %v1624 = vunpack.c.l.b16 %v487
    %v1625 = vunpack.c.h.b16 %v487
    %v1626 = vunpack.c.l.b16 %v488
    %v1627 = vunpack.c.h.b16 %v488
    %v1628 = vunpack.c.l.b16 %v489
    %v1629 = vunpack.c.h.b16 %v489
    %v1630 = vunpack.c.l.b16 %v490
    %v1631 = vunpack.c.h.b16 %v490
    %v1632 = vunpack.c.l.b16 %v491
    %v1633 = vunpack.c.h.b16 %v491
    %v1634 = vunpack.c.l.b16 %v492
    %v1635 = vunpack.c.h.b16 %v492
    %v1636 = vunpack.c.l.b16 %v493
    %v1637 = vunpack.c.h.b16 %v493
    %v1638 = vunpack.c.l.b16 %v494
    %v1639 = vunpack.c.h.b16 %v494
    %v1640 = vunpack.c.l.b16 %v495
    %v1641 = vunpack.c.h.b16 %v495
    %v1642 = vunpack.c.l.b16 %v496
    %v1643 = vunpack.c.h.b16 %v496
    %v1644 = vunpack.c.l.b16 %v497
    %v1645 = vunpack.c.h.b16 %v497
    %v1646 = vunpack.c.l.b16 %v498
    %v1647 = vunpack.c.h.b16 %v498
    %v1648 = vunpack.c.l.b16 %v499
    %v1649 = vunpack.c.h.b16 %v499
    %v1650 = vunpack.c.l.b16 %v500
    %v1651 = vunpack.c.h.b16 %v500
    %v1652 = vunpack.c.l.b16 %v501
    %v1653 = vunpack.c.h.b16 %v501
    %v1654 = vunpack.c.l.b16 %v502
    %v1655 = vunpack.c.h.b16 %v502
    %v1656 = vunpack.c.l.b16 %v503
    %v1657 = vunpack.c.h.b16 %v503
    %v1658 = vunpack.c.l.b16 %v504
    %v1659 = vunpack.c.h.b16 %v504
    %v1660 = vunpack.c.l.b16 %v505
    %v1661 = vunpack.c.h.b16 %v505
    %v1662 = vunpack.c.l.b16 %v506
    %v1663 = vunpack.c.h.b16 %v506
    %v1664 = vunpack.c.l.b16 %v507
    %v1665 = vunpack.c.h.b16 %v507
    %v1666 = vunpack.c.l.b16 %v508
    %v1667 = vunpack.c.h.b16 %v508
    %v1668 = vunpack.c.l.b16 %v509
    %v1669 = vunpack.c.h.b16 %v509
    %v1670 = vunpack.c.l.b16 %v510
    %v1671 = vunpack.c.h.b16 %v510
    %v1672 = vunpack.c.l.b16 %v511
    %v1673 = vunpack.c.h.b16 %v511
    %v1674 = vunpack.c.l.b16 %v512
    %v1675 = vunpack.c.h.b16 %v512
    %v1676 = vunpack.c.l.b16 %v513
    %v1677 = vunpack.c.h.b16 %v513
    %v1678 = vunpack.c.l.b16 %v514
    %v1679 = vunpack.c.h.b16 %v514
    %v1680 = vunpack.c.l.b16 %v515
    %v1681 = vunpack.c.h.b16 %v515
    %v1682 = vunpack.c.l.b16 %v516
    %v1683 = vunpack.c.h.b16 %v516
    %v1684 = vunpack.c.l.b16 %v517
    %v1685 = vunpack.c.h.b16 %v517
    %v1686 = vunpack.c.l.b16 %v518
    %v1687 = vunpack.c.h.b16 %v518
    %v1688 = vunpack.c.l.b16 %v519
    %v1689 = vunpack.c.h.b16 %v519
    %v1690 = vunpack.c.l.b16 %v520
    %v1691 = vunpack.c.h.b16 %v520
    %v1692 = vunpack.c.l.b16 %v521
    %v1693 = vunpack.c.h.b16 %v521
    %v1694 = vunpack.c.l.b16 %v522
    %v1695 = vunpack.c.h.b16 %v522
    %v1696 = vunpack.c.l.b16 %v523
    %v1697 = vunpack.c.h.b16 %v523
    %v1698 = vunpack.c.l.b16 %v524
    %v1699 = vunpack.c.h.b16 %v524
    %v1700 = vunpack.c.l.b16 %v525
    %v1701 = vunpack.c.h.b16 %v525
    %v1702 = vunpack.c.l.b16 %v526
    %v1703 = vunpack.c.h.b16 %v526
    %v1704 = vunpack.c.l.b16 %v527
    %v1705 = vunpack.c.h.b16 %v527
    %v1706 = vunpack.c.l.b16 %v528
    %v1707 = vunpack.c.h.b16 %v528
    %v1708 = vunpack.c.l.b16 %v529
    %v1709 = vunpack.c.h.b16 %v529
    %v1710 = vunpack.c.l.b16 %v530
    %v1711 = vunpack.c.h.b16 %v530
    %v1712 = vunpack.c.l.b16 %v531
    %v1713 = vunpack.c.h.b16 %v531
    %v1714 = vunpack.c.l.b16 %v532
    %v1715 = vunpack.c.h.b16 %v532
    %v1716 = vunpack.c.l.b16 %v533
    %v1717 = vunpack.c.h.b16 %v533
    %v1718 = vunpack.c.l.b16 %v534
    %v1719 = vunpack.c.h.b16 %v534
    %v1720 = vunpack.c.l.b16 %v535
    %v1721 = vunpack.c.h.b16 %v535
    %v1722 = vunpack.c.l.b16 %v536
    %v1723 = vunpack.c.h.b16 %v536
    %v1724 = vunpack.c.l.b16 %v537
    %v1725 = vunpack.c.h.b16 %v537
    %v1726 = vunpack.c.l.b16 %v538
    %v1727 = vunpack.c.h.b16 %v538
    %v1728 = vunpack.c.l.b16 %v539
    %v1729 = vunpack.c.h.b16 %v539
    %v1730 = vunpack.c.l.b16 %v540
    %v1731 = vunpack.c.h.b16 %v540
    %v1732 = vunpack.c.l.b16 %v541
    %v1733 = vunpack.c.h.b16 %v541
    %v1734 = vunpack.c.l.b16 %v542
    %v1735 = vunpack.c.h.b16 %v542
    %v1736 = vunpack.c.l.b16 %v543
    %v1737 = vunpack.c.h.b16 %v543
    %v1738 = vunpack.c.l.b16 %v544
    %v1739 = vunpack.c.h.b16 %v544
    %v1740 = vunpack.c.l.b16 %v545
    %v1741 = vunpack.c.h.b16 %v545
    %v1742 = vunpack.c.l.b16 %v546
    %v1743 = vunpack.c.h.b16 %v546
    %v1744 = vunpack.c.l.b16 %v547
    %v1745 = vunpack.c.h.b16 %v547
    %v1746 = vunpack.c.l.b16 %v548
    %v1747 = vunpack.c.h.b16 %v548
    %v1748 = vunpack.c.l.b16 %v549
    %v1749 = vunpack.c.h.b16 %v549
    %v1750 = vunpack.c.l.b16 %v550
    %v1751 = vunpack.c.h.b16 %v550
    %v1752 = vunpack.c.l.b16 %v551
    %v1753 = vunpack.c.h.b16 %v551
    %v1754 = vunpack.c.l.b16 %v552
    %v1755 = vunpack.c.h.b16 %v552
    %v1756 = vunpack.c.l.b16 %v553
    %v1757 = vunpack.c.h.b16 %v553
    %v1758 = vunpack.c.l.b16 %v554
    %v1759 = vunpack.c.h.b16 %v554
    %v1760 = vunpack.c.l.b16 %v555
    %v1761 = vunpack.c.h.b16 %v555
    %v1762 = vunpack.c.l.b16 %v556
    %v1763 = vunpack.c.h.b16 %v556
    %v1764 = vunpack.c.l.b16 %v557
    %v1765 = vunpack.c.h.b16 %v557
    %v1766 = vunpack.c.l.b16 %v558
    %v1767 = vunpack.c.h.b16 %v558
    %v1768 = vunpack.c.l.b16 %v559
    %v1769 = vunpack.c.h.b16 %v559
    %v1770 = vunpack.c.l.b16 %v560
    %v1771 = vunpack.c.h.b16 %v560
    %v1772 = vunpack.c.l.b16 %v561
    %v1773 = vunpack.c.h.b16 %v561
    %v1774 = vunpack.c.l.b16 %v562
    %v1775 = vunpack.c.h.b16 %v562
    %v1776 = vunpack.c.l.b16 %v563
    %v1777 = vunpack.c.h.b16 %v563
    %v1778 = vunpack.c.l.b16 %v564
    %v1779 = vunpack.c.h.b16 %v564
    %v1780 = vunpack.c.l.b16 %v565
    %v1781 = vunpack.c.h.b16 %v565
    %v1782 = vunpack.c.l.b16 %v566
    %v1783 = vunpack.c.h.b16 %v566
    %v1784 = vunpack.c.l.b16 %v567
    %v1785 = vunpack.c.h.b16 %v567
    %v1786 = vunpack.c.l.b16 %v568
    %v1787 = vunpack.c.h.b16 %v568
    %v1788 = vunpack.c.l.b16 %v569
    %v1789 = vunpack.c.h.b16 %v569
    %v1790 = vunpack.c.l.b16 %v570
    %v1791 = vunpack.c.h.b16 %v570
    %v1792 = vunpack.c.l.b16 %v571
    %v1793 = vunpack.c.h.b16 %v571
    %v1794 = vunpack.c.l.b16 %v572
    %v1795 = vunpack.c.h.b16 %v572
    %v1796 = vunpack.c.l.b16 %v573
    %v1797 = vunpack.c.h.b16 %v573
    %v1798 = vunpack.c.l.b16 %v574
    %v1799 = vunpack.c.h.b16 %v574
    %v1800 = vunpack.c.l.b16 %v575
    %v1801 = vunpack.c.h.b16 %v575
    %v1802 = vunpack.c.l.b16 %v576
    %v1803 = vunpack.c.h.b16 %v576
    %v1804 = vunpack.c.l.b16 %v577
    %v1805 = vunpack.c.h.b16 %v577
    %v1806 = vunpack.c.l.b16 %v578
    %v1807 = vunpack.c.h.b16 %v578
    %v1808 = vunpack.c.l.b16 %v579
    %v1809 = vunpack.c.h.b16 %v579
    %v1810 = vunpack.c.l.b16 %v580
    %v1811 = vunpack.c.h.b16 %v580
    %v1812 = vunpack.c.l.b16 %v581
    %v1813 = vunpack.c.h.b16 %v581
    %v1814 = vunpack.c.l.b16 %v582
    %v1815 = vunpack.c.h.b16 %v582
    %v1816 = vunpack.c.l.b16 %v583
    %v1817 = vunpack.c.h.b16 %v583
    %v1818 = vunpack.c.l.b16 %v584
    %v1819 = vunpack.c.h.b16 %v584
    %v1820 = vunpack.c.l.b16 %v585
    %v1821 = vunpack.c.h.b16 %v585
    %v1822 = vunpack.c.l.b16 %v586
    %v1823 = vunpack.c.h.b16 %v586
    %v1824 = vunpack.c.l.b16 %v587
    %v1825 = vunpack.c.h.b16 %v587
    %v1826 = vunpack.c.l.b16 %v588
    %v1827 = vunpack.c.h.b16 %v588
    %v1828 = vunpack.c.l.b16 %v589
    %v1829 = vunpack.c.h.b16 %v589
    %v1830 = vunpack.c.l.b16 %v590
    %v1831 = vunpack.c.h.b16 %v590
    %v1832 = vunpack.c.l.b16 %v591
    %v1833 = vunpack.c.h.b16 %v591
    %v1834 = vunpack.c.l.b16 %v592
    %v1835 = vunpack.c.h.b16 %v592
    %v1836 = vunpack.c.l.b16 %v593
    %v1837 = vunpack.c.h.b16 %v593
    %v1838 = vunpack.c.l.b16 %v594
    %v1839 = vunpack.c.h.b16 %v594
    %v1840 = vunpack.c.l.b16 %v595
    %v1841 = vunpack.c.h.b16 %v595
    %v1842 = vunpack.c.l.b16 %v596
    %v1843 = vunpack.c.h.b16 %v596
    %v1844 = vunpack.c.l.b16 %v597
    %v1845 = vunpack.c.h.b16 %v597
    %v1846 = vunpack.c.l.b16 %v598
    %v1847 = vunpack.c.h.b16 %v598
    %v1848 = vunpack.c.l.b16 %v599
    %v1849 = vunpack.c.h.b16 %v599
    %v1850 = vunpack.c.l.b16 %v600
    %v1851 = vunpack.c.h.b16 %v600
    %v1852 = vunpack.c.l.b16 %v601
    %v1853 = vunpack.c.h.b16 %v601
    %v1854 = vunpack.c.l.b16 %v602
    %v1855 = vunpack.c.h.b16 %v602
    %v1856 = vunpack.c.l.b16 %v603
    %v1857 = vunpack.c.h.b16 %v603
    %v1858 = vunpack.c.l.b16 %v604
    %v1859 = vunpack.c.h.b16 %v604
    %v1860 = vunpack.c.l.b16 %v605
    %v1861 = vunpack.c.h.b16 %v605
    %v1862 = vunpack.c.l.b16 %v606
    %v1863 = vunpack.c.h.b16 %v606
    %v1864 = vunpack.c.l.b16 %v607
    %v1865 = vunpack.c.h.b16 %v607
    %v1866 = vunpack.c.l.b16 %v608
    %v1867 = vunpack.c.h.b16 %v608
    %v1868 = vunpack.c.l.b16 %v609
    %v1869 = vunpack.c.h.b16 %v609
    %v1870 = vunpack.c.l.b16 %v610
    %v1871 = vunpack.c.h.b16 %v610
    %v1872 = vunpack.c.l.b16 %v611
    %v1873 = vunpack.c.h.b16 %v611
    %v1874 = vunpack.c.l.b16 %v612
    %v1875 = vunpack.c.h.b16 %v612
    %v1876 = vunpack.c.l.b16 %v613
    %v1877 = vunpack.c.h.b16 %v613
    %v1878 = vunpack.c.l.b16 %v614
    %v1879 = vunpack.c.h.b16 %v614
    %v1880 = vunpack.c.l.b16 %v615
    %v1881 = vunpack.c.h.b16 %v615
    %v1882 = vunpack.c.l.b16 %v616
    %v1883 = vunpack.c.h.b16 %v616
    %v1884 = vunpack.c.l.b16 %v617
    %v1885 = vunpack.c.h.b16 %v617
    %v1886 = vunpack.c.l.b16 %v618
    %v1887 = vunpack.c.h.b16 %v618
    %v1888 = vunpack.c.l.b16 %v619
    %v1889 = vunpack.c.h.b16 %v619
    %v1890 = vunpack.c.l.b16 %v620
    %v1891 = vunpack.c.h.b16 %v620
    %v1892 = vunpack.c.l.b16 %v621
    %v1893 = vunpack.c.h.b16 %v621
    %v1894 = vunpack.c.l.b16 %v622
    %v1895 = vunpack.c.h.b16 %v622
    %v1896 = vunpack.c.l.b16 %v623
    %v1897 = vunpack.c.h.b16 %v623
    %v1898 = vunpack.c.l.b16 %v624
    %v1899 = vunpack.c.h.b16 %v624
    %v1900 = vunpack.c.l.b16 %v625
    %v1901 = vunpack.c.h.b16 %v625
    %v1902 = vunpack.c.l.b16 %v626
    %v1903 = vunpack.c.h.b16 %v626
    %v1904 = vunpack.c.l.b16 %v627
    %v1905 = vunpack.c.h.b16 %v627
    %v1906 = vunpack.c.l.b16 %v628
    %v1907 = vunpack.c.h.b16 %v628
    %v1908 = vunpack.c.l.b16 %v629
    %v1909 = vunpack.c.h.b16 %v629
    %v1910 = vunpack.c.l.b16 %v630
    %v1911 = vunpack.c.h.b16 %v630
    %v1912 = vunpack.c.l.b16 %v631
    %v1913 = vunpack.c.h.b16 %v631
    %v1914 = vunpack.c.l.b16 %v632
    %v1915 = vunpack.c.h.b16 %v632
    %v1916 = vunpack.c.l.b16 %v633
    %v1917 = vunpack.c.h.b16 %v633
    %v1918 = vunpack.c.l.b16 %v634
    %v1919 = vunpack.c.h.b16 %v634
    %v1920 = vunpack.c.l.b16 %v635
    %v1921 = vunpack.c.h.b16 %v635
    %v1922 = vunpack.c.l.b16 %v636
    %v1923 = vunpack.c.h.b16 %v636
    %v1924 = vunpack.c.l.b16 %v637
    %v1925 = vunpack.c.h.b16 %v637
    %v1926 = vunpack.c.l.b16 %v638
    %v1927 = vunpack.c.h.b16 %v638
    %v1928 = vunpack.c.l.b16 %v639
    %v1929 = vunpack.c.h.b16 %v639
    %v1930 = vunpack.c.l.b16 %v640
    %v1931 = vunpack.c.h.b16 %v640
    %v1932 = vunpack.c.l.b16 %v641
    %v1933 = vunpack.c.h.b16 %v641
    %v1934 = vunpack.c.l.b16 %v642
    %v1935 = vunpack.c.h.b16 %v642
    %v1936 = vunpack.c.l.b16 %v643
    %v1937 = vunpack.c.h.b16 %v643
    %v1938 = vunpack.c.l.b16 %v644
    %v1939 = vunpack.c.h.b16 %v644
    %v1940 = vunpack.c.l.b16 %v645
    %v1941 = vunpack.c.h.b16 %v645
    %v1942 = vunpack.c.l.b16 %v646
    %v1943 = vunpack.c.h.b16 %v646
    %v1944 = vunpack.c.l.b16 %v647
    %v1945 = vunpack.c.h.b16 %v647
    %v1946 = vunpack.c.l.b16 %v648
    %v1947 = vunpack.c.h.b16 %v648
    %v1948 = vunpack.c.l.b16 %v649
    %v1949 = vunpack.c.h.b16 %v649
    %v1950 = vunpack.c.l.b16 %v650
    %v1951 = vunpack.c.h.b16 %v650
    %v1952 = vunpack.c.l.b16 %v651
    %v1953 = vunpack.c.h.b16 %v651
    %v1954 = vunpack.c.l.b16 %v652
    %v1955 = vunpack.c.h.b16 %v652
    %v1956 = vunpack.c.l.b16 %v653
    %v1957 = vunpack.c.h.b16 %v653
    %v1958 = vunpack.c.l.b16 %v654
    %v1959 = vunpack.c.h.b16 %v654
    %v1960 = vunpack.c.l.b16 %v655
    %v1961 = vunpack.c.h.b16 %v655
    %v1962 = vunpack.c.l.b16 %v656
    %v1963 = vunpack.c.h.b16 %v656
    %v1964 = vunpack.c.l.b16 %v657
    %v1965 = vunpack.c.h.b16 %v657
    %v1966 = vunpack.c.l.b16 %v658
    %v1967 = vunpack.c.h.b16 %v658
    %v1968 = vunpack.c.l.b16 %v659
    %v1969 = vunpack.c.h.b16 %v659
    %v1970 = vunpack.c.l.b16 %v660
    %v1971 = vunpack.c.h.b16 %v660
    %v1972 = vunpack.c.l.b16 %v661
    %v1973 = vunpack.c.h.b16 %v661
    %v1974 = vunpack.c.l.b16 %v662
    %v1975 = vunpack.c.h.b16 %v662
    %v1976 = vunpack.c.l.b16 %v663
    %v1977 = vunpack.c.h.b16 %v663
    %v1978 = vunpack.c.l.b16 %v664
    %v1979 = vunpack.c.h.b16 %v664
    %v1980 = vunpack.c.l.b16 %v665
    %v1981 = vunpack.c.h.b16 %v665
    %v1982 = vunpack.c.l.b16 %v666
    %v1983 = vunpack.c.h.b16 %v666
    %v1984 = vunpack.c.l.b16 %v667
    %v1985 = vunpack.c.h.b16 %v667
    %v1986 = vunpack.c.l.b16 %v668
    %v1987 = vunpack.c.h.b16 %v668
    %v1988 = vunpack.c.l.b16 %v669
    %v1989 = vunpack.c.h.b16 %v669
    %v1990 = vunpack.c.l.b16 %v670
    %v1991 = vunpack.c.h.b16 %v670
    %v1992 = vunpack.c.l.b16 %v671
    %v1993 = vunpack.c.h.b16 %v671
    %v1994 = vunpack.c.l.b16 %v672
    %v1995 = vunpack.c.h.b16 %v672
    %v1996 = vunpack.c.l.b16 %v673
    %v1997 = vunpack.c.h.b16 %v673
    %v1998 = vunpack.c.l.b16 %v674
    %v1999 = vunpack.c.h.b16 %v674
    %v2000 = vunpack.c.l.b16 %v675
    %v2001 = vunpack.c.h.b16 %v675
    %v2002 = vunpack.c.l.b16 %v676
    %v2003 = vunpack.c.h.b16 %v676
    %v2004 = vunpack.c.l.b16 %v677
    %v2005 = vunpack.c.h.b16 %v677
    %v2006 = vunpack.c.l.b16 %v678
    %v2007 = vunpack.c.h.b16 %v678
    %v2008 = vunpack.c.l.b16 %v679
    %v2009 = vunpack.c.h.b16 %v679
    %v2010 = vunpack.c.l.b16 %v680
    %v2011 = vunpack.c.h.b16 %v680
    %v2012 = vunpack.c.l.b16 %v681
    %v2013 = vunpack.c.h.b16 %v681
    %v2014 = vunpack.c.l.b16 %v682
    %v2015 = vunpack.c.h.b16 %v682
    %v2016 = vunpack.c.l.b16 %v683
    %v2017 = vunpack.c.h.b16 %v683
    %v2018 = vunpack.c.l.b16 %v684
    %v2019 = vunpack.c.h.b16 %v684
    %v2020 = vunpack.c.l.b16 %v685
    %v2021 = vunpack.c.h.b16 %v685
    %v2022 = vunpack.c.l.b16 %v686
    %v2023 = vunpack.c.h.b16 %v686
    %v2024 = vunpack.c.l.b16 %v687
    %v2025 = vunpack.c.h.b16 %v687
    %v2026 = vunpack.c.l.b16 %v688
    %v2027 = vunpack.c.h.b16 %v688
    %v2028 = vunpack.c.l.b16 %v689
    %v2029 = vunpack.c.h.b16 %v689
    %v2030 = vunpack.c.l.b16 %v690
    %v2031 = vunpack.c.h.b16 %v690
    %v2032 = vunpack.c.l.b16 %v691
    %v2033 = vunpack.c.h.b16 %v691
    %v2034 = vunpack.c.l.b16 %v692
    %v2035 = vunpack.c.h.b16 %v692
    %v2036 = vunpack.c.l.b16 %v693
    %v2037 = vunpack.c.h.b16 %v693
    %v2038 = vunpack.c.l.b16 %v694
    %v2039 = vunpack.c.h.b16 %v694
    %v2040 = vunpack.c.l.b16 %v695
    %v2041 = vunpack.c.h.b16 %v695
    %v2042 = vunpack.c.l.b16 %v696
    %v2043 = vunpack.c.h.b16 %v696
    %v2044 = vunpack.c.l.b16 %v697
    %v2045 = vunpack.c.h.b16 %v697
    %v2046 = vunpack.c.l.b16 %v698
    %v2047 = vunpack.c.h.b16 %v698
    %v2048 = vunpack.c.l.b16 %v699
    %v2049 = vunpack.c.h.b16 %v699
    %v2050 = vunpack.c.l.b16 %v700
    %v2051 = vunpack.c.h.b16 %v700
    %v2052 = vunpack.c.l.b16 %v701
    %v2053 = vunpack.c.h.b16 %v701
    %v2054 = vunpack.c.l.b16 %v702
    %v2055 = vunpack.c.h.b16 %v702
    %v2056 = vunpack.c.l.b16 %v703
    %v2057 = vunpack.c.h.b16 %v703
    %v2058 = vunpack.c.l.b16 %v704
    %v2059 = vunpack.c.h.b16 %v704
    %v2060 = vunpack.c.l.b16 %v705
    %v2061 = vunpack.c.h.b16 %v705
    %v2062 = vunpack.c.l.b16 %v706
    %v2063 = vunpack.c.h.b16 %v706
    %v2064 = vunpack.c.l.b16 %v707
    %v2065 = vunpack.c.h.b16 %v707
    %v2066 = vunpack.c.l.b16 %v708
    %v2067 = vunpack.c.h.b16 %v708
    %v2068 = vunpack.c.l.b16 %v709
    %v2069 = vunpack.c.h.b16 %v709
    %v2070 = vunpack.c.l.b16 %v710
    %v2071 = vunpack.c.h.b16 %v710
    %v2072 = vunpack.c.l.b16 %v711
    %v2073 = vunpack.c.h.b16 %v711
    %v2074 = vunpack.c.l.b16 %v712
    %v2075 = vunpack.c.h.b16 %v712
    %v2076 = vunpack.c.l.b16 %v713
    %v2077 = vunpack.c.h.b16 %v713
    %v2078 = vunpack.c.l.b16 %v714
    %v2079 = vunpack.c.h.b16 %v714
    %v2080 = vunpack.c.l.b16 %v715
    %v2081 = vunpack.c.h.b16 %v715
    %v2082 = vunpack.c.l.b16 %v716
    %v2083 = vunpack.c.h.b16 %v716
    %v2084 = vunpack.c.l.b16 %v717
    %v2085 = vunpack.c.h.b16 %v717
    %v2086 = vunpack.c.l.b16 %v718
    %v2087 = vunpack.c.h.b16 %v718
    %v2088 = vunpack.c.l.b16 %v719
    %v2089 = vunpack.c.h.b16 %v719
    %v2090 = vunpack.c.l.b16 %v720
    %v2091 = vunpack.c.h.b16 %v720
    %v2092 = vunpack.c.l.b16 %v721
    %v2093 = vunpack.c.h.b16 %v721
    %v2094 = vunpack.c.l.b16 %v722
    %v2095 = vunpack.c.h.b16 %v722
    %v2096 = vunpack.c.l.b16 %v723
    %v2097 = vunpack.c.h.b16 %v723
    %v2098 = vunpack.c.l.b16 %v724
    %v2099 = vunpack.c.h.b16 %v724
    %v2100 = vunpack.c.l.b16 %v725
    %v2101 = vunpack.c.h.b16 %v725
    %v2102 = vunpack.c.l.b16 %v726
    %v2103 = vunpack.c.h.b16 %v726
    %v2104 = vunpack.c.l.b16 %v727
    %v2105 = vunpack.c.h.b16 %v727
    %v2106 = vunpack.c.l.b16 %v728
    %v2107 = vunpack.c.h.b16 %v728
    %v2108 = vunpack.c.l.b16 %v729
    %v2109 = vunpack.c.h.b16 %v729
    %v2110 = vunpack.c.l.b16 %v730
    %v2111 = vunpack.c.h.b16 %v730
    %v2112 = vunpack.c.l.b16 %v731
    %v2113 = vunpack.c.h.b16 %v731
    %v2114 = vunpack.c.l.b16 %v732
    %v2115 = vunpack.c.h.b16 %v732
    %v2116 = vunpack.c.l.b16 %v733
    %v2117 = vunpack.c.h.b16 %v733
    %v2118 = vunpack.c.l.b16 %v734
    %v2119 = vunpack.c.h.b16 %v734
    %v2120 = vunpack.c.l.b16 %v735
    %v2121 = vunpack.c.h.b16 %v735
    %v2122 = vunpack.c.l.b16 %v736
    %v2123 = vunpack.c.h.b16 %v736
    %v2124 = vunpack.c.l.b16 %v737
    %v2125 = vunpack.c.h.b16 %v737
    %v2126 = vunpack.c.l.b16 %v738
    %v2127 = vunpack.c.h.b16 %v738
    %v2128 = vunpack.c.l.b16 %v739
    %v2129 = vunpack.c.h.b16 %v739
    %v2130 = vunpack.c.l.b16 %v740
    %v2131 = vunpack.c.h.b16 %v740
    %v2132 = vunpack.c.l.b16 %v741
    %v2133 = vunpack.c.h.b16 %v741
    %v2134 = vunpack.c.l.b16 %v742
    %v2135 = vunpack.c.h.b16 %v742
    %v2136 = vunpack.c.l.b16 %v743
    %v2137 = vunpack.c.h.b16 %v743
    %v2138 = vunpack.c.l.b16 %v744
    %v2139 = vunpack.c.h.b16 %v744
    %v2140 = vunpack.c.l.b16 %v745
    %v2141 = vunpack.c.h.b16 %v745
    %v2142 = vunpack.c.l.b16 %v746
    %v2143 = vunpack.c.h.b16 %v746
    %v2144 = vunpack.c.l.b16 %v747
    %v2145 = vunpack.c.h.b16 %v747
    %v2146 = vunpack.c.l.b16 %v748
    %v2147 = vunpack.c.h.b16 %v748
    %v2148 = vunpack.c.l.b16 %v749
    %v2149 = vunpack.c.h.b16 %v749
    %v2150 = vunpack.c.l.b16 %v750
    %v2151 = vunpack.c.h.b16 %v750
    %v2152 = vunpack.c.l.b16 %v751
    %v2153 = vunpack.c.h.b16 %v751
    %v2154 = vunpack.c.l.b16 %v752
    %v2155 = vunpack.c.h.b16 %v752
    %v2156 = vunpack.c.l.b16 %v753
    %v2157 = vunpack.c.h.b16 %v753
    %v2158 = vunpack.c.l.b16 %v754
    %v2159 = vunpack.c.h.b16 %v754
    %v2160 = vunpack.c.l.b16 %v755
    %v2161 = vunpack.c.h.b16 %v755
    %v2162 = vunpack.c.l.b16 %v756
    %v2163 = vunpack.c.h.b16 %v756
    %v2164 = vunpack.c.l.b16 %v757
    %v2165 = vunpack.c.h.b16 %v757
    %v2166 = vunpack.c.l.b16 %v758
    %v2167 = vunpack.c.h.b16 %v758
    %v2168 = vunpack.c.l.b16 %v759
    %v2169 = vunpack.c.h.b16 %v759
    %v2170 = vunpack.c.l.b16 %v760
    %v2171 = vunpack.c.h.b16 %v760
    %v2172 = vunpack.c.l.b16 %v761
    %v2173 = vunpack.c.h.b16 %v761
    %v2174 = vunpack.c.l.b16 %v762
    %v2175 = vunpack.c.h.b16 %v762
    %v2176 = vunpack.c.l.b16 %v763
    %v2177 = vunpack.c.h.b16 %v763
    %v2178 = vunpack.c.l.b16 %v764
    %v2179 = vunpack.c.h.b16 %v764
    %v2180 = vunpack.c.l.b16 %v765
    %v2181 = vunpack.c.h.b16 %v765
    %v2182 = vunpack.c.l.b16 %v766
    %v2183 = vunpack.c.h.b16 %v766
    %v2184 = vunpack.c.l.b16 %v767
    %v2185 = vunpack.c.h.b16 %v767
    %v2186 = vunpack.c.l.b16 %v768
    %v2187 = vunpack.c.h.b16 %v768
    %v2188 = vunpack.c.l.b16 %v769
    %v2189 = vunpack.c.h.b16 %v769
    %v2190 = vunpack.c.l.b16 %v770
    %v2191 = vunpack.c.h.b16 %v770
    %v2192 = vunpack.c.l.b16 %v771
    %v2193 = vunpack.c.h.b16 %v771
    %v2194 = vunpack.c.l.b16 %v772
    %v2195 = vunpack.c.h.b16 %v772
    %v2196 = vunpack.c.l.b16 %v773
    %v2197 = vunpack.c.h.b16 %v773
    %v2198 = vunpack.c.l.b16 %v774
    %v2199 = vunpack.c.h.b16 %v774
    %v2200 = vunpack.c.l.b16 %v775
    %v2201 = vunpack.c.h.b16 %v775
    %v2202 = vunpack.c.l.b16 %v776
    %v2203 = vunpack.c.h.b16 %v776
    %v2204 = vunpack.c.l.b16 %v777
    %v2205 = vunpack.c.h.b16 %v777
    %v2206 = vunpack.c.l.b16 %v778
    %v2207 = vunpack.c.h.b16 %v778
    %v2208 = vunpack.c.l.b16 %v779
    %v2209 = vunpack.c.h.b16 %v779
    %v2210 = vunpack.c.l.b16 %v780
    %v2211 = vunpack.c.h.b16 %v780
    %v2212 = vunpack.c.l.b16 %v781
    %v2213 = vunpack.c.h.b16 %v781
    %v2214 = vunpack.c.l.b16 %v782
    %v2215 = vunpack.c.h.b16 %v782
    %v2216 = vunpack.c.l.b16 %v783
    %v2217 = vunpack.c.h.b16 %v783
    %v2218 = vunpack.c.l.b16 %v784
    %v2219 = vunpack.c.h.b16 %v784
    %v2220 = vunpack.c.l.b16 %v785
    %v2221 = vunpack.c.h.b16 %v785
    %v2222 = vunpack.c.l.b16 %v786
    %v2223 = vunpack.c.h.b16 %v786
    %v2224 = vunpack.c.l.b16 %v787
    %v2225 = vunpack.c.h.b16 %v787
    %v2226 = vunpack.c.l.b16 %v788
    %v2227 = vunpack.c.h.b16 %v788
    %v2228 = vunpack.c.l.b16 %v789
    %v2229 = vunpack.c.h.b16 %v789
    %v2230 = vunpack.c.l.b16 %v790
    %v2231 = vunpack.c.h.b16 %v790
    %v2232 = vunpack.c.l.b16 %v791
    %v2233 = vunpack.c.h.b16 %v791
    %v2234 = vunpack.c.l.b16 %v792
    %v2235 = vunpack.c.h.b16 %v792
    %v2236 = vunpack.c.l.b16 %v793
    %v2237 = vunpack.c.h.b16 %v793
    %v2238 = vunpack.c.l.b16 %v794
    %v2239 = vunpack.c.h.b16 %v794
    %v2240 = vunpack.c.l.b16 %v795
    %v2241 = vunpack.c.h.b16 %v795
    %v2242 = vunpack.c.l.b16 %v796
    %v2243 = vunpack.c.h.b16 %v796
    %v2244 = vunpack.c.l.b16 %v797
    %v2245 = vunpack.c.h.b16 %v797
    %v2246 = vunpack.c.l.b16 %v798
    %v2247 = vunpack.c.h.b16 %v798
    %v2248 = vunpack.c.l.b16 %v799
    %v2249 = vunpack.c.h.b16 %v799
    %v2250 = vunpack.c.l.b16 %v800
    %v2251 = vunpack.c.h.b16 %v800
    %v2252 = vunpack.c.l.b16 %v801
    %v2253 = vunpack.c.h.b16 %v801
    %v2254 = vunpack.c.l.b16 %v802
    %v2255 = vunpack.c.h.b16 %v802
    %v2256 = vunpack.c.l.b16 %v803
    %v2257 = vunpack.c.h.b16 %v803
    %v2258 = vunpack.c.l.b16 %v804
    %v2259 = vunpack.c.h.b16 %v804
    %v2260 = vunpack.c.l.b16 %v805
    %v2261 = vunpack.c.h.b16 %v805
    %v2262 = vunpack.c.l.b16 %v806
    %v2263 = vunpack.c.h.b16 %v806
    %v2264 = vunpack.c.l.b16 %v807
    %v2265 = vunpack.c.h.b16 %v807
    %v2266 = vunpack.c.l.b16 %v808
    %v2267 = vunpack.c.h.b16 %v808
    %v2268 = vunpack.c.l.b16 %v809
    %v2269 = vunpack.c.h.b16 %v809
    %v2270 = vunpack.c.l.b16 %v810
    %v2271 = vunpack.c.h.b16 %v810
    %v2272 = vunpack.c.l.b16 %v811
    %v2273 = vunpack.c.h.b16 %v811
    %v2274 = vunpack.c.l.b16 %v812
    %v2275 = vunpack.c.h.b16 %v812
    %v2276 = vunpack.c.l.b16 %v813
    %v2277 = vunpack.c.h.b16 %v813
    %v2278 = vunpack.c.l.b16 %v814
    %v2279 = vunpack.c.h.b16 %v814
    %v2280 = vunpack.c.l.b16 %v815
    %v2281 = vunpack.c.h.b16 %v815
    %v2282 = vunpack.c.l.b16 %v816
    %v2283 = vunpack.c.h.b16 %v816
    %v2284 = vunpack.c.l.b16 %v817
    %v2285 = vunpack.c.h.b16 %v817
    %v2286 = vunpack.c.l.b16 %v818
    %v2287 = vunpack.c.h.b16 %v818
    %v2288 = vunpack.c.l.b16 %v819
    %v2289 = vunpack.c.h.b16 %v819
    %v2290 = vunpack.c.l.b16 %v820
    %v2291 = vunpack.c.h.b16 %v820
    %v2292 = vunpack.c.l.b16 %v821
    %v2293 = vunpack.c.h.b16 %v821
    %v2294 = vunpack.c.l.b16 %v822
    %v2295 = vunpack.c.h.b16 %v822
    %v2296 = vunpack.c.l.b16 %v823
    %v2297 = vunpack.c.h.b16 %v823
    %v2298 = vunpack.c.l.b16 %v824
    %v2299 = vunpack.c.h.b16 %v824
    %v2300 = vunpack.c.l.b16 %v825
    %v2301 = vunpack.c.h.b16 %v825
    %v2302 = vunpack.c.l.b16 %v826
    %v2303 = vunpack.c.h.b16 %v826
    %v2304 = vunpack.c.l.b16 %v827
    %v2305 = vunpack.c.h.b16 %v827
    %v2306 = vunpack.c.l.b16 %v828
    %v2307 = vunpack.c.h.b16 %v828
    %v2308 = vunpack.c.l.b16 %v829
    %v2309 = vunpack.c.h.b16 %v829
    %v2310 = vunpack.c.l.b16 %v830
    %v2311 = vunpack.c.h.b16 %v830
    %v2312 = vunpack.c.l.b16 %v831
    %v2313 = vunpack.c.h.b16 %v831
    %v2314 = vunpack.c.l.b16 %v832
    %v2315 = vunpack.c.h.b16 %v832
    %v2316 = vunpack.c.l.b16 %v833
    %v2317 = vunpack.c.h.b16 %v833
    %v2318 = vunpack.c.l.b16 %v834
    %v2319 = vunpack.c.h.b16 %v834
    %v2320 = vunpack.c.l.b16 %v835
    %v2321 = vunpack.c.h.b16 %v835
    %v2322 = vunpack.c.l.b16 %v836
    %v2323 = vunpack.c.h.b16 %v836
    %v2324 = vunpack.c.l.b16 %v837
    %v2325 = vunpack.c.h.b16 %v837
    %v2326 = vunpack.c.l.b16 %v838
    %v2327 = vunpack.c.h.b16 %v838
    %v2328 = vunpack.c.l.b16 %v839
    %v2329 = vunpack.c.h.b16 %v839
    %v2330 = vunpack.c.l.b16 %v840
    %v2331 = vunpack.c.h.b16 %v840
    %v2332 = vunpack.c.l.b16 %v841
    %v2333 = vunpack.c.h.b16 %v841
    %v2334 = vunpack.c.l.b16 %v842
    %v2335 = vunpack.c.h.b16 %v842
    %v2336 = vunpack.c.l.b16 %v843
    %v2337 = vunpack.c.h.b16 %v843
    %v2338 = vunpack.c.l.b16 %v844
    %v2339 = vunpack.c.h.b16 %v844
    %v2340 = vunpack.c.l.b16 %v845
    %v2341 = vunpack.c.h.b16 %v845
    %v2342 = vunpack.c.l.b16 %v846
    %v2343 = vunpack.c.h.b16 %v846
    %v2344 = vunpack.c.l.b16 %v847
    %v2345 = vunpack.c.h.b16 %v847
    %v2346 = vunpack.c.l.b16 %v848
    %v2347 = vunpack.c.h.b16 %v848
    %v2348 = vunpack.c.l.b16 %v849
    %v2349 = vunpack.c.h.b16 %v849
    %v2350 = vunpack.c.l.b16 %v850
    %v2351 = vunpack.c.h.b16 %v850
    %v2352 = vunpack.c.l.b16 %v851
    %v2353 = vunpack.c.h.b16 %v851
    %v2354 = vunpack.c.l.b16 %v852
    %v2355 = vunpack.c.h.b16 %v852
    %v2356 = vunpack.c.l.b16 %v853
    %v2357 = vunpack.c.h.b16 %v853
    %v2358 = vunpack.c.l.b16 %v854
    %v2359 = vunpack.c.h.b16 %v854
    %v2360 = vunpack.c.l.b16 %v855
    %v2361 = vunpack.c.h.b16 %v855
    %v2362 = vunpack.c.l.b16 %v856
    %v2363 = vunpack.c.h.b16 %v856
    %v2364 = vunpack.c.l.b16 %v857
    %v2365 = vunpack.c.h.b16 %v857
    %v2366 = vunpack.c.l.b16 %v858
    %v2367 = vunpack.c.h.b16 %v858
    %v2368 = vunpack.c.l.b16 %v859
    %v2369 = vunpack.c.h.b16 %v859
    %v2370 = vunpack.c.l.b16 %v860
    %v2371 = vunpack.c.h.b16 %v860
    %v2372 = vunpack.c.l.b16 %v861
    %v2373 = vunpack.c.h.b16 %v861
    %v2374 = vunpack.c.l.b16 %v862
    %v2375 = vunpack.c.h.b16 %v862
    %v2376 = vunpack.c.l.b16 %v863
    %v2377 = vunpack.c.h.b16 %v863
    %v2378 = vunpack.c.l.b16 %v864
    %v2379 = vunpack.c.h.b16 %v864
    %v2380 = vunpack.c.l.b16 %v865
    %v2381 = vunpack.c.h.b16 %v865
    %v2382 = vunpack.c.l.b16 %v866
    %v2383 = vunpack.c.h.b16 %v866
    %v2384 = vunpack.c.l.b16 %v867
    %v2385 = vunpack.c.h.b16 %v867
    %v2386 = vunpack.c.l.b16 %v868
    %v2387 = vunpack.c.h.b16 %v868
    %v2388 = vunpack.c.l.b16 %v869
    %v2389 = vunpack.c.h.b16 %v869
    %v2390 = vunpack.c.l.b16 %v870
    %v2391 = vunpack.c.h.b16 %v870
    %v2392 = vunpack.c.l.b16 %v871
    %v2393 = vunpack.c.h.b16 %v871
    %v2394 = vunpack.c.l.b16 %v872
    %v2395 = vunpack.c.h.b16 %v872
    %v2396 = vunpack.c.l.b16 %v873
    %v2397 = vunpack.c.h.b16 %v873
    %v2398 = vunpack.c.l.b16 %v874
    %v2399 = vunpack.c.h.b16 %v874
    %v2400 = vunpack.c.l.b16 %v875
    %v2401 = vunpack.c.h.b16 %v875
    %v2402 = vunpack.c.l.b16 %v876
    %v2403 = vunpack.c.h.b16 %v876
    %v2404 = vunpack.c.l.b16 %v877
    %v2405 = vunpack.c.h.b16 %v877
    %v2406 = vunpack.c.l.b16 %v878
    %v2407 = vunpack.c.h.b16 %v878
    %v2408 = vunpack.c.l.b16 %v879
    %v2409 = vunpack.c.h.b16 %v879
    %v2410 = vunpack.c.l.b16 %v880
    %v2411 = vunpack.c.h.b16 %v880
    %v2412 = vunpack.c.l.b16 %v881
    %v2413 = vunpack.c.h.b16 %v881
    %v2414 = vunpack.c.l.b16 %v882
    %v2415 = vunpack.c.h.b16 %v882
    %v2416 = vunpack.c.l.b16 %v883
    %v2417 = vunpack.c.h.b16 %v883
    %v2418 = vunpack.c.l.b16 %v884
    %v2419 = vunpack.c.h.b16 %v884
    %v2420 = vunpack.c.l.b16 %v885
    %v2421 = vunpack.c.h.b16 %v885
    %v2422 = vunpack.c.l.b16 %v886
    %v2423 = vunpack.c.h.b16 %v886
    %v2424 = vunpack.c.l.b16 %v887
    %v2425 = vunpack.c.h.b16 %v887
    %v2426 = vunpack.c.l.b16 %v888
    %v2427 = vunpack.c.h.b16 %v888
    %v2428 = vunpack.c.l.b16 %v889
    %v2429 = vunpack.c.h.b16 %v889
    %v2430 = vunpack.c.l.b16 %v890
    %v2431 = vunpack.c.h.b16 %v890
    %v2432 = vunpack.c.l.b16 %v891
    %v2433 = vunpack.c.h.b16 %v891
    %v2434 = vunpack.c.l.b16 %v892
    %v2435 = vunpack.c.h.b16 %v892
    %v2436 = vunpack.c.l.b16 %v893
    %v2437 = vunpack.c.h.b16 %v893
    %v2438 = vunpack.c.l.b16 %v894
    %v2439 = vunpack.c.h.b16 %v894
    %v2440 = vunpack.c.l.b16 %v895
    %v2441 = vunpack.c.h.b16 %v895
    %v2442 = vunpack.c.l.b16 %v896
    %v2443 = vunpack.c.h.b16 %v896
    %v2444 = vunpack.c.l.b16 %v897
    %v2445 = vunpack.c.h.b16 %v897
    %v2446 = vunpack.c.l.b16 %v898
    %v2447 = vunpack.c.h.b16 %v898
    %v2448 = vunpack.c.l.b16 %v899
    %v2449 = vunpack.c.h.b16 %v899
    %v2450 = vunpack.c.l.b16 %v900
    %v2451 = vunpack.c.h.b16 %v900
    %v2452 = vunpack.c.l.b16 %v901
    %v2453 = vunpack.c.h.b16 %v901
    %v2454 = vunpack.c.l.b16 %v902
    %v2455 = vunpack.c.h.b16 %v902
    %v2456 = vunpack.c.l.b16 %v903
    %v2457 = vunpack.c.h.b16 %v903
    %v2458 = vpack.c.b16 %v1442, %v1434
    %v2459 = vpack.c.b16 %v1443, %v1435
    %v2460 = vpack.c.b16 %v1444, %v1436
    %v2461 = vpack.c.b16 %v1445, %v1437
    %v2462 = vpack.c.b16 %v1446, %v1438
    %v2463 = vpack.c.b16 %v1447, %v1439
    %v2464 = vpack.c.b16 %v1448, %v1440
    %v2465 = vpack.c.b16 %v1449, %v1441
    %v2466 = vpack.c.b16 %v1458, %v1450
    %v2467 = vpack.c.b16 %v1459, %v1451
    %v2468 = vpack.c.b16 %v1460, %v1452
    %v2469 = vpack.c.b16 %v1461, %v1453
    %v2470 = vpack.c.b16 %v1462, %v1454
    %v2471 = vpack.c.b16 %v1463, %v1455
    %v2472 = vpack.c.b16 %v1464, %v1456
    %v2473 = vpack.c.b16 %v1465, %v1457
    %v2474 = vpack.c.b16 %v1474, %v1466
    %v2475 = vpack.c.b16 %v1475, %v1467
    %v2476 = vpack.c.b16 %v1476, %v1468
    %v2477 = vpack.c.b16 %v1477, %v1469
    %v2478 = vpack.c.b16 %v1478, %v1470
    %v2479 = vpack.c.b16 %v1479, %v1471
    %v2480 = vpack.c.b16 %v1480, %v1472
    %v2481 = vpack.c.b16 %v1481, %v1473
    %v2482 = vpack.c.b16 %v1490, %v1482
    %v2483 = vpack.c.b16 %v1491, %v1483
    %v2484 = vpack.c.b16 %v1492, %v1484
    %v2485 = vpack.c.b16 %v1493, %v1485
    %v2486 = vpack.c.b16 %v1494, %v1486
    %v2487 = vpack.c.b16 %v1495, %v1487
    %v2488 = vpack.c.b16 %v1496, %v1488
    %v2489 = vpack.c.b16 %v1497, %v1489
    %v2490 = vpack.c.b16 %v1506, %v1498
    %v2491 = vpack.c.b16 %v1507, %v1499
    %v2492 = vpack.c.b16 %v1508, %v1500
    %v2493 = vpack.c.b16 %v1509, %v1501
    %v2494 = vpack.c.b16 %v1510, %v1502
    %v2495 = vpack.c.b16 %v1511, %v1503
    %v2496 = vpack.c.b16 %v1512, %v1504
    %v2497 = vpack.c.b16 %v1513, %v1505
    %v2498 = vpack.c.b16 %v1522, %v1514
    %v2499 = vpack.c.b16 %v1523, %v1515
    %v2500 = vpack.c.b16 %v1524, %v1516
    %v2501 = vpack.c.b16 %v1525, %v1517
    %v2502 = vpack.c.b16 %v1526, %v1518
    %v2503 = vpack.c.b16 %v1527, %v1519
    %v2504 = vpack.c.b16 %v1528, %v1520
    %v2505 = vpack.c.b16 %v1529, %v1521
    %v2506 = vpack.c.b16 %v1538, %v1530
    %v2507 = vpack.c.b16 %v1539, %v1531
    %v2508 = vpack.c.b16 %v1540, %v1532
    %v2509 = vpack.c.b16 %v1541, %v1533
    %v2510 = vpack.c.b16 %v1542, %v1534
    %v2511 = vpack.c.b16 %v1543, %v1535
    %v2512 = vpack.c.b16 %v1544, %v1536
    %v2513 = vpack.c.b16 %v1545, %v1537
    %v2514 = vpack.c.b16 %v1554, %v1546
    %v2515 = vpack.c.b16 %v1555, %v1547
    %v2516 = vpack.c.b16 %v1556, %v1548
    %v2517 = vpack.c.b16 %v1557, %v1549
    %v2518 = vpack.c.b16 %v1558, %v1550
    %v2519 = vpack.c.b16 %v1559, %v1551
    %v2520 = vpack.c.b16 %v1560, %v1552
    %v2521 = vpack.c.b16 %v1561, %v1553
    %v2522 = vpack.c.b16 %v1570, %v1562
    %v2523 = vpack.c.b16 %v1571, %v1563
    %v2524 = vpack.c.b16 %v1572, %v1564
    %v2525 = vpack.c.b16 %v1573, %v1565
    %v2526 = vpack.c.b16 %v1574, %v1566
    %v2527 = vpack.c.b16 %v1575, %v1567
    %v2528 = vpack.c.b16 %v1576, %v1568
    %v2529 = vpack.c.b16 %v1577, %v1569
    %v2530 = vpack.c.b16 %v1586, %v1578
    %v2531 = vpack.c.b16 %v1587, %v1579
    %v2532 = vpack.c.b16 %v1588, %v1580
    %v2533 = vpack.c.b16 %v1589, %v1581
    %v2534 = vpack.c.b16 %v1590, %v1582
    %v2535 = vpack.c.b16 %v1591, %v1583
    %v2536 = vpack.c.b16 %v1592, %v1584
    %v2537 = vpack.c.b16 %v1593, %v1585
    %v2538 = vpack.c.b16 %v1602, %v1594
    %v2539 = vpack.c.b16 %v1603, %v1595
    %v2540 = vpack.c.b16 %v1604, %v1596
    %v2541 = vpack.c.b16 %v1605, %v1597
    %v2542 = vpack.c.b16 %v1606, %v1598
    %v2543 = vpack.c.b16 %v1607, %v1599
    %v2544 = vpack.c.b16 %v1608, %v1600
    %v2545 = vpack.c.b16 %v1609, %v1601
    %v2546 = vpack.c.b16 %v1618, %v1610
    %v2547 = vpack.c.b16 %v1619, %v1611
    %v2548 = vpack.c.b16 %v1620, %v1612
    %v2549 = vpack.c.b16 %v1621, %v1613
    %v2550 = vpack.c.b16 %v1622, %v1614
    %v2551 = vpack.c.b16 %v1623, %v1615
    %v2552 = vpack.c.b16 %v1624, %v1616
    %v2553 = vpack.c.b16 %v1625, %v1617
    %v2554 = vpack.c.b16 %v1634, %v1626
    %v2555 = vpack.c.b16 %v1635, %v1627
    %v2556 = vpack.c.b16 %v1636, %v1628
    %v2557 = vpack.c.b16 %v1637, %v1629
    %v2558 = vpack.c.b16 %v1638, %v1630
    %v2559 = vpack.c.b16 %v1639, %v1631
    %v2560 = vpack.c.b16 %v1640, %v1632
    %v2561 = vpack.c.b16 %v1641, %v1633
    %v2562 = vpack.c.b16 %v1650, %v1642
    %v2563 = vpack.c.b16 %v1651, %v1643
    %v2564 = vpack.c.b16 %v1652, %v1644
    %v2565 = vpack.c.b16 %v1653, %v1645
    %v2566 = vpack.c.b16 %v1654, %v1646
    %v2567 = vpack.c.b16 %v1655, %v1647
    %v2568 = vpack.c.b16 %v1656, %v1648
    %v2569 = vpack.c.b16 %v1657, %v1649
    %v2570 = vpack.c.b16 %v1666, %v1658
    %v2571 = vpack.c.b16 %v1667, %v1659
    %v2572 = vpack.c.b16 %v1668, %v1660
    %v2573 = vpack.c.b16 %v1669, %v1661
    %v2574 = vpack.c.b16 %v1670, %v1662
    %v2575 = vpack.c.b16 %v1671, %v1663
    %v2576 = vpack.c.b16 %v1672, %v1664
    %v2577 = vpack.c.b16 %v1673, %v1665
    %v2578 = vpack.c.b16 %v1682, %v1674
    %v2579 = vpack.c.b16 %v1683, %v1675
    %v2580 = vpack.c.b16 %v1684, %v1676
    %v2581 = vpack.c.b16 %v1685, %v1677
    %v2582 = vpack.c.b16 %v1686, %v1678
    %v2583 = vpack.c.b16 %v1687, %v1679
    %v2584 = vpack.c.b16 %v1688, %v1680
    %v2585 = vpack.c.b16 %v1689, %v1681
    %v2586 = vpack.c.b16 %v1698, %v1690
    %v2587 = vpack.c.b16 %v1699, %v1691
    %v2588 = vpack.c.b16 %v1700, %v1692
    %v2589 = vpack.c.b16 %v1701, %v1693
    %v2590 = vpack.c.b16 %v1702, %v1694
    %v2591 = vpack.c.b16 %v1703, %v1695
    %v2592 = vpack.c.b16 %v1704, %v1696
    %v2593 = vpack.c.b16 %v1705, %v1697
    %v2594 = vpack.c.b16 %v1714, %v1706
    %v2595 = vpack.c.b16 %v1715, %v1707
    %v2596 = vpack.c.b16 %v1716, %v1708
    %v2597 = vpack.c.b16 %v1717, %v1709
    %v2598 = vpack.c.b16 %v1718, %v1710
    %v2599 = vpack.c.b16 %v1719, %v1711
    %v2600 = vpack.c.b16 %v1720, %v1712
    %v2601 = vpack.c.b16 %v1721, %v1713
    %v2602 = vpack.c.b16 %v1730, %v1722
    %v2603 = vpack.c.b16 %v1731, %v1723
    %v2604 = vpack.c.b16 %v1732, %v1724
    %v2605 = vpack.c.b16 %v1733, %v1725
    %v2606 = vpack.c.b16 %v1734, %v1726
    %v2607 = vpack.c.b16 %v1735, %v1727
    %v2608 = vpack.c.b16 %v1736, %v1728
    %v2609 = vpack.c.b16 %v1737, %v1729
    %v2610 = vpack.c.b16 %v1746, %v1738
    %v2611 = vpack.c.b16 %v1747, %v1739
    %v2612 = vpack.c.b16 %v1748, %v1740
    %v2613 = vpack.c.b16 %v1749, %v1741
    %v2614 = vpack.c.b16 %v1750, %v1742
    %v2615 = vpack.c.b16 %v1751, %v1743
    %v2616 = vpack.c.b16 %v1752, %v1744
    %v2617 = vpack.c.b16 %v1753, %v1745
    %v2618 = vpack.c.b16 %v1762, %v1754
    %v2619 = vpack.c.b16 %v1763, %v1755
    %v2620 = vpack.c.b16 %v1764, %v1756
    %v2621 = vpack.c.b16 %v1765, %v1757
    %v2622 = vpack.c.b16 %v1766, %v1758
    %v2623 = vpack.c.b16 %v1767, %v1759
    %v2624 = vpack.c.b16 %v1768, %v1760
    %v2625 = vpack.c.b16 %v1769, %v1761
    %v2626 = vpack.c.b16 %v1778, %v1770
    %v2627 = vpack.c.b16 %v1779, %v1771
    %v2628 = vpack.c.b16 %v1780, %v1772
    %v2629 = vpack.c.b16 %v1781, %v1773
    %v2630 = vpack.c.b16 %v1782, %v1774
    %v2631 = vpack.c.b16 %v1783, %v1775
    %v2632 = vpack.c.b16 %v1784, %v1776
    %v2633 = vpack.c.b16 %v1785, %v1777
    %v2634 = vpack.c.b16 %v1794, %v1786
    %v2635 = vpack.c.b16 %v1795, %v1787
    %v2636 = vpack.c.b16 %v1796, %v1788
    %v2637 = vpack.c.b16 %v1797, %v1789
    %v2638 = vpack.c.b16 %v1798, %v1790
    %v2639 = vpack.c.b16 %v1799, %v1791
    %v2640 = vpack.c.b16 %v1800, %v1792
    %v2641 = vpack.c.b16 %v1801, %v1793
    %v2642 = vpack.c.b16 %v1810, %v1802
    %v2643 = vpack.c.b16 %v1811, %v1803
    %v2644 = vpack.c.b16 %v1812, %v1804
    %v2645 = vpack.c.b16 %v1813, %v1805
    %v2646 = vpack.c.b16 %v1814, %v1806
    %v2647 = vpack.c.b16 %v1815, %v1807
    %v2648 = vpack.c.b16 %v1816, %v1808
    %v2649 = vpack.c.b16 %v1817, %v1809
    %v2650 = vpack.c.b16 %v1826, %v1818
    %v2651 = vpack.c.b16 %v1827, %v1819
    %v2652 = vpack.c.b16 %v1828, %v1820
    %v2653 = vpack.c.b16 %v1829, %v1821
    %v2654 = vpack.c.b16 %v1830, %v1822
    %v2655 = vpack.c.b16 %v1831, %v1823
    %v2656 = vpack.c.b16 %v1832, %v1824
    %v2657 = vpack.c.b16 %v1833, %v1825
    %v2658 = vpack.c.b16 %v1842, %v1834
    %v2659 = vpack.c.b16 %v1843, %v1835
    %v2660 = vpack.c.b16 %v1844, %v1836
    %v2661 = vpack.c.b16 %v1845, %v1837
    %v2662 = vpack.c.b16 %v1846, %v1838
    %v2663 = vpack.c.b16 %v1847, %v1839
    %v2664 = vpack.c.b16 %v1848, %v1840
    %v2665 = vpack.c.b16 %v1849, %v1841
    %v2666 = vpack.c.b16 %v1858, %v1850
    %v2667 = vpack.c.b16 %v1859, %v1851
    %v2668 = vpack.c.b16 %v1860, %v1852
    %v2669 = vpack.c.b16 %v1861, %v1853
    %v2670 = vpack.c.b16 %v1862, %v1854
    %v2671 = vpack.c.b16 %v1863, %v1855
    %v2672 = vpack.c.b16 %v1864, %v1856
    %v2673 = vpack.c.b16 %v1865, %v1857
    %v2674 = vpack.c.b16 %v1874, %v1866
    %v2675 = vpack.c.b16 %v1875, %v1867
    %v2676 = vpack.c.b16 %v1876, %v1868
    %v2677 = vpack.c.b16 %v1877, %v1869
    %v2678 = vpack.c.b16 %v1878, %v1870
    %v2679 = vpack.c.b16 %v1879, %v1871
    %v2680 = vpack.c.b16 %v1880, %v1872
    %v2681 = vpack.c.b16 %v1881, %v1873
    %v2682 = vpack.c.b16 %v1890, %v1882
    %v2683 = vpack.c.b16 %v1891, %v1883
    %v2684 = vpack.c.b16 %v1892, %v1884
    %v2685 = vpack.c.b16 %v1893, %v1885
    %v2686 = vpack.c.b16 %v1894, %v1886
    %v2687 = vpack.c.b16 %v1895, %v1887
    %v2688 = vpack.c.b16 %v1896, %v1888
    %v2689 = vpack.c.b16 %v1897, %v1889
    %v2690 = vpack.c.b16 %v1906, %v1898
    %v2691 = vpack.c.b16 %v1907, %v1899
    %v2692 = vpack.c.b16 %v1908, %v1900
    %v2693 = vpack.c.b16 %v1909, %v1901
    %v2694 = vpack.c.b16 %v1910, %v1902
    %v2695 = vpack.c.b16 %v1911, %v1903
    %v2696 = vpack.c.b16 %v1912, %v1904
    %v2697 = vpack.c.b16 %v1913, %v1905
    %v2698 = vpack.c.b16 %v1922, %v1914
    %v2699 = vpack.c.b16 %v1923, %v1915
    %v2700 = vpack.c.b16 %v1924, %v1916
    %v2701 = vpack.c.b16 %v1925, %v1917
    %v2702 = vpack.c.b16 %v1926, %v1918
    %v2703 = vpack.c.b16 %v1927, %v1919
    %v2704 = vpack.c.b16 %v1928, %v1920
    %v2705 = vpack.c.b16 %v1929, %v1921
    %v2706 = vpack.c.b16 %v1938, %v1930
    %v2707 = vpack.c.b16 %v1939, %v1931
    %v2708 = vpack.c.b16 %v1940, %v1932
    %v2709 = vpack.c.b16 %v1941, %v1933
    %v2710 = vpack.c.b16 %v1942, %v1934
    %v2711 = vpack.c.b16 %v1943, %v1935
    %v2712 = vpack.c.b16 %v1944, %v1936
    %v2713 = vpack.c.b16 %v1945, %v1937
    %v2714 = vpack.c.b16 %v1954, %v1946
    %v2715 = vpack.c.b16 %v1955, %v1947
    %v2716 = vpack.c.b16 %v1956, %v1948
    %v2717 = vpack.c.b16 %v1957, %v1949
    %v2718 = vpack.c.b16 %v1958, %v1950
    %v2719 = vpack.c.b16 %v1959, %v1951
    %v2720 = vpack.c.b16 %v1960, %v1952
    %v2721 = vpack.c.b16 %v1961, %v1953
    %v2722 = vpack.c.b16 %v1970, %v1962
    %v2723 = vpack.c.b16 %v1971, %v1963
    %v2724 = vpack.c.b16 %v1972, %v1964
    %v2725 = vpack.c.b16 %v1973, %v1965
    %v2726 = vpack.c.b16 %v1974, %v1966
    %v2727 = vpack.c.b16 %v1975, %v1967
    %v2728 = vpack.c.b16 %v1976, %v1968
    %v2729 = vpack.c.b16 %v1977, %v1969
    %v2730 = vpack.c.b16 %v1986, %v1978
    %v2731 = vpack.c.b16 %v1987, %v1979
    %v2732 = vpack.c.b16 %v1988, %v1980
    %v2733 = vpack.c.b16 %v1989, %v1981
    %v2734 = vpack.c.b16 %v1990, %v1982
    %v2735 = vpack.c.b16 %v1991, %v1983
    %v2736 = vpack.c.b16 %v1992, %v1984
    %v2737 = vpack.c.b16 %v1993, %v1985
    %v2738 = vpack.c.b16 %v2002, %v1994
    %v2739 = vpack.c.b16 %v2003, %v1995
    %v2740 = vpack.c.b16 %v2004, %v1996
    %v2741 = vpack.c.b16 %v2005, %v1997
    %v2742 = vpack.c.b16 %v2006, %v1998
    %v2743 = vpack.c.b16 %v2007, %v1999
    %v2744 = vpack.c.b16 %v2008, %v2000
    %v2745 = vpack.c.b16 %v2009, %v2001
    %v2746 = vpack.c.b16 %v2018, %v2010
    %v2747 = vpack.c.b16 %v2019, %v2011
    %v2748 = vpack.c.b16 %v2020, %v2012
    %v2749 = vpack.c.b16 %v2021, %v2013
    %v2750 = vpack.c.b16 %v2022, %v2014
    %v2751 = vpack.c.b16 %v2023, %v2015
    %v2752 = vpack.c.b16 %v2024, %v2016
    %v2753 = vpack.c.b16 %v2025, %v2017
    %v2754 = vpack.c.b16 %v2034, %v2026
    %v2755 = vpack.c.b16 %v2035, %v2027
    %v2756 = vpack.c.b16 %v2036, %v2028
    %v2757 = vpack.c.b16 %v2037, %v2029
    %v2758 = vpack.c.b16 %v2038, %v2030
    %v2759 = vpack.c.b16 %v2039, %v2031
    %v2760 = vpack.c.b16 %v2040, %v2032
    %v2761 = vpack.c.b16 %v2041, %v2033
    %v2762 = vpack.c.b16 %v2050, %v2042
    %v2763 = vpack.c.b16 %v2051, %v2043
    %v2764 = vpack.c.b16 %v2052, %v2044
    %v2765 = vpack.c.b16 %v2053, %v2045
    %v2766 = vpack.c.b16 %v2054, %v2046
    %v2767 = vpack.c.b16 %v2055, %v2047
    %v2768 = vpack.c.b16 %v2056, %v2048
    %v2769 = vpack.c.b16 %v2057, %v2049
    %v2770 = vpack.c.b16 %v2066, %v2058
    %v2771 = vpack.c.b16 %v2067, %v2059
    %v2772 = vpack.c.b16 %v2068, %v2060
    %v2773 = vpack.c.b16 %v2069, %v2061
    %v2774 = vpack.c.b16 %v2070, %v2062
    %v2775 = vpack.c.b16 %v2071, %v2063
    %v2776 = vpack.c.b16 %v2072, %v2064
    %v2777 = vpack.c.b16 %v2073, %v2065
    %v2778 = vpack.c.b16 %v2082, %v2074
    %v2779 = vpack.c.b16 %v2083, %v2075
    %v2780 = vpack.c.b16 %v2084, %v2076
    %v2781 = vpack.c.b16 %v2085, %v2077
    %v2782 = vpack.c.b16 %v2086, %v2078
    %v2783 = vpack.c.b16 %v2087, %v2079
    %v2784 = vpack.c.b16 %v2088, %v2080
    %v2785 = vpack.c.b16 %v2089, %v2081
    %v2786 = vpack.c.b16 %v2098, %v2090
    %v2787 = vpack.c.b16 %v2099, %v2091
    %v2788 = vpack.c.b16 %v2100, %v2092
    %v2789 = vpack.c.b16 %v2101, %v2093
    %v2790 = vpack.c.b16 %v2102, %v2094
    %v2791 = vpack.c.b16 %v2103, %v2095
    %v2792 = vpack.c.b16 %v2104, %v2096
    %v2793 = vpack.c.b16 %v2105, %v2097
    %v2794 = vpack.c.b16 %v2114, %v2106
    %v2795 = vpack.c.b16 %v2115, %v2107
    %v2796 = vpack.c.b16 %v2116, %v2108
    %v2797 = vpack.c.b16 %v2117, %v2109
    %v2798 = vpack.c.b16 %v2118, %v2110
    %v2799 = vpack.c.b16 %v2119, %v2111
    %v2800 = vpack.c.b16 %v2120, %v2112
    %v2801 = vpack.c.b16 %v2121, %v2113
    %v2802 = vpack.c.b16 %v2130, %v2122
    %v2803 = vpack.c.b16 %v2131, %v2123
    %v2804 = vpack.c.b16 %v2132, %v2124
    %v2805 = vpack.c.b16 %v2133, %v2125
    %v2806 = vpack.c.b16 %v2134, %v2126
    %v2807 = vpack.c.b16 %v2135, %v2127
    %v2808 = vpack.c.b16 %v2136, %v2128
    %v2809 = vpack.c.b16 %v2137, %v2129
    %v2810 = vpack.c.b16 %v2146, %v2138
    %v2811 = vpack.c.b16 %v2147, %v2139
    %v2812 = vpack.c.b16 %v2148, %v2140
    %v2813 = vpack.c.b16 %v2149, %v2141
    %v2814 = vpack.c.b16 %v2150, %v2142
    %v2815 = vpack.c.b16 %v2151, %v2143
    %v2816 = vpack.c.b16 %v2152, %v2144
    %v2817 = vpack.c.b16 %v2153, %v2145
    %v2818 = vpack.c.b16 %v2162, %v2154
    %v2819 = vpack.c.b16 %v2163, %v2155
    %v2820 = vpack.c.b16 %v2164, %v2156
    %v2821 = vpack.c.b16 %v2165, %v2157
    %v2822 = vpack.c.b16 %v2166, %v2158
    %v2823 = vpack.c.b16 %v2167, %v2159
    %v2824 = vpack.c.b16 %v2168, %v2160
    %v2825 = vpack.c.b16 %v2169, %v2161
    %v2826 = vpack.c.b16 %v2178, %v2170
    %v2827 = vpack.c.b16 %v2179, %v2171
    %v2828 = vpack.c.b16 %v2180, %v2172
    %v2829 = vpack.c.b16 %v2181, %v2173
    %v2830 = vpack.c.b16 %v2182, %v2174
    %v2831 = vpack.c.b16 %v2183, %v2175
    %v2832 = vpack.c.b16 %v2184, %v2176
    %v2833 = vpack.c.b16 %v2185, %v2177
    %v2834 = vpack.c.b16 %v2194, %v2186
    %v2835 = vpack.c.b16 %v2195, %v2187
    %v2836 = vpack.c.b16 %v2196, %v2188
    %v2837 = vpack.c.b16 %v2197, %v2189
    %v2838 = vpack.c.b16 %v2198, %v2190
    %v2839 = vpack.c.b16 %v2199, %v2191
    %v2840 = vpack.c.b16 %v2200, %v2192
    %v2841 = vpack.c.b16 %v2201, %v2193
    %v2842 = vpack.c.b16 %v2210, %v2202
    %v2843 = vpack.c.b16 %v2211, %v2203
    %v2844 = vpack.c.b16 %v2212, %v2204
    %v2845 = vpack.c.b16 %v2213, %v2205
    %v2846 = vpack.c.b16 %v2214, %v2206
    %v2847 = vpack.c.b16 %v2215, %v2207
    %v2848 = vpack.c.b16 %v2216, %v2208
    %v2849 = vpack.c.b16 %v2217, %v2209
    %v2850 = vpack.c.b16 %v2226, %v2218
    %v2851 = vpack.c.b16 %v2227, %v2219
    %v2852 = vpack.c.b16 %v2228, %v2220
    %v2853 = vpack.c.b16 %v2229, %v2221
    %v2854 = vpack.c.b16 %v2230, %v2222
    %v2855 = vpack.c.b16 %v2231, %v2223
    %v2856 = vpack.c.b16 %v2232, %v2224
    %v2857 = vpack.c.b16 %v2233, %v2225
    %v2858 = vpack.c.b16 %v2242, %v2234
    %v2859 = vpack.c.b16 %v2243, %v2235
    %v2860 = vpack.c.b16 %v2244, %v2236
    %v2861 = vpack.c.b16 %v2245, %v2237
    %v2862 = vpack.c.b16 %v2246, %v2238
    %v2863 = vpack.c.b16 %v2247, %v2239
    %v2864 = vpack.c.b16 %v2248, %v2240
    %v2865 = vpack.c.b16 %v2249, %v2241
    %v2866 = vpack.c.b16 %v2258, %v2250
    %v2867 = vpack.c.b16 %v2259, %v2251
    %v2868 = vpack.c.b16 %v2260, %v2252
    %v2869 = vpack.c.b16 %v2261, %v2253
    %v2870 = vpack.c.b16 %v2262, %v2254
    %v2871 = vpack.c.b16 %v2263, %v2255
    %v2872 = vpack.c.b16 %v2264, %v2256
    %v2873 = vpack.c.b16 %v2265, %v2257
    %v2874 = vpack.c.b16 %v2274, %v2266
    %v2875 = vpack.c.b16 %v2275, %v2267
    %v2876 = vpack.c.b16 %v2276, %v2268
    %v2877 = vpack.c.b16 %v2277, %v2269
    %v2878 = vpack.c.b16 %v2278, %v2270
    %v2879 = vpack.c.b16 %v2279, %v2271
    %v2880 = vpack.c.b16 %v2280, %v2272
    %v2881 = vpack.c.b16 %v2281, %v2273
    %v2882 = vpack.c.b16 %v2290, %v2282
    %v2883 = vpack.c.b16 %v2291, %v2283
    %v2884 = vpack.c.b16 %v2292, %v2284
    %v2885 = vpack.c.b16 %v2293, %v2285
    %v2886 = vpack.c.b16 %v2294, %v2286
    %v2887 = vpack.c.b16 %v2295, %v2287
    %v2888 = vpack.c.b16 %v2296, %v2288
    %v2889 = vpack.c.b16 %v2297, %v2289
    %v2890 = vpack.c.b16 %v2306, %v2298
    %v2891 = vpack.c.b16 %v2307, %v2299
    %v2892 = vpack.c.b16 %v2308, %v2300
    %v2893 = vpack.c.b16 %v2309, %v2301
    %v2894 = vpack.c.b16 %v2310, %v2302
    %v2895 = vpack.c.b16 %v2311, %v2303
    %v2896 = vpack.c.b16 %v2312, %v2304
    %v2897 = vpack.c.b16 %v2313, %v2305
    %v2898 = vpack.c.b16 %v2322, %v2314
    %v2899 = vpack.c.b16 %v2323, %v2315
    %v2900 = vpack.c.b16 %v2324, %v2316
    %v2901 = vpack.c.b16 %v2325, %v2317
    %v2902 = vpack.c.b16 %v2326, %v2318
    %v2903 = vpack.c.b16 %v2327, %v2319
    %v2904 = vpack.c.b16 %v2328, %v2320
    %v2905 = vpack.c.b16 %v2329, %v2321
    %v2906 = vpack.c.b16 %v2338, %v2330
    %v2907 = vpack.c.b16 %v2339, %v2331
    %v2908 = vpack.c.b16 %v2340, %v2332
    %v2909 = vpack.c.b16 %v2341, %v2333
    %v2910 = vpack.c.b16 %v2342, %v2334
    %v2911 = vpack.c.b16 %v2343, %v2335
    %v2912 = vpack.c.b16 %v2344, %v2336
    %v2913 = vpack.c.b16 %v2345, %v2337
    %v2914 = vpack.c.b16 %v2354, %v2346
    %v2915 = vpack.c.b16 %v2355, %v2347
    %v2916 = vpack.c.b16 %v2356, %v2348
    %v2917 = vpack.c.b16 %v2357, %v2349
    %v2918 = vpack.c.b16 %v2358, %v2350
    %v2919 = vpack.c.b16 %v2359, %v2351
    %v2920 = vpack.c.b16 %v2360, %v2352
    %v2921 = vpack.c.b16 %v2361, %v2353
    %v2922 = vpack.c.b16 %v2370, %v2362
    %v2923 = vpack.c.b16 %v2371, %v2363
    %v2924 = vpack.c.b16 %v2372, %v2364
    %v2925 = vpack.c.b16 %v2373, %v2365
    %v2926 = vpack.c.b16 %v2374, %v2366
    %v2927 = vpack.c.b16 %v2375, %v2367
    %v2928 = vpack.c.b16 %v2376, %v2368
    %v2929 = vpack.c.b16 %v2377, %v2369
    %v2930 = vpack.c.b16 %v2386, %v2378
    %v2931 = vpack.c.b16 %v2387, %v2379
    %v2932 = vpack.c.b16 %v2388, %v2380
    %v2933 = vpack.c.b16 %v2389, %v2381
    %v2934 = vpack.c.b16 %v2390, %v2382
    %v2935 = vpack.c.b16 %v2391, %v2383
    %v2936 = vpack.c.b16 %v2392, %v2384
    %v2937 = vpack.c.b16 %v2393, %v2385
    %v2938 = vpack.c.b16 %v2402, %v2394
    %v2939 = vpack.c.b16 %v2403, %v2395
    %v2940 = vpack.c.b16 %v2404, %v2396
    %v2941 = vpack.c.b16 %v2405, %v2397
    %v2942 = vpack.c.b16 %v2406, %v2398
    %v2943 = vpack.c.b16 %v2407, %v2399
    %v2944 = vpack.c.b16 %v2408, %v2400
    %v2945 = vpack.c.b16 %v2409, %v2401
    %v2946 = vpack.c.b16 %v2418, %v2410
    %v2947 = vpack.c.b16 %v2419, %v2411
    %v2948 = vpack.c.b16 %v2420, %v2412
    %v2949 = vpack.c.b16 %v2421, %v2413
    %v2950 = vpack.c.b16 %v2422, %v2414
    %v2951 = vpack.c.b16 %v2423, %v2415
    %v2952 = vpack.c.b16 %v2424, %v2416
    %v2953 = vpack.c.b16 %v2425, %v2417
    %v2954 = vpack.c.b16 %v2434, %v2426
    %v2955 = vpack.c.b16 %v2435, %v2427
    %v2956 = vpack.c.b16 %v2436, %v2428
    %v2957 = vpack.c.b16 %v2437, %v2429
    %v2958 = vpack.c.b16 %v2438, %v2430
    %v2959 = vpack.c.b16 %v2439, %v2431
    %v2960 = vpack.c.b16 %v2440, %v2432
    %v2961 = vpack.c.b16 %v2441, %v2433
    %v2962 = vpack.c.b16 %v2450, %v2442
    %v2963 = vpack.c.b16 %v2451, %v2443
    %v2964 = vpack.c.b16 %v2452, %v2444
    %v2965 = vpack.c.b16 %v2453, %v2445
    %v2966 = vpack.c.b16 %v2454, %v2446
    %v2967 = vpack.c.b16 %v2455, %v2447
    %v2968 = vpack.c.b16 %v2456, %v2448
    %v2969 = vpack.c.b16 %v2457, %v2449
    %3482 = vmatpush.bf16.msra.mxu0 %v2514
    %3483 = vmatpush.bf16.msra.mxu0 %v2506
    %3484 = vmatpush.bf16.msra.mxu0 %v2498
    %3485 = vmatpush.bf16.msra.mxu0 %v2490
    %3486 = vmatpush.bf16.msra.mxu0 %v2482
    %3487 = vmatpush.bf16.msra.mxu0 %v2474
    %3488 = vmatpush.bf16.msra.mxu0 %v2466
    %3489 = vmatpush.bf16.msra.mxu0 %v2458
    %3490 = vmatmul.bf16.gmra.mxu0 %v384
    %v3491 = vpop.f32.mrf.mxu0
    %v3492 = vadd.f32 %v906, %v3491
    %v3493 = vpop.f32.mrf.mxu0
    %v3494 = vadd.f32 %v906, %v3493
    %3495 = vdwg.mxu0
    %3496 = vmatpush.bf16.msra.mxu0 %v2578
    %3497 = vmatpush.bf16.msra.mxu0 %v2570
    %3498 = vmatpush.bf16.msra.mxu0 %v2562
    %3499 = vmatpush.bf16.msra.mxu0 %v2554
    %3500 = vmatpush.bf16.msra.mxu0 %v2546
    %3501 = vmatpush.bf16.msra.mxu0 %v2538
    %3502 = vmatpush.bf16.msra.mxu0 %v2530
    %3503 = vmatpush.bf16.msra.mxu0 %v2522
    %3504 = vmatmul.bf16.gmra.mxu0 %v385
    %v3505 = vpop.f32.mrf.mxu0
    %v3506 = vadd.f32 %v3492, %v3505
    %v3507 = vpop.f32.mrf.mxu0
    %v3508 = vadd.f32 %v3494, %v3507
    %3509 = vdwg.mxu0
    %3510 = vmatpush.bf16.msra.mxu0 %v2642
    %3511 = vmatpush.bf16.msra.mxu0 %v2634
    %3512 = vmatpush.bf16.msra.mxu0 %v2626
    %3513 = vmatpush.bf16.msra.mxu0 %v2618
    %3514 = vmatpush.bf16.msra.mxu0 %v2610
    %3515 = vmatpush.bf16.msra.mxu0 %v2602
    %3516 = vmatpush.bf16.msra.mxu0 %v2594
    %3517 = vmatpush.bf16.msra.mxu0 %v2586
    %3518 = vmatmul.bf16.gmra.mxu0 %v386
    %v3519 = vpop.f32.mrf.mxu0
    %v3520 = vadd.f32 %v3506, %v3519
    %v3521 = vpop.f32.mrf.mxu0
    %v3522 = vadd.f32 %v3508, %v3521
    %3523 = vdwg.mxu0
    %3524 = vmatpush.bf16.msra.mxu0 %v2706
    %3525 = vmatpush.bf16.msra.mxu0 %v2698
    %3526 = vmatpush.bf16.msra.mxu0 %v2690
    %3527 = vmatpush.bf16.msra.mxu0 %v2682
    %3528 = vmatpush.bf16.msra.mxu0 %v2674
    %3529 = vmatpush.bf16.msra.mxu0 %v2666
    %3530 = vmatpush.bf16.msra.mxu0 %v2658
    %3531 = vmatpush.bf16.msra.mxu0 %v2650
    %3532 = vmatmul.bf16.gmra.mxu0 %v387
    %v3533 = vpop.f32.mrf.mxu0
    %v3534 = vadd.f32 %v3520, %v3533
    %v3535 = vpop.f32.mrf.mxu0
    %v3536 = vadd.f32 %v3522, %v3535
    %3537 = vdwg.mxu0
    %3538 = vmatpush.bf16.msra.mxu0 %v2770
    %3539 = vmatpush.bf16.msra.mxu0 %v2762
    %3540 = vmatpush.bf16.msra.mxu0 %v2754
    %3541 = vmatpush.bf16.msra.mxu0 %v2746
    %3542 = vmatpush.bf16.msra.mxu0 %v2738
    %3543 = vmatpush.bf16.msra.mxu0 %v2730
    %3544 = vmatpush.bf16.msra.mxu0 %v2722
    %3545 = vmatpush.bf16.msra.mxu0 %v2714
    %3546 = vmatmul.bf16.gmra.mxu0 %v388
    %v3547 = vpop.f32.mrf.mxu0
    %v3548 = vadd.f32 %v3534, %v3547
    %v3549 = vpop.f32.mrf.mxu0
    %v3550 = vadd.f32 %v3536, %v3549
    %3551 = vdwg.mxu0
    %3552 = vmatpush.bf16.msra.mxu0 %v2834
    %3553 = vmatpush.bf16.msra.mxu0 %v2826
    %3554 = vmatpush.bf16.msra.mxu0 %v2818
    %3555 = vmatpush.bf16.msra.mxu0 %v2810
    %3556 = vmatpush.bf16.msra.mxu0 %v2802
    %3557 = vmatpush.bf16.msra.mxu0 %v2794
    %3558 = vmatpush.bf16.msra.mxu0 %v2786
    %3559 = vmatpush.bf16.msra.mxu0 %v2778
    %3560 = vmatmul.bf16.gmra.mxu0 %v389
    %v3561 = vpop.f32.mrf.mxu0
    %v3562 = vadd.f32 %v3548, %v3561
    %v3563 = vpop.f32.mrf.mxu0
    %v3564 = vadd.f32 %v3550, %v3563
    %3565 = vdwg.mxu0
    %3566 = vmatpush.bf16.msra.mxu0 %v2898
    %3567 = vmatpush.bf16.msra.mxu0 %v2890
    %3568 = vmatpush.bf16.msra.mxu0 %v2882
    %3569 = vmatpush.bf16.msra.mxu0 %v2874
    %3570 = vmatpush.bf16.msra.mxu0 %v2866
    %3571 = vmatpush.bf16.msra.mxu0 %v2858
    %3572 = vmatpush.bf16.msra.mxu0 %v2850
    %3573 = vmatpush.bf16.msra.mxu0 %v2842
    %3574 = vmatmul.bf16.gmra.mxu0 %v390
    %v3575 = vpop.f32.mrf.mxu0
    %v3576 = vadd.f32 %v3562, %v3575
    %v3577 = vpop.f32.mrf.mxu0
    %v3578 = vadd.f32 %v3564, %v3577
    %3579 = vdwg.mxu0
    %3580 = vmatpush.bf16.msra.mxu0 %v2962
    %3581 = vmatpush.bf16.msra.mxu0 %v2954
    %3582 = vmatpush.bf16.msra.mxu0 %v2946
    %3583 = vmatpush.bf16.msra.mxu0 %v2938
    %3584 = vmatpush.bf16.msra.mxu0 %v2930
    %3585 = vmatpush.bf16.msra.mxu0 %v2922
    %3586 = vmatpush.bf16.msra.mxu0 %v2914
    %3587 = vmatpush.bf16.msra.mxu0 %v2906
    %3588 = vmatmul.bf16.gmra.mxu0 %v391
    %v3589 = vpop.f32.mrf.mxu0
    %v3590 = vadd.f32 %v3576, %v3589
    %v3591 = vpop.f32.mrf.mxu0
    %v3592 = vadd.f32 %v3578, %v3591
    %3593 = vdwg.mxu0
    %3594 = vmatpush.bf16.msra.mxu0 %v2515
    %3595 = vmatpush.bf16.msra.mxu0 %v2507
    %3596 = vmatpush.bf16.msra.mxu0 %v2499
    %3597 = vmatpush.bf16.msra.mxu0 %v2491
    %3598 = vmatpush.bf16.msra.mxu0 %v2483
    %3599 = vmatpush.bf16.msra.mxu0 %v2475
    %3600 = vmatpush.bf16.msra.mxu0 %v2467
    %3601 = vmatpush.bf16.msra.mxu0 %v2459
    %3602 = vmatmul.bf16.gmra.mxu0 %v384
    %v3603 = vpop.f32.mrf.mxu0
    %v3604 = vadd.f32 %v907, %v3603
    %v3605 = vpop.f32.mrf.mxu0
    %v3606 = vadd.f32 %v907, %v3605
    %3607 = vdwg.mxu0
    %3608 = vmatpush.bf16.msra.mxu0 %v2579
    %3609 = vmatpush.bf16.msra.mxu0 %v2571
    %3610 = vmatpush.bf16.msra.mxu0 %v2563
    %3611 = vmatpush.bf16.msra.mxu0 %v2555
    %3612 = vmatpush.bf16.msra.mxu0 %v2547
    %3613 = vmatpush.bf16.msra.mxu0 %v2539
    %3614 = vmatpush.bf16.msra.mxu0 %v2531
    %3615 = vmatpush.bf16.msra.mxu0 %v2523
    %3616 = vmatmul.bf16.gmra.mxu0 %v385
    %v3617 = vpop.f32.mrf.mxu0
    %v3618 = vadd.f32 %v3604, %v3617
    %v3619 = vpop.f32.mrf.mxu0
    %v3620 = vadd.f32 %v3606, %v3619
    %3621 = vdwg.mxu0
    %3622 = vmatpush.bf16.msra.mxu0 %v2643
    %3623 = vmatpush.bf16.msra.mxu0 %v2635
    %3624 = vmatpush.bf16.msra.mxu0 %v2627
    %3625 = vmatpush.bf16.msra.mxu0 %v2619
    %3626 = vmatpush.bf16.msra.mxu0 %v2611
    %3627 = vmatpush.bf16.msra.mxu0 %v2603
    %3628 = vmatpush.bf16.msra.mxu0 %v2595
    %3629 = vmatpush.bf16.msra.mxu0 %v2587
    %3630 = vmatmul.bf16.gmra.mxu0 %v386
    %v3631 = vpop.f32.mrf.mxu0
    %v3632 = vadd.f32 %v3618, %v3631
    %v3633 = vpop.f32.mrf.mxu0
    %v3634 = vadd.f32 %v3620, %v3633
    %3635 = vdwg.mxu0
    %3636 = vmatpush.bf16.msra.mxu0 %v2707
    %3637 = vmatpush.bf16.msra.mxu0 %v2699
    %3638 = vmatpush.bf16.msra.mxu0 %v2691
    %3639 = vmatpush.bf16.msra.mxu0 %v2683
    %3640 = vmatpush.bf16.msra.mxu0 %v2675
    %3641 = vmatpush.bf16.msra.mxu0 %v2667
    %3642 = vmatpush.bf16.msra.mxu0 %v2659
    %3643 = vmatpush.bf16.msra.mxu0 %v2651
    %3644 = vmatmul.bf16.gmra.mxu0 %v387
    %v3645 = vpop.f32.mrf.mxu0
    %v3646 = vadd.f32 %v3632, %v3645
    %v3647 = vpop.f32.mrf.mxu0
    %v3648 = vadd.f32 %v3634, %v3647
    %3649 = vdwg.mxu0
    %3650 = vmatpush.bf16.msra.mxu0 %v2771
    %3651 = vmatpush.bf16.msra.mxu0 %v2763
    %3652 = vmatpush.bf16.msra.mxu0 %v2755
    %3653 = vmatpush.bf16.msra.mxu0 %v2747
    %3654 = vmatpush.bf16.msra.mxu0 %v2739
    %3655 = vmatpush.bf16.msra.mxu0 %v2731
    %3656 = vmatpush.bf16.msra.mxu0 %v2723
    %3657 = vmatpush.bf16.msra.mxu0 %v2715
    %3658 = vmatmul.bf16.gmra.mxu0 %v388
    %v3659 = vpop.f32.mrf.mxu0
    %v3660 = vadd.f32 %v3646, %v3659
    %v3661 = vpop.f32.mrf.mxu0
    %v3662 = vadd.f32 %v3648, %v3661
    %3663 = vdwg.mxu0
    %3664 = vmatpush.bf16.msra.mxu0 %v2835
    %3665 = vmatpush.bf16.msra.mxu0 %v2827
    %3666 = vmatpush.bf16.msra.mxu0 %v2819
    %3667 = vmatpush.bf16.msra.mxu0 %v2811
    %3668 = vmatpush.bf16.msra.mxu0 %v2803
    %3669 = vmatpush.bf16.msra.mxu0 %v2795
    %3670 = vmatpush.bf16.msra.mxu0 %v2787
    %3671 = vmatpush.bf16.msra.mxu0 %v2779
    %3672 = vmatmul.bf16.gmra.mxu0 %v389
    %v3673 = vpop.f32.mrf.mxu0
    %v3674 = vadd.f32 %v3660, %v3673
    %v3675 = vpop.f32.mrf.mxu0
    %v3676 = vadd.f32 %v3662, %v3675
    %3677 = vdwg.mxu0
    %3678 = vmatpush.bf16.msra.mxu0 %v2899
    %3679 = vmatpush.bf16.msra.mxu0 %v2891
    %3680 = vmatpush.bf16.msra.mxu0 %v2883
    %3681 = vmatpush.bf16.msra.mxu0 %v2875
    %3682 = vmatpush.bf16.msra.mxu0 %v2867
    %3683 = vmatpush.bf16.msra.mxu0 %v2859
    %3684 = vmatpush.bf16.msra.mxu0 %v2851
    %3685 = vmatpush.bf16.msra.mxu0 %v2843
    %3686 = vmatmul.bf16.gmra.mxu0 %v390
    %v3687 = vpop.f32.mrf.mxu0
    %v3688 = vadd.f32 %v3674, %v3687
    %v3689 = vpop.f32.mrf.mxu0
    %v3690 = vadd.f32 %v3676, %v3689
    %3691 = vdwg.mxu0
    %3692 = vmatpush.bf16.msra.mxu0 %v2963
    %3693 = vmatpush.bf16.msra.mxu0 %v2955
    %3694 = vmatpush.bf16.msra.mxu0 %v2947
    %3695 = vmatpush.bf16.msra.mxu0 %v2939
    %3696 = vmatpush.bf16.msra.mxu0 %v2931
    %3697 = vmatpush.bf16.msra.mxu0 %v2923
    %3698 = vmatpush.bf16.msra.mxu0 %v2915
    %3699 = vmatpush.bf16.msra.mxu0 %v2907
    %3700 = vmatmul.bf16.gmra.mxu0 %v391
    %v3701 = vpop.f32.mrf.mxu0
    %v3702 = vadd.f32 %v3688, %v3701
    %v3703 = vpop.f32.mrf.mxu0
    %v3704 = vadd.f32 %v3690, %v3703
    %3705 = vdwg.mxu0
    %3706 = vmatpush.bf16.msra.mxu0 %v2516
    %3707 = vmatpush.bf16.msra.mxu0 %v2508
    %3708 = vmatpush.bf16.msra.mxu0 %v2500
    %3709 = vmatpush.bf16.msra.mxu0 %v2492
    %3710 = vmatpush.bf16.msra.mxu0 %v2484
    %3711 = vmatpush.bf16.msra.mxu0 %v2476
    %3712 = vmatpush.bf16.msra.mxu0 %v2468
    %3713 = vmatpush.bf16.msra.mxu0 %v2460
    %3714 = vmatmul.bf16.gmra.mxu0 %v384
    %v3715 = vpop.f32.mrf.mxu0
    %v3716 = vadd.f32 %v908, %v3715
    %v3717 = vpop.f32.mrf.mxu0
    %v3718 = vadd.f32 %v908, %v3717
    %3719 = vdwg.mxu0
    %3720 = vmatpush.bf16.msra.mxu0 %v2580
    %3721 = vmatpush.bf16.msra.mxu0 %v2572
    %3722 = vmatpush.bf16.msra.mxu0 %v2564
    %3723 = vmatpush.bf16.msra.mxu0 %v2556
    %3724 = vmatpush.bf16.msra.mxu0 %v2548
    %3725 = vmatpush.bf16.msra.mxu0 %v2540
    %3726 = vmatpush.bf16.msra.mxu0 %v2532
    %3727 = vmatpush.bf16.msra.mxu0 %v2524
    %3728 = vmatmul.bf16.gmra.mxu0 %v385
    %v3729 = vpop.f32.mrf.mxu0
    %v3730 = vadd.f32 %v3716, %v3729
    %v3731 = vpop.f32.mrf.mxu0
    %v3732 = vadd.f32 %v3718, %v3731
    %3733 = vdwg.mxu0
    %3734 = vmatpush.bf16.msra.mxu0 %v2644
    %3735 = vmatpush.bf16.msra.mxu0 %v2636
    %3736 = vmatpush.bf16.msra.mxu0 %v2628
    %3737 = vmatpush.bf16.msra.mxu0 %v2620
    %3738 = vmatpush.bf16.msra.mxu0 %v2612
    %3739 = vmatpush.bf16.msra.mxu0 %v2604
    %3740 = vmatpush.bf16.msra.mxu0 %v2596
    %3741 = vmatpush.bf16.msra.mxu0 %v2588
    %3742 = vmatmul.bf16.gmra.mxu0 %v386
    %v3743 = vpop.f32.mrf.mxu0
    %v3744 = vadd.f32 %v3730, %v3743
    %v3745 = vpop.f32.mrf.mxu0
    %v3746 = vadd.f32 %v3732, %v3745
    %3747 = vdwg.mxu0
    %3748 = vmatpush.bf16.msra.mxu0 %v2708
    %3749 = vmatpush.bf16.msra.mxu0 %v2700
    %3750 = vmatpush.bf16.msra.mxu0 %v2692
    %3751 = vmatpush.bf16.msra.mxu0 %v2684
    %3752 = vmatpush.bf16.msra.mxu0 %v2676
    %3753 = vmatpush.bf16.msra.mxu0 %v2668
    %3754 = vmatpush.bf16.msra.mxu0 %v2660
    %3755 = vmatpush.bf16.msra.mxu0 %v2652
    %3756 = vmatmul.bf16.gmra.mxu0 %v387
    %v3757 = vpop.f32.mrf.mxu0
    %v3758 = vadd.f32 %v3744, %v3757
    %v3759 = vpop.f32.mrf.mxu0
    %v3760 = vadd.f32 %v3746, %v3759
    %3761 = vdwg.mxu0
    %3762 = vmatpush.bf16.msra.mxu0 %v2772
    %3763 = vmatpush.bf16.msra.mxu0 %v2764
    %3764 = vmatpush.bf16.msra.mxu0 %v2756
    %3765 = vmatpush.bf16.msra.mxu0 %v2748
    %3766 = vmatpush.bf16.msra.mxu0 %v2740
    %3767 = vmatpush.bf16.msra.mxu0 %v2732
    %3768 = vmatpush.bf16.msra.mxu0 %v2724
    %3769 = vmatpush.bf16.msra.mxu0 %v2716
    %3770 = vmatmul.bf16.gmra.mxu0 %v388
    %v3771 = vpop.f32.mrf.mxu0
    %v3772 = vadd.f32 %v3758, %v3771
    %v3773 = vpop.f32.mrf.mxu0
    %v3774 = vadd.f32 %v3760, %v3773
    %3775 = vdwg.mxu0
    %3776 = vmatpush.bf16.msra.mxu0 %v2836
    %3777 = vmatpush.bf16.msra.mxu0 %v2828
    %3778 = vmatpush.bf16.msra.mxu0 %v2820
    %3779 = vmatpush.bf16.msra.mxu0 %v2812
    %3780 = vmatpush.bf16.msra.mxu0 %v2804
    %3781 = vmatpush.bf16.msra.mxu0 %v2796
    %3782 = vmatpush.bf16.msra.mxu0 %v2788
    %3783 = vmatpush.bf16.msra.mxu0 %v2780
    %3784 = vmatmul.bf16.gmra.mxu0 %v389
    %v3785 = vpop.f32.mrf.mxu0
    %v3786 = vadd.f32 %v3772, %v3785
    %v3787 = vpop.f32.mrf.mxu0
    %v3788 = vadd.f32 %v3774, %v3787
    %3789 = vdwg.mxu0
    %3790 = vmatpush.bf16.msra.mxu0 %v2900
    %3791 = vmatpush.bf16.msra.mxu0 %v2892
    %3792 = vmatpush.bf16.msra.mxu0 %v2884
    %3793 = vmatpush.bf16.msra.mxu0 %v2876
    %3794 = vmatpush.bf16.msra.mxu0 %v2868
    %3795 = vmatpush.bf16.msra.mxu0 %v2860
    %3796 = vmatpush.bf16.msra.mxu0 %v2852
    %3797 = vmatpush.bf16.msra.mxu0 %v2844
    %3798 = vmatmul.bf16.gmra.mxu0 %v390
    %v3799 = vpop.f32.mrf.mxu0
    %v3800 = vadd.f32 %v3786, %v3799
    %v3801 = vpop.f32.mrf.mxu0
    %v3802 = vadd.f32 %v3788, %v3801
    %3803 = vdwg.mxu0
    %3804 = vmatpush.bf16.msra.mxu0 %v2964
    %3805 = vmatpush.bf16.msra.mxu0 %v2956
    %3806 = vmatpush.bf16.msra.mxu0 %v2948
    %3807 = vmatpush.bf16.msra.mxu0 %v2940
    %3808 = vmatpush.bf16.msra.mxu0 %v2932
    %3809 = vmatpush.bf16.msra.mxu0 %v2924
    %3810 = vmatpush.bf16.msra.mxu0 %v2916
    %3811 = vmatpush.bf16.msra.mxu0 %v2908
    %3812 = vmatmul.bf16.gmra.mxu0 %v391
    %v3813 = vpop.f32.mrf.mxu0
    %v3814 = vadd.f32 %v3800, %v3813
    %v3815 = vpop.f32.mrf.mxu0
    %v3816 = vadd.f32 %v3802, %v3815
    %3817 = vdwg.mxu0
    %3818 = vmatpush.bf16.msra.mxu0 %v2517
    %3819 = vmatpush.bf16.msra.mxu0 %v2509
    %3820 = vmatpush.bf16.msra.mxu0 %v2501
    %3821 = vmatpush.bf16.msra.mxu0 %v2493
    %3822 = vmatpush.bf16.msra.mxu0 %v2485
    %3823 = vmatpush.bf16.msra.mxu0 %v2477
    %3824 = vmatpush.bf16.msra.mxu0 %v2469
    %3825 = vmatpush.bf16.msra.mxu0 %v2461
    %3826 = vmatmul.bf16.gmra.mxu0 %v384
    %v3827 = vpop.f32.mrf.mxu0
    %v3828 = vadd.f32 %v909, %v3827
    %v3829 = vpop.f32.mrf.mxu0
    %v3830 = vadd.f32 %v909, %v3829
    %3831 = vdwg.mxu0
    %3832 = vmatpush.bf16.msra.mxu0 %v2581
    %3833 = vmatpush.bf16.msra.mxu0 %v2573
    %3834 = vmatpush.bf16.msra.mxu0 %v2565
    %3835 = vmatpush.bf16.msra.mxu0 %v2557
    %3836 = vmatpush.bf16.msra.mxu0 %v2549
    %3837 = vmatpush.bf16.msra.mxu0 %v2541
    %3838 = vmatpush.bf16.msra.mxu0 %v2533
    %3839 = vmatpush.bf16.msra.mxu0 %v2525
    %3840 = vmatmul.bf16.gmra.mxu0 %v385
    %v3841 = vpop.f32.mrf.mxu0
    %v3842 = vadd.f32 %v3828, %v3841
    %v3843 = vpop.f32.mrf.mxu0
    %v3844 = vadd.f32 %v3830, %v3843
    %3845 = vdwg.mxu0
    %3846 = vmatpush.bf16.msra.mxu0 %v2645
    %3847 = vmatpush.bf16.msra.mxu0 %v2637
    %3848 = vmatpush.bf16.msra.mxu0 %v2629
    %3849 = vmatpush.bf16.msra.mxu0 %v2621
    %3850 = vmatpush.bf16.msra.mxu0 %v2613
    %3851 = vmatpush.bf16.msra.mxu0 %v2605
    %3852 = vmatpush.bf16.msra.mxu0 %v2597
    %3853 = vmatpush.bf16.msra.mxu0 %v2589
    %3854 = vmatmul.bf16.gmra.mxu0 %v386
    %v3855 = vpop.f32.mrf.mxu0
    %v3856 = vadd.f32 %v3842, %v3855
    %v3857 = vpop.f32.mrf.mxu0
    %v3858 = vadd.f32 %v3844, %v3857
    %3859 = vdwg.mxu0
    %3860 = vmatpush.bf16.msra.mxu0 %v2709
    %3861 = vmatpush.bf16.msra.mxu0 %v2701
    %3862 = vmatpush.bf16.msra.mxu0 %v2693
    %3863 = vmatpush.bf16.msra.mxu0 %v2685
    %3864 = vmatpush.bf16.msra.mxu0 %v2677
    %3865 = vmatpush.bf16.msra.mxu0 %v2669
    %3866 = vmatpush.bf16.msra.mxu0 %v2661
    %3867 = vmatpush.bf16.msra.mxu0 %v2653
    %3868 = vmatmul.bf16.gmra.mxu0 %v387
    %v3869 = vpop.f32.mrf.mxu0
    %v3870 = vadd.f32 %v3856, %v3869
    %v3871 = vpop.f32.mrf.mxu0
    %v3872 = vadd.f32 %v3858, %v3871
    %3873 = vdwg.mxu0
    %3874 = vmatpush.bf16.msra.mxu0 %v2773
    %3875 = vmatpush.bf16.msra.mxu0 %v2765
    %3876 = vmatpush.bf16.msra.mxu0 %v2757
    %3877 = vmatpush.bf16.msra.mxu0 %v2749
    %3878 = vmatpush.bf16.msra.mxu0 %v2741
    %3879 = vmatpush.bf16.msra.mxu0 %v2733
    %3880 = vmatpush.bf16.msra.mxu0 %v2725
    %3881 = vmatpush.bf16.msra.mxu0 %v2717
    %3882 = vmatmul.bf16.gmra.mxu0 %v388
    %v3883 = vpop.f32.mrf.mxu0
    %v3884 = vadd.f32 %v3870, %v3883
    %v3885 = vpop.f32.mrf.mxu0
    %v3886 = vadd.f32 %v3872, %v3885
    %3887 = vdwg.mxu0
    %3888 = vmatpush.bf16.msra.mxu0 %v2837
    %3889 = vmatpush.bf16.msra.mxu0 %v2829
    %3890 = vmatpush.bf16.msra.mxu0 %v2821
    %3891 = vmatpush.bf16.msra.mxu0 %v2813
    %3892 = vmatpush.bf16.msra.mxu0 %v2805
    %3893 = vmatpush.bf16.msra.mxu0 %v2797
    %3894 = vmatpush.bf16.msra.mxu0 %v2789
    %3895 = vmatpush.bf16.msra.mxu0 %v2781
    %3896 = vmatmul.bf16.gmra.mxu0 %v389
    %v3897 = vpop.f32.mrf.mxu0
    %v3898 = vadd.f32 %v3884, %v3897
    %v3899 = vpop.f32.mrf.mxu0
    %v3900 = vadd.f32 %v3886, %v3899
    %3901 = vdwg.mxu0
    %3902 = vmatpush.bf16.msra.mxu0 %v2901
    %3903 = vmatpush.bf16.msra.mxu0 %v2893
    %3904 = vmatpush.bf16.msra.mxu0 %v2885
    %3905 = vmatpush.bf16.msra.mxu0 %v2877
    %3906 = vmatpush.bf16.msra.mxu0 %v2869
    %3907 = vmatpush.bf16.msra.mxu0 %v2861
    %3908 = vmatpush.bf16.msra.mxu0 %v2853
    %3909 = vmatpush.bf16.msra.mxu0 %v2845
    %3910 = vmatmul.bf16.gmra.mxu0 %v390
    %v3911 = vpop.f32.mrf.mxu0
    %v3912 = vadd.f32 %v3898, %v3911
    %v3913 = vpop.f32.mrf.mxu0
    %v3914 = vadd.f32 %v3900, %v3913
    %3915 = vdwg.mxu0
    %3916 = vmatpush.bf16.msra.mxu0 %v2965
    %3917 = vmatpush.bf16.msra.mxu0 %v2957
    %3918 = vmatpush.bf16.msra.mxu0 %v2949
    %3919 = vmatpush.bf16.msra.mxu0 %v2941
    %3920 = vmatpush.bf16.msra.mxu0 %v2933
    %3921 = vmatpush.bf16.msra.mxu0 %v2925
    %3922 = vmatpush.bf16.msra.mxu0 %v2917
    %3923 = vmatpush.bf16.msra.mxu0 %v2909
    %3924 = vmatmul.bf16.gmra.mxu0 %v391
    %v3925 = vpop.f32.mrf.mxu0
    %v3926 = vadd.f32 %v3912, %v3925
    %v3927 = vpop.f32.mrf.mxu0
    %v3928 = vadd.f32 %v3914, %v3927
    %3929 = vdwg.mxu0
    %3930 = vmatpush.bf16.msra.mxu0 %v2518
    %3931 = vmatpush.bf16.msra.mxu0 %v2510
    %3932 = vmatpush.bf16.msra.mxu0 %v2502
    %3933 = vmatpush.bf16.msra.mxu0 %v2494
    %3934 = vmatpush.bf16.msra.mxu0 %v2486
    %3935 = vmatpush.bf16.msra.mxu0 %v2478
    %3936 = vmatpush.bf16.msra.mxu0 %v2470
    %3937 = vmatpush.bf16.msra.mxu0 %v2462
    %3938 = vmatmul.bf16.gmra.mxu0 %v384
    %v3939 = vpop.f32.mrf.mxu0
    %v3940 = vadd.f32 %v910, %v3939
    %v3941 = vpop.f32.mrf.mxu0
    %v3942 = vadd.f32 %v910, %v3941
    %3943 = vdwg.mxu0
    %3944 = vmatpush.bf16.msra.mxu0 %v2582
    %3945 = vmatpush.bf16.msra.mxu0 %v2574
    %3946 = vmatpush.bf16.msra.mxu0 %v2566
    %3947 = vmatpush.bf16.msra.mxu0 %v2558
    %3948 = vmatpush.bf16.msra.mxu0 %v2550
    %3949 = vmatpush.bf16.msra.mxu0 %v2542
    %3950 = vmatpush.bf16.msra.mxu0 %v2534
    %3951 = vmatpush.bf16.msra.mxu0 %v2526
    %3952 = vmatmul.bf16.gmra.mxu0 %v385
    %v3953 = vpop.f32.mrf.mxu0
    %v3954 = vadd.f32 %v3940, %v3953
    %v3955 = vpop.f32.mrf.mxu0
    %v3956 = vadd.f32 %v3942, %v3955
    %3957 = vdwg.mxu0
    %3958 = vmatpush.bf16.msra.mxu0 %v2646
    %3959 = vmatpush.bf16.msra.mxu0 %v2638
    %3960 = vmatpush.bf16.msra.mxu0 %v2630
    %3961 = vmatpush.bf16.msra.mxu0 %v2622
    %3962 = vmatpush.bf16.msra.mxu0 %v2614
    %3963 = vmatpush.bf16.msra.mxu0 %v2606
    %3964 = vmatpush.bf16.msra.mxu0 %v2598
    %3965 = vmatpush.bf16.msra.mxu0 %v2590
    %3966 = vmatmul.bf16.gmra.mxu0 %v386
    %v3967 = vpop.f32.mrf.mxu0
    %v3968 = vadd.f32 %v3954, %v3967
    %v3969 = vpop.f32.mrf.mxu0
    %v3970 = vadd.f32 %v3956, %v3969
    %3971 = vdwg.mxu0
    %3972 = vmatpush.bf16.msra.mxu0 %v2710
    %3973 = vmatpush.bf16.msra.mxu0 %v2702
    %3974 = vmatpush.bf16.msra.mxu0 %v2694
    %3975 = vmatpush.bf16.msra.mxu0 %v2686
    %3976 = vmatpush.bf16.msra.mxu0 %v2678
    %3977 = vmatpush.bf16.msra.mxu0 %v2670
    %3978 = vmatpush.bf16.msra.mxu0 %v2662
    %3979 = vmatpush.bf16.msra.mxu0 %v2654
    %3980 = vmatmul.bf16.gmra.mxu0 %v387
    %v3981 = vpop.f32.mrf.mxu0
    %v3982 = vadd.f32 %v3968, %v3981
    %v3983 = vpop.f32.mrf.mxu0
    %v3984 = vadd.f32 %v3970, %v3983
    %3985 = vdwg.mxu0
    %3986 = vmatpush.bf16.msra.mxu0 %v2774
    %3987 = vmatpush.bf16.msra.mxu0 %v2766
    %3988 = vmatpush.bf16.msra.mxu0 %v2758
    %3989 = vmatpush.bf16.msra.mxu0 %v2750
    %3990 = vmatpush.bf16.msra.mxu0 %v2742
    %3991 = vmatpush.bf16.msra.mxu0 %v2734
    %3992 = vmatpush.bf16.msra.mxu0 %v2726
    %3993 = vmatpush.bf16.msra.mxu0 %v2718
    %3994 = vmatmul.bf16.gmra.mxu0 %v388
    %v3995 = vpop.f32.mrf.mxu0
    %v3996 = vadd.f32 %v3982, %v3995
    %v3997 = vpop.f32.mrf.mxu0
    %v3998 = vadd.f32 %v3984, %v3997
    %3999 = vdwg.mxu0
    %4000 = vmatpush.bf16.msra.mxu0 %v2838
    %4001 = vmatpush.bf16.msra.mxu0 %v2830
    %4002 = vmatpush.bf16.msra.mxu0 %v2822
    %4003 = vmatpush.bf16.msra.mxu0 %v2814
    %4004 = vmatpush.bf16.msra.mxu0 %v2806
    %4005 = vmatpush.bf16.msra.mxu0 %v2798
    %4006 = vmatpush.bf16.msra.mxu0 %v2790
    %4007 = vmatpush.bf16.msra.mxu0 %v2782
    %4008 = vmatmul.bf16.gmra.mxu0 %v389
    %v4009 = vpop.f32.mrf.mxu0
    %v4010 = vadd.f32 %v3996, %v4009
    %v4011 = vpop.f32.mrf.mxu0
    %v4012 = vadd.f32 %v3998, %v4011
    %4013 = vdwg.mxu0
    %4014 = vmatpush.bf16.msra.mxu0 %v2902
    %4015 = vmatpush.bf16.msra.mxu0 %v2894
    %4016 = vmatpush.bf16.msra.mxu0 %v2886
    %4017 = vmatpush.bf16.msra.mxu0 %v2878
    %4018 = vmatpush.bf16.msra.mxu0 %v2870
    %4019 = vmatpush.bf16.msra.mxu0 %v2862
    %4020 = vmatpush.bf16.msra.mxu0 %v2854
    %4021 = vmatpush.bf16.msra.mxu0 %v2846
    %4022 = vmatmul.bf16.gmra.mxu0 %v390
    %v4023 = vpop.f32.mrf.mxu0
    %v4024 = vadd.f32 %v4010, %v4023
    %v4025 = vpop.f32.mrf.mxu0
    %v4026 = vadd.f32 %v4012, %v4025
    %4027 = vdwg.mxu0
    %4028 = vmatpush.bf16.msra.mxu0 %v2966
    %4029 = vmatpush.bf16.msra.mxu0 %v2958
    %4030 = vmatpush.bf16.msra.mxu0 %v2950
    %4031 = vmatpush.bf16.msra.mxu0 %v2942
    %4032 = vmatpush.bf16.msra.mxu0 %v2934
    %4033 = vmatpush.bf16.msra.mxu0 %v2926
    %4034 = vmatpush.bf16.msra.mxu0 %v2918
    %4035 = vmatpush.bf16.msra.mxu0 %v2910
    %4036 = vmatmul.bf16.gmra.mxu0 %v391
    %v4037 = vpop.f32.mrf.mxu0
    %v4038 = vadd.f32 %v4024, %v4037
    %v4039 = vpop.f32.mrf.mxu0
    %v4040 = vadd.f32 %v4026, %v4039
    %4041 = vdwg.mxu0
    %4042 = vmatpush.bf16.msra.mxu0 %v2519
    %4043 = vmatpush.bf16.msra.mxu0 %v2511
    %4044 = vmatpush.bf16.msra.mxu0 %v2503
    %4045 = vmatpush.bf16.msra.mxu0 %v2495
    %4046 = vmatpush.bf16.msra.mxu0 %v2487
    %4047 = vmatpush.bf16.msra.mxu0 %v2479
    %4048 = vmatpush.bf16.msra.mxu0 %v2471
    %4049 = vmatpush.bf16.msra.mxu0 %v2463
    %4050 = vmatmul.bf16.gmra.mxu0 %v384
    %v4051 = vpop.f32.mrf.mxu0
    %v4052 = vadd.f32 %v911, %v4051
    %v4053 = vpop.f32.mrf.mxu0
    %v4054 = vadd.f32 %v911, %v4053
    %4055 = vdwg.mxu0
    %4056 = vmatpush.bf16.msra.mxu0 %v2583
    %4057 = vmatpush.bf16.msra.mxu0 %v2575
    %4058 = vmatpush.bf16.msra.mxu0 %v2567
    %4059 = vmatpush.bf16.msra.mxu0 %v2559
    %4060 = vmatpush.bf16.msra.mxu0 %v2551
    %4061 = vmatpush.bf16.msra.mxu0 %v2543
    %4062 = vmatpush.bf16.msra.mxu0 %v2535
    %4063 = vmatpush.bf16.msra.mxu0 %v2527
    %4064 = vmatmul.bf16.gmra.mxu0 %v385
    %v4065 = vpop.f32.mrf.mxu0
    %v4066 = vadd.f32 %v4052, %v4065
    %v4067 = vpop.f32.mrf.mxu0
    %v4068 = vadd.f32 %v4054, %v4067
    %4069 = vdwg.mxu0
    %4070 = vmatpush.bf16.msra.mxu0 %v2647
    %4071 = vmatpush.bf16.msra.mxu0 %v2639
    %4072 = vmatpush.bf16.msra.mxu0 %v2631
    %4073 = vmatpush.bf16.msra.mxu0 %v2623
    %4074 = vmatpush.bf16.msra.mxu0 %v2615
    %4075 = vmatpush.bf16.msra.mxu0 %v2607
    %4076 = vmatpush.bf16.msra.mxu0 %v2599
    %4077 = vmatpush.bf16.msra.mxu0 %v2591
    %4078 = vmatmul.bf16.gmra.mxu0 %v386
    %v4079 = vpop.f32.mrf.mxu0
    %v4080 = vadd.f32 %v4066, %v4079
    %v4081 = vpop.f32.mrf.mxu0
    %v4082 = vadd.f32 %v4068, %v4081
    %4083 = vdwg.mxu0
    %4084 = vmatpush.bf16.msra.mxu0 %v2711
    %4085 = vmatpush.bf16.msra.mxu0 %v2703
    %4086 = vmatpush.bf16.msra.mxu0 %v2695
    %4087 = vmatpush.bf16.msra.mxu0 %v2687
    %4088 = vmatpush.bf16.msra.mxu0 %v2679
    %4089 = vmatpush.bf16.msra.mxu0 %v2671
    %4090 = vmatpush.bf16.msra.mxu0 %v2663
    %4091 = vmatpush.bf16.msra.mxu0 %v2655
    %4092 = vmatmul.bf16.gmra.mxu0 %v387
    %v4093 = vpop.f32.mrf.mxu0
    %v4094 = vadd.f32 %v4080, %v4093
    %v4095 = vpop.f32.mrf.mxu0
    %v4096 = vadd.f32 %v4082, %v4095
    %4097 = vdwg.mxu0
    %4098 = vmatpush.bf16.msra.mxu0 %v2775
    %4099 = vmatpush.bf16.msra.mxu0 %v2767
    %4100 = vmatpush.bf16.msra.mxu0 %v2759
    %4101 = vmatpush.bf16.msra.mxu0 %v2751
    %4102 = vmatpush.bf16.msra.mxu0 %v2743
    %4103 = vmatpush.bf16.msra.mxu0 %v2735
    %4104 = vmatpush.bf16.msra.mxu0 %v2727
    %4105 = vmatpush.bf16.msra.mxu0 %v2719
    %4106 = vmatmul.bf16.gmra.mxu0 %v388
    %v4107 = vpop.f32.mrf.mxu0
    %v4108 = vadd.f32 %v4094, %v4107
    %v4109 = vpop.f32.mrf.mxu0
    %v4110 = vadd.f32 %v4096, %v4109
    %4111 = vdwg.mxu0
    %4112 = vmatpush.bf16.msra.mxu0 %v2839
    %4113 = vmatpush.bf16.msra.mxu0 %v2831
    %4114 = vmatpush.bf16.msra.mxu0 %v2823
    %4115 = vmatpush.bf16.msra.mxu0 %v2815
    %4116 = vmatpush.bf16.msra.mxu0 %v2807
    %4117 = vmatpush.bf16.msra.mxu0 %v2799
    %4118 = vmatpush.bf16.msra.mxu0 %v2791
    %4119 = vmatpush.bf16.msra.mxu0 %v2783
    %4120 = vmatmul.bf16.gmra.mxu0 %v389
    %v4121 = vpop.f32.mrf.mxu0
    %v4122 = vadd.f32 %v4108, %v4121
    %v4123 = vpop.f32.mrf.mxu0
    %v4124 = vadd.f32 %v4110, %v4123
    %4125 = vdwg.mxu0
    %4126 = vmatpush.bf16.msra.mxu0 %v2903
    %4127 = vmatpush.bf16.msra.mxu0 %v2895
    %4128 = vmatpush.bf16.msra.mxu0 %v2887
    %4129 = vmatpush.bf16.msra.mxu0 %v2879
    %4130 = vmatpush.bf16.msra.mxu0 %v2871
    %4131 = vmatpush.bf16.msra.mxu0 %v2863
    %4132 = vmatpush.bf16.msra.mxu0 %v2855
    %4133 = vmatpush.bf16.msra.mxu0 %v2847
    %4134 = vmatmul.bf16.gmra.mxu0 %v390
    %v4135 = vpop.f32.mrf.mxu0
    %v4136 = vadd.f32 %v4122, %v4135
    %v4137 = vpop.f32.mrf.mxu0
    %v4138 = vadd.f32 %v4124, %v4137
    %4139 = vdwg.mxu0
    %4140 = vmatpush.bf16.msra.mxu0 %v2967
    %4141 = vmatpush.bf16.msra.mxu0 %v2959
    %4142 = vmatpush.bf16.msra.mxu0 %v2951
    %4143 = vmatpush.bf16.msra.mxu0 %v2943
    %4144 = vmatpush.bf16.msra.mxu0 %v2935
    %4145 = vmatpush.bf16.msra.mxu0 %v2927
    %4146 = vmatpush.bf16.msra.mxu0 %v2919
    %4147 = vmatpush.bf16.msra.mxu0 %v2911
    %4148 = vmatmul.bf16.gmra.mxu0 %v391
    %v4149 = vpop.f32.mrf.mxu0
    %v4150 = vadd.f32 %v4136, %v4149
    %v4151 = vpop.f32.mrf.mxu0
    %v4152 = vadd.f32 %v4138, %v4151
    %4153 = vdwg.mxu0
    %4154 = vmatpush.bf16.msra.mxu0 %v2520
    %4155 = vmatpush.bf16.msra.mxu0 %v2512
    %4156 = vmatpush.bf16.msra.mxu0 %v2504
    %4157 = vmatpush.bf16.msra.mxu0 %v2496
    %4158 = vmatpush.bf16.msra.mxu0 %v2488
    %4159 = vmatpush.bf16.msra.mxu0 %v2480
    %4160 = vmatpush.bf16.msra.mxu0 %v2472
    %4161 = vmatpush.bf16.msra.mxu0 %v2464
    %4162 = vmatmul.bf16.gmra.mxu0 %v384
    %v4163 = vpop.f32.mrf.mxu0
    %v4164 = vadd.f32 %v912, %v4163
    %v4165 = vpop.f32.mrf.mxu0
    %v4166 = vadd.f32 %v912, %v4165
    %4167 = vdwg.mxu0
    %4168 = vmatpush.bf16.msra.mxu0 %v2584
    %4169 = vmatpush.bf16.msra.mxu0 %v2576
    %4170 = vmatpush.bf16.msra.mxu0 %v2568
    %4171 = vmatpush.bf16.msra.mxu0 %v2560
    %4172 = vmatpush.bf16.msra.mxu0 %v2552
    %4173 = vmatpush.bf16.msra.mxu0 %v2544
    %4174 = vmatpush.bf16.msra.mxu0 %v2536
    %4175 = vmatpush.bf16.msra.mxu0 %v2528
    %4176 = vmatmul.bf16.gmra.mxu0 %v385
    %v4177 = vpop.f32.mrf.mxu0
    %v4178 = vadd.f32 %v4164, %v4177
    %v4179 = vpop.f32.mrf.mxu0
    %v4180 = vadd.f32 %v4166, %v4179
    %4181 = vdwg.mxu0
    %4182 = vmatpush.bf16.msra.mxu0 %v2648
    %4183 = vmatpush.bf16.msra.mxu0 %v2640
    %4184 = vmatpush.bf16.msra.mxu0 %v2632
    %4185 = vmatpush.bf16.msra.mxu0 %v2624
    %4186 = vmatpush.bf16.msra.mxu0 %v2616
    %4187 = vmatpush.bf16.msra.mxu0 %v2608
    %4188 = vmatpush.bf16.msra.mxu0 %v2600
    %4189 = vmatpush.bf16.msra.mxu0 %v2592
    %4190 = vmatmul.bf16.gmra.mxu0 %v386
    %v4191 = vpop.f32.mrf.mxu0
    %v4192 = vadd.f32 %v4178, %v4191
    %v4193 = vpop.f32.mrf.mxu0
    %v4194 = vadd.f32 %v4180, %v4193
    %4195 = vdwg.mxu0
    %4196 = vmatpush.bf16.msra.mxu0 %v2712
    %4197 = vmatpush.bf16.msra.mxu0 %v2704
    %4198 = vmatpush.bf16.msra.mxu0 %v2696
    %4199 = vmatpush.bf16.msra.mxu0 %v2688
    %4200 = vmatpush.bf16.msra.mxu0 %v2680
    %4201 = vmatpush.bf16.msra.mxu0 %v2672
    %4202 = vmatpush.bf16.msra.mxu0 %v2664
    %4203 = vmatpush.bf16.msra.mxu0 %v2656
    %4204 = vmatmul.bf16.gmra.mxu0 %v387
    %v4205 = vpop.f32.mrf.mxu0
    %v4206 = vadd.f32 %v4192, %v4205
    %v4207 = vpop.f32.mrf.mxu0
    %v4208 = vadd.f32 %v4194, %v4207
    %4209 = vdwg.mxu0
    %4210 = vmatpush.bf16.msra.mxu0 %v2776
    %4211 = vmatpush.bf16.msra.mxu0 %v2768
    %4212 = vmatpush.bf16.msra.mxu0 %v2760
    %4213 = vmatpush.bf16.msra.mxu0 %v2752
    %4214 = vmatpush.bf16.msra.mxu0 %v2744
    %4215 = vmatpush.bf16.msra.mxu0 %v2736
    %4216 = vmatpush.bf16.msra.mxu0 %v2728
    %4217 = vmatpush.bf16.msra.mxu0 %v2720
    %4218 = vmatmul.bf16.gmra.mxu0 %v388
    %v4219 = vpop.f32.mrf.mxu0
    %v4220 = vadd.f32 %v4206, %v4219
    %v4221 = vpop.f32.mrf.mxu0
    %v4222 = vadd.f32 %v4208, %v4221
    %4223 = vdwg.mxu0
    %4224 = vmatpush.bf16.msra.mxu0 %v2840
    %4225 = vmatpush.bf16.msra.mxu0 %v2832
    %4226 = vmatpush.bf16.msra.mxu0 %v2824
    %4227 = vmatpush.bf16.msra.mxu0 %v2816
    %4228 = vmatpush.bf16.msra.mxu0 %v2808
    %4229 = vmatpush.bf16.msra.mxu0 %v2800
    %4230 = vmatpush.bf16.msra.mxu0 %v2792
    %4231 = vmatpush.bf16.msra.mxu0 %v2784
    %4232 = vmatmul.bf16.gmra.mxu0 %v389
    %v4233 = vpop.f32.mrf.mxu0
    %v4234 = vadd.f32 %v4220, %v4233
    %v4235 = vpop.f32.mrf.mxu0
    %v4236 = vadd.f32 %v4222, %v4235
    %4237 = vdwg.mxu0
    %4238 = vmatpush.bf16.msra.mxu0 %v2904
    %4239 = vmatpush.bf16.msra.mxu0 %v2896
    %4240 = vmatpush.bf16.msra.mxu0 %v2888
    %4241 = vmatpush.bf16.msra.mxu0 %v2880
    %4242 = vmatpush.bf16.msra.mxu0 %v2872
    %4243 = vmatpush.bf16.msra.mxu0 %v2864
    %4244 = vmatpush.bf16.msra.mxu0 %v2856
    %4245 = vmatpush.bf16.msra.mxu0 %v2848
    %4246 = vmatmul.bf16.gmra.mxu0 %v390
    %v4247 = vpop.f32.mrf.mxu0
    %v4248 = vadd.f32 %v4234, %v4247
    %v4249 = vpop.f32.mrf.mxu0
    %v4250 = vadd.f32 %v4236, %v4249
    %4251 = vdwg.mxu0
    %4252 = vmatpush.bf16.msra.mxu0 %v2968
    %4253 = vmatpush.bf16.msra.mxu0 %v2960
    %4254 = vmatpush.bf16.msra.mxu0 %v2952
    %4255 = vmatpush.bf16.msra.mxu0 %v2944
    %4256 = vmatpush.bf16.msra.mxu0 %v2936
    %4257 = vmatpush.bf16.msra.mxu0 %v2928
    %4258 = vmatpush.bf16.msra.mxu0 %v2920
    %4259 = vmatpush.bf16.msra.mxu0 %v2912
    %4260 = vmatmul.bf16.gmra.mxu0 %v391
    %v4261 = vpop.f32.mrf.mxu0
    %v4262 = vadd.f32 %v4248, %v4261
    %v4263 = vpop.f32.mrf.mxu0
    %v4264 = vadd.f32 %v4250, %v4263
    %4265 = vdwg.mxu0
    %4266 = vmatpush.bf16.msra.mxu0 %v2521
    %4267 = vmatpush.bf16.msra.mxu0 %v2513
    %4268 = vmatpush.bf16.msra.mxu0 %v2505
    %4269 = vmatpush.bf16.msra.mxu0 %v2497
    %4270 = vmatpush.bf16.msra.mxu0 %v2489
    %4271 = vmatpush.bf16.msra.mxu0 %v2481
    %4272 = vmatpush.bf16.msra.mxu0 %v2473
    %4273 = vmatpush.bf16.msra.mxu0 %v2465
    %4274 = vmatmul.bf16.gmra.mxu0 %v384
    %v4275 = vpop.f32.mrf.mxu0
    %v4276 = vadd.f32 %v913, %v4275
    %v4277 = vpop.f32.mrf.mxu0
    %v4278 = vadd.f32 %v913, %v4277
    %4279 = vdwg.mxu0
    %4280 = vmatpush.bf16.msra.mxu0 %v2585
    %4281 = vmatpush.bf16.msra.mxu0 %v2577
    %4282 = vmatpush.bf16.msra.mxu0 %v2569
    %4283 = vmatpush.bf16.msra.mxu0 %v2561
    %4284 = vmatpush.bf16.msra.mxu0 %v2553
    %4285 = vmatpush.bf16.msra.mxu0 %v2545
    %4286 = vmatpush.bf16.msra.mxu0 %v2537
    %4287 = vmatpush.bf16.msra.mxu0 %v2529
    %4288 = vmatmul.bf16.gmra.mxu0 %v385
    %v4289 = vpop.f32.mrf.mxu0
    %v4290 = vadd.f32 %v4276, %v4289
    %v4291 = vpop.f32.mrf.mxu0
    %v4292 = vadd.f32 %v4278, %v4291
    %4293 = vdwg.mxu0
    %4294 = vmatpush.bf16.msra.mxu0 %v2649
    %4295 = vmatpush.bf16.msra.mxu0 %v2641
    %4296 = vmatpush.bf16.msra.mxu0 %v2633
    %4297 = vmatpush.bf16.msra.mxu0 %v2625
    %4298 = vmatpush.bf16.msra.mxu0 %v2617
    %4299 = vmatpush.bf16.msra.mxu0 %v2609
    %4300 = vmatpush.bf16.msra.mxu0 %v2601
    %4301 = vmatpush.bf16.msra.mxu0 %v2593
    %4302 = vmatmul.bf16.gmra.mxu0 %v386
    %v4303 = vpop.f32.mrf.mxu0
    %v4304 = vadd.f32 %v4290, %v4303
    %v4305 = vpop.f32.mrf.mxu0
    %v4306 = vadd.f32 %v4292, %v4305
    %4307 = vdwg.mxu0
    %4308 = vmatpush.bf16.msra.mxu0 %v2713
    %4309 = vmatpush.bf16.msra.mxu0 %v2705
    %4310 = vmatpush.bf16.msra.mxu0 %v2697
    %4311 = vmatpush.bf16.msra.mxu0 %v2689
    %4312 = vmatpush.bf16.msra.mxu0 %v2681
    %4313 = vmatpush.bf16.msra.mxu0 %v2673
    %4314 = vmatpush.bf16.msra.mxu0 %v2665
    %4315 = vmatpush.bf16.msra.mxu0 %v2657
    %4316 = vmatmul.bf16.gmra.mxu0 %v387
    %v4317 = vpop.f32.mrf.mxu0
    %v4318 = vadd.f32 %v4304, %v4317
    %v4319 = vpop.f32.mrf.mxu0
    %v4320 = vadd.f32 %v4306, %v4319
    %4321 = vdwg.mxu0
    %4322 = vmatpush.bf16.msra.mxu0 %v2777
    %4323 = vmatpush.bf16.msra.mxu0 %v2769
    %4324 = vmatpush.bf16.msra.mxu0 %v2761
    %4325 = vmatpush.bf16.msra.mxu0 %v2753
    %4326 = vmatpush.bf16.msra.mxu0 %v2745
    %4327 = vmatpush.bf16.msra.mxu0 %v2737
    %4328 = vmatpush.bf16.msra.mxu0 %v2729
    %4329 = vmatpush.bf16.msra.mxu0 %v2721
    %4330 = vmatmul.bf16.gmra.mxu0 %v388
    %v4331 = vpop.f32.mrf.mxu0
    %v4332 = vadd.f32 %v4318, %v4331
    %v4333 = vpop.f32.mrf.mxu0
    %v4334 = vadd.f32 %v4320, %v4333
    %4335 = vdwg.mxu0
    %4336 = vmatpush.bf16.msra.mxu0 %v2841
    %4337 = vmatpush.bf16.msra.mxu0 %v2833
    %4338 = vmatpush.bf16.msra.mxu0 %v2825
    %4339 = vmatpush.bf16.msra.mxu0 %v2817
    %4340 = vmatpush.bf16.msra.mxu0 %v2809
    %4341 = vmatpush.bf16.msra.mxu0 %v2801
    %4342 = vmatpush.bf16.msra.mxu0 %v2793
    %4343 = vmatpush.bf16.msra.mxu0 %v2785
    %4344 = vmatmul.bf16.gmra.mxu0 %v389
    %v4345 = vpop.f32.mrf.mxu0
    %v4346 = vadd.f32 %v4332, %v4345
    %v4347 = vpop.f32.mrf.mxu0
    %v4348 = vadd.f32 %v4334, %v4347
    %4349 = vdwg.mxu0
    %4350 = vmatpush.bf16.msra.mxu0 %v2905
    %4351 = vmatpush.bf16.msra.mxu0 %v2897
    %4352 = vmatpush.bf16.msra.mxu0 %v2889
    %4353 = vmatpush.bf16.msra.mxu0 %v2881
    %4354 = vmatpush.bf16.msra.mxu0 %v2873
    %4355 = vmatpush.bf16.msra.mxu0 %v2865
    %4356 = vmatpush.bf16.msra.mxu0 %v2857
    %4357 = vmatpush.bf16.msra.mxu0 %v2849
    %4358 = vmatmul.bf16.gmra.mxu0 %v390
    %v4359 = vpop.f32.mrf.mxu0
    %v4360 = vadd.f32 %v4346, %v4359
    %v4361 = vpop.f32.mrf.mxu0
    %v4362 = vadd.f32 %v4348, %v4361
    %4363 = vdwg.mxu0
    %4364 = vmatpush.bf16.msra.mxu0 %v2969
    %4365 = vmatpush.bf16.msra.mxu0 %v2961
    %4366 = vmatpush.bf16.msra.mxu0 %v2953
    %4367 = vmatpush.bf16.msra.mxu0 %v2945
    %4368 = vmatpush.bf16.msra.mxu0 %v2937
    %4369 = vmatpush.bf16.msra.mxu0 %v2929
    %4370 = vmatpush.bf16.msra.mxu0 %v2921
    %4371 = vmatpush.bf16.msra.mxu0 %v2913
    %4372 = vmatmul.bf16.gmra.mxu0 %v391
    %v4373 = vpop.f32.mrf.mxu0
    %v4374 = vadd.f32 %v4360, %v4373
    %v4375 = vpop.f32.mrf.mxu0
    %v4376 = vadd.f32 %v4362, %v4375
    %4377 = vdwg.mxu0
    %v4378 = vmax.f32 %v3590, 0.0
    %v4379 = vmax.f32 %v3702, 0.0
    %v4380 = vmax.f32 %v3814, 0.0
    %v4381 = vmax.f32 %v3926, 0.0
    %v4382 = vmax.f32 %v4038, 0.0
    %v4383 = vmax.f32 %v4150, 0.0
    %v4384 = vmax.f32 %v4262, 0.0
    %v4385 = vmax.f32 %v4374, 0.0
    %v4386 = vmax.f32 %v3592, 0.0
    %v4387 = vmax.f32 %v3704, 0.0
    %v4388 = vmax.f32 %v3816, 0.0
    %v4389 = vmax.f32 %v3928, 0.0
    %v4390 = vmax.f32 %v4040, 0.0
    %v4391 = vmax.f32 %v4152, 0.0
    %v4392 = vmax.f32 %v4264, 0.0
    %v4393 = vmax.f32 %v4376, 0.0
    %v4394 = vpack.c.bf16 %v4386, %v4378
    %v4395 = vpack.c.bf16 %v4387, %v4379
    %v4396 = vpack.c.bf16 %v4388, %v4380
    %v4397 = vpack.c.bf16 %v4389, %v4381
    %v4398 = vpack.c.bf16 %v4390, %v4382
    %v4399 = vpack.c.bf16 %v4391, %v4383
    %v4400 = vpack.c.bf16 %v4392, %v4384
    %v4401 = vpack.c.bf16 %v4393, %v4385
    %v4402 = vld [vmem:[#allocation11] sm:$0xf]
    %v4403 = vld [vmem:[#allocation11 + $0x4] sm:$0xf]
    %v4404 = vld [vmem:[#allocation11 + $0x8] sm:$0xf]
    %v4405 = vld [vmem:[#allocation11 + $0xc] sm:$0xf]
    %v4406 = vld [vmem:[#allocation11 + $0x10] sm:$0xf]
    %v4407 = vld [vmem:[#allocation11 + $0x14] sm:$0xf]
    %v4408 = vld [vmem:[#allocation11 + $0x18] sm:$0xf]
    %v4409 = vld [vmem:[#allocation11 + $0x1c] sm:$0xf]
    %v4410 = vld [vmem:[#allocation11 + $0x20] sm:$0xf]
    %v4411 = vld [vmem:[#allocation11 + $0x24] sm:$0xf]
    %v4412 = vld [vmem:[#allocation11 + $0x28] sm:$0xf]
    %v4413 = vld [vmem:[#allocation11 + $0x2c] sm:$0xf]
    %v4414 = vld [vmem:[#allocation11 + $0x30] sm:$0xf]
    %v4415 = vld [vmem:[#allocation11 + $0x34] sm:$0xf]
    %v4416 = vld [vmem:[#allocation11 + $0x38] sm:$0xf]
    %v4417 = vld [vmem:[#allocation11 + $0x3c] sm:$0xf]
    %v4418 = vld [vmem:[#allocation11 + $0x40] sm:$0xf]
    %v4419 = vld [vmem:[#allocation11 + $0x44] sm:$0xf]
    %v4420 = vld [vmem:[#allocation11 + $0x48] sm:$0xf]
    %v4421 = vld [vmem:[#allocation11 + $0x4c] sm:$0xf]
    %v4422 = vld [vmem:[#allocation11 + $0x50] sm:$0xf]
    %v4423 = vld [vmem:[#allocation11 + $0x54] sm:$0xf]
    %v4424 = vld [vmem:[#allocation11 + $0x58] sm:$0xf]
    %v4425 = vld [vmem:[#allocation11 + $0x5c] sm:$0xf]
    %v4426 = vld [vmem:[#allocation11 + $0x60] sm:$0xf]
    %v4427 = vld [vmem:[#allocation11 + $0x64] sm:$0xf]
    %v4428 = vld [vmem:[#allocation11 + $0x68] sm:$0xf]
    %v4429 = vld [vmem:[#allocation11 + $0x6c] sm:$0xf]
    %v4430 = vld [vmem:[#allocation11 + $0x70] sm:$0xf]
    %v4431 = vld [vmem:[#allocation11 + $0x74] sm:$0xf]
    %v4432 = vld [vmem:[#allocation11 + $0x78] sm:$0xf]
    %v4433 = vld [vmem:[#allocation11 + $0x7c] sm:$0xf]
    %v4434 = vld [vmem:[#allocation11 + $0x80] sm:$0xf]
    %v4435 = vld [vmem:[#allocation11 + $0x84] sm:$0xf]
    %v4436 = vld [vmem:[#allocation11 + $0x88] sm:$0xf]
    %v4437 = vld [vmem:[#allocation11 + $0x8c] sm:$0xf]
    %v4438 = vld [vmem:[#allocation11 + $0x90] sm:$0xf]
    %v4439 = vld [vmem:[#allocation11 + $0x94] sm:$0xf]
    %v4440 = vld [vmem:[#allocation11 + $0x98] sm:$0xf]
    %v4441 = vld [vmem:[#allocation11 + $0x9c] sm:$0xf]
    %v4442 = vld [vmem:[#allocation11 + $0xa0] sm:$0xf]
    %v4443 = vld [vmem:[#allocation11 + $0xa4] sm:$0xf]
    %v4444 = vld [vmem:[#allocation11 + $0xa8] sm:$0xf]
    %v4445 = vld [vmem:[#allocation11 + $0xac] sm:$0xf]
    %v4446 = vld [vmem:[#allocation11 + $0xb0] sm:$0xf]
    %v4447 = vld [vmem:[#allocation11 + $0xb4] sm:$0xf]
    %v4448 = vld [vmem:[#allocation11 + $0xb8] sm:$0xf]
    %v4449 = vld [vmem:[#allocation11 + $0xbc] sm:$0xf]
    %v4450 = vld [vmem:[#allocation11 + $0xc0] sm:$0xf]
    %v4451 = vld [vmem:[#allocation11 + $0xc4] sm:$0xf]
    %v4452 = vld [vmem:[#allocation11 + $0xc8] sm:$0xf]
    %v4453 = vld [vmem:[#allocation11 + $0xcc] sm:$0xf]
    %v4454 = vld [vmem:[#allocation11 + $0xd0] sm:$0xf]
    %v4455 = vld [vmem:[#allocation11 + $0xd4] sm:$0xf]
    %v4456 = vld [vmem:[#allocation11 + $0xd8] sm:$0xf]
    %v4457 = vld [vmem:[#allocation11 + $0xdc] sm:$0xf]
    %v4458 = vld [vmem:[#allocation11 + $0xe0] sm:$0xf]
    %v4459 = vld [vmem:[#allocation11 + $0xe4] sm:$0xf]
    %v4460 = vld [vmem:[#allocation11 + $0xe8] sm:$0xf]
    %v4461 = vld [vmem:[#allocation11 + $0xec] sm:$0xf]
    %v4462 = vld [vmem:[#allocation11 + $0xf0] sm:$0xf]
    %v4463 = vld [vmem:[#allocation11 + $0xf4] sm:$0xf]
    %v4464 = vld [vmem:[#allocation11 + $0xf8] sm:$0xf]
    %v4465 = vld [vmem:[#allocation11 + $0xfc] sm:$0xf]
    %v4466 = vld [vmem:[#allocation11 + $0x100] sm:$0xf]
    %v4467 = vld [vmem:[#allocation11 + $0x104] sm:$0xf]
    %v4468 = vld [vmem:[#allocation11 + $0x108] sm:$0xf]
    %v4469 = vld [vmem:[#allocation11 + $0x10c] sm:$0xf]
    %v4470 = vld [vmem:[#allocation11 + $0x110] sm:$0xf]
    %v4471 = vld [vmem:[#allocation11 + $0x114] sm:$0xf]
    %v4472 = vld [vmem:[#allocation11 + $0x118] sm:$0xf]
    %v4473 = vld [vmem:[#allocation11 + $0x11c] sm:$0xf]
    %v4474 = vld [vmem:[#allocation11 + $0x120] sm:$0xf]
    %v4475 = vld [vmem:[#allocation11 + $0x124] sm:$0xf]
    %v4476 = vld [vmem:[#allocation11 + $0x128] sm:$0xf]
    %v4477 = vld [vmem:[#allocation11 + $0x12c] sm:$0xf]
    %v4478 = vld [vmem:[#allocation11 + $0x130] sm:$0xf]
    %v4479 = vld [vmem:[#allocation11 + $0x134] sm:$0xf]
    %v4480 = vld [vmem:[#allocation11 + $0x138] sm:$0xf]
    %v4481 = vld [vmem:[#allocation11 + $0x13c] sm:$0xf]
    %v4482 = vld [vmem:[#allocation11 + $0x140] sm:$0xf]
    %v4483 = vld [vmem:[#allocation11 + $0x144] sm:$0xf]
    %v4484 = vld [vmem:[#allocation11 + $0x148] sm:$0xf]
    %v4485 = vld [vmem:[#allocation11 + $0x14c] sm:$0xf]
    %v4486 = vld [vmem:[#allocation11 + $0x150] sm:$0xf]
    %v4487 = vld [vmem:[#allocation11 + $0x154] sm:$0xf]
    %v4488 = vld [vmem:[#allocation11 + $0x158] sm:$0xf]
    %v4489 = vld [vmem:[#allocation11 + $0x15c] sm:$0xf]
    %v4490 = vld [vmem:[#allocation11 + $0x160] sm:$0xf]
    %v4491 = vld [vmem:[#allocation11 + $0x164] sm:$0xf]
    %v4492 = vld [vmem:[#allocation11 + $0x168] sm:$0xf]
    %v4493 = vld [vmem:[#allocation11 + $0x16c] sm:$0xf]
    %v4494 = vld [vmem:[#allocation11 + $0x170] sm:$0xf]
    %v4495 = vld [vmem:[#allocation11 + $0x174] sm:$0xf]
    %v4496 = vld [vmem:[#allocation11 + $0x178] sm:$0xf]
    %v4497 = vld [vmem:[#allocation11 + $0x17c] sm:$0xf]
    %v4498 = vld [vmem:[#allocation11 + $0x180] sm:$0xf]
    %v4499 = vld [vmem:[#allocation11 + $0x184] sm:$0xf]
    %v4500 = vld [vmem:[#allocation11 + $0x188] sm:$0xf]
    %v4501 = vld [vmem:[#allocation11 + $0x18c] sm:$0xf]
    %v4502 = vld [vmem:[#allocation11 + $0x190] sm:$0xf]
    %v4503 = vld [vmem:[#allocation11 + $0x194] sm:$0xf]
    %v4504 = vld [vmem:[#allocation11 + $0x198] sm:$0xf]
    %v4505 = vld [vmem:[#allocation11 + $0x19c] sm:$0xf]
    %v4506 = vld [vmem:[#allocation11 + $0x1a0] sm:$0xf]
    %v4507 = vld [vmem:[#allocation11 + $0x1a4] sm:$0xf]
    %v4508 = vld [vmem:[#allocation11 + $0x1a8] sm:$0xf]
    %v4509 = vld [vmem:[#allocation11 + $0x1ac] sm:$0xf]
    %v4510 = vld [vmem:[#allocation11 + $0x1b0] sm:$0xf]
    %v4511 = vld [vmem:[#allocation11 + $0x1b4] sm:$0xf]
    %v4512 = vld [vmem:[#allocation11 + $0x1b8] sm:$0xf]
    %v4513 = vld [vmem:[#allocation11 + $0x1bc] sm:$0xf]
    %v4514 = vld [vmem:[#allocation11 + $0x1c0] sm:$0xf]
    %v4515 = vld [vmem:[#allocation11 + $0x1c4] sm:$0xf]
    %v4516 = vld [vmem:[#allocation11 + $0x1c8] sm:$0xf]
    %v4517 = vld [vmem:[#allocation11 + $0x1cc] sm:$0xf]
    %v4518 = vld [vmem:[#allocation11 + $0x1d0] sm:$0xf]
    %v4519 = vld [vmem:[#allocation11 + $0x1d4] sm:$0xf]
    %v4520 = vld [vmem:[#allocation11 + $0x1d8] sm:$0xf]
    %v4521 = vld [vmem:[#allocation11 + $0x1dc] sm:$0xf]
    %v4522 = vld [vmem:[#allocation11 + $0x1e0] sm:$0xf]
    %v4523 = vld [vmem:[#allocation11 + $0x1e4] sm:$0xf]
    %v4524 = vld [vmem:[#allocation11 + $0x1e8] sm:$0xf]
    %v4525 = vld [vmem:[#allocation11 + $0x1ec] sm:$0xf]
    %v4526 = vld [vmem:[#allocation11 + $0x1f0] sm:$0xf]
    %v4527 = vld [vmem:[#allocation11 + $0x1f4] sm:$0xf]
    %v4528 = vld [vmem:[#allocation11 + $0x1f8] sm:$0xf]
    %v4529 = vld [vmem:[#allocation11 + $0x1fc] sm:$0xf]
    %v4530 = vld [vmem:[#allocation13] sm:$0x1]
    %v4532 = vperm.slane %v4530, 0
    %v4662 = vunpack.c.l.b16 %v4402
    %v4663 = vunpack.c.l.b16 %v4403
    %v4664 = vunpack.c.l.b16 %v4404
    %v4665 = vunpack.c.l.b16 %v4405
    %v4666 = vunpack.c.l.b16 %v4406
    %v4667 = vunpack.c.l.b16 %v4407
    %v4668 = vunpack.c.l.b16 %v4408
    %v4669 = vunpack.c.l.b16 %v4409
    %v4670 = vunpack.c.l.b16 %v4410
    %v4671 = vunpack.c.l.b16 %v4411
    %v4672 = vunpack.c.l.b16 %v4412
    %v4673 = vunpack.c.l.b16 %v4413
    %v4674 = vunpack.c.l.b16 %v4414
    %v4675 = vunpack.c.l.b16 %v4415
    %v4676 = vunpack.c.l.b16 %v4416
    %v4677 = vunpack.c.l.b16 %v4417
    %v4678 = vunpack.c.l.b16 %v4418
    %v4679 = vunpack.c.l.b16 %v4419
    %v4680 = vunpack.c.l.b16 %v4420
    %v4681 = vunpack.c.l.b16 %v4421
    %v4682 = vunpack.c.l.b16 %v4422
    %v4683 = vunpack.c.l.b16 %v4423
    %v4684 = vunpack.c.l.b16 %v4424
    %v4685 = vunpack.c.l.b16 %v4425
    %v4686 = vunpack.c.l.b16 %v4426
    %v4687 = vunpack.c.l.b16 %v4427
    %v4688 = vunpack.c.l.b16 %v4428
    %v4689 = vunpack.c.l.b16 %v4429
    %v4690 = vunpack.c.l.b16 %v4430
    %v4691 = vunpack.c.l.b16 %v4431
    %v4692 = vunpack.c.l.b16 %v4432
    %v4693 = vunpack.c.l.b16 %v4433
    %v4694 = vunpack.c.l.b16 %v4434
    %v4695 = vunpack.c.l.b16 %v4435
    %v4696 = vunpack.c.l.b16 %v4436
    %v4697 = vunpack.c.l.b16 %v4437
    %v4698 = vunpack.c.l.b16 %v4438
    %v4699 = vunpack.c.l.b16 %v4439
    %v4700 = vunpack.c.l.b16 %v4440
    %v4701 = vunpack.c.l.b16 %v4441
    %v4702 = vunpack.c.l.b16 %v4442
    %v4703 = vunpack.c.l.b16 %v4443
    %v4704 = vunpack.c.l.b16 %v4444
    %v4705 = vunpack.c.l.b16 %v4445
    %v4706 = vunpack.c.l.b16 %v4446
    %v4707 = vunpack.c.l.b16 %v4447
    %v4708 = vunpack.c.l.b16 %v4448
    %v4709 = vunpack.c.l.b16 %v4449
    %v4710 = vunpack.c.l.b16 %v4450
    %v4711 = vunpack.c.l.b16 %v4451
    %v4712 = vunpack.c.l.b16 %v4452
    %v4713 = vunpack.c.l.b16 %v4453
    %v4714 = vunpack.c.l.b16 %v4454
    %v4715 = vunpack.c.l.b16 %v4455
    %v4716 = vunpack.c.l.b16 %v4456
    %v4717 = vunpack.c.l.b16 %v4457
    %v4718 = vunpack.c.l.b16 %v4458
    %v4719 = vunpack.c.l.b16 %v4459
    %v4720 = vunpack.c.l.b16 %v4460
    %v4721 = vunpack.c.l.b16 %v4461
    %v4722 = vunpack.c.l.b16 %v4462
    %v4723 = vunpack.c.l.b16 %v4463
    %v4724 = vunpack.c.l.b16 %v4464
    %v4725 = vunpack.c.l.b16 %v4465
    %v4726 = vunpack.c.l.b16 %v4466
    %v4727 = vunpack.c.l.b16 %v4467
    %v4728 = vunpack.c.l.b16 %v4468
    %v4729 = vunpack.c.l.b16 %v4469
    %v4730 = vunpack.c.l.b16 %v4470
    %v4731 = vunpack.c.l.b16 %v4471
    %v4732 = vunpack.c.l.b16 %v4472
    %v4733 = vunpack.c.l.b16 %v4473
    %v4734 = vunpack.c.l.b16 %v4474
    %v4735 = vunpack.c.l.b16 %v4475
    %v4736 = vunpack.c.l.b16 %v4476
    %v4737 = vunpack.c.l.b16 %v4477
    %v4738 = vunpack.c.l.b16 %v4478
    %v4739 = vunpack.c.l.b16 %v4479
    %v4740 = vunpack.c.l.b16 %v4480
    %v4741 = vunpack.c.l.b16 %v4481
    %v4742 = vunpack.c.l.b16 %v4482
    %v4743 = vunpack.c.l.b16 %v4483
    %v4744 = vunpack.c.l.b16 %v4484
    %v4745 = vunpack.c.l.b16 %v4485
    %v4746 = vunpack.c.l.b16 %v4486
    %v4747 = vunpack.c.l.b16 %v4487
    %v4748 = vunpack.c.l.b16 %v4488
    %v4749 = vunpack.c.l.b16 %v4489
    %v4750 = vunpack.c.l.b16 %v4490
    %v4751 = vunpack.c.l.b16 %v4491
    %v4752 = vunpack.c.l.b16 %v4492
    %v4753 = vunpack.c.l.b16 %v4493
    %v4754 = vunpack.c.l.b16 %v4494
    %v4755 = vunpack.c.l.b16 %v4495
    %v4756 = vunpack.c.l.b16 %v4496
    %v4757 = vunpack.c.l.b16 %v4497
    %v4758 = vunpack.c.l.b16 %v4498
    %v4759 = vunpack.c.l.b16 %v4499
    %v4760 = vunpack.c.l.b16 %v4500
    %v4761 = vunpack.c.l.b16 %v4501
    %v4762 = vunpack.c.l.b16 %v4502
    %v4763 = vunpack.c.l.b16 %v4503
    %v4764 = vunpack.c.l.b16 %v4504
    %v4765 = vunpack.c.l.b16 %v4505
    %v4766 = vunpack.c.l.b16 %v4506
    %v4767 = vunpack.c.l.b16 %v4507
    %v4768 = vunpack.c.l.b16 %v4508
    %v4769 = vunpack.c.l.b16 %v4509
    %v4770 = vunpack.c.l.b16 %v4510
    %v4771 = vunpack.c.l.b16 %v4511
    %v4772 = vunpack.c.l.b16 %v4512
    %v4773 = vunpack.c.l.b16 %v4513
    %v4774 = vunpack.c.l.b16 %v4514
    %v4775 = vunpack.c.l.b16 %v4515
    %v4776 = vunpack.c.l.b16 %v4516
    %v4777 = vunpack.c.l.b16 %v4517
    %v4778 = vunpack.c.l.b16 %v4518
    %v4779 = vunpack.c.l.b16 %v4519
    %v4780 = vunpack.c.l.b16 %v4520
    %v4781 = vunpack.c.l.b16 %v4521
    %v4782 = vunpack.c.l.b16 %v4522
    %v4783 = vunpack.c.l.b16 %v4523
    %v4784 = vunpack.c.l.b16 %v4524
    %v4785 = vunpack.c.l.b16 %v4525
    %v4786 = vunpack.c.l.b16 %v4526
    %v4787 = vunpack.c.l.b16 %v4527
    %v4788 = vunpack.c.l.b16 %v4528
    %v4789 = vunpack.c.l.b16 %v4529
    %v4790 = vpack.c.b16 %v4663, %v4662
    %v4791 = vpack.c.b16 %v4665, %v4664
    %v4792 = vpack.c.b16 %v4667, %v4666
    %v4793 = vpack.c.b16 %v4669, %v4668
    %v4794 = vpack.c.b16 %v4671, %v4670
    %v4795 = vpack.c.b16 %v4673, %v4672
    %v4796 = vpack.c.b16 %v4675, %v4674
    %v4797 = vpack.c.b16 %v4677, %v4676
    %v4798 = vpack.c.b16 %v4679, %v4678
    %v4799 = vpack.c.b16 %v4681, %v4680
    %v4800 = vpack.c.b16 %v4683, %v4682
    %v4801 = vpack.c.b16 %v4685, %v4684
    %v4802 = vpack.c.b16 %v4687, %v4686
    %v4803 = vpack.c.b16 %v4689, %v4688
    %v4804 = vpack.c.b16 %v4691, %v4690
    %v4805 = vpack.c.b16 %v4693, %v4692
    %v4806 = vpack.c.b16 %v4695, %v4694
    %v4807 = vpack.c.b16 %v4697, %v4696
    %v4808 = vpack.c.b16 %v4699, %v4698
    %v4809 = vpack.c.b16 %v4701, %v4700
    %v4810 = vpack.c.b16 %v4703, %v4702
    %v4811 = vpack.c.b16 %v4705, %v4704
    %v4812 = vpack.c.b16 %v4707, %v4706
    %v4813 = vpack.c.b16 %v4709, %v4708
    %v4814 = vpack.c.b16 %v4711, %v4710
    %v4815 = vpack.c.b16 %v4713, %v4712
    %v4816 = vpack.c.b16 %v4715, %v4714
    %v4817 = vpack.c.b16 %v4717, %v4716
    %v4818 = vpack.c.b16 %v4719, %v4718
    %v4819 = vpack.c.b16 %v4721, %v4720
    %v4820 = vpack.c.b16 %v4723, %v4722
    %v4821 = vpack.c.b16 %v4725, %v4724
    %v4822 = vpack.c.b16 %v4727, %v4726
    %v4823 = vpack.c.b16 %v4729, %v4728
    %v4824 = vpack.c.b16 %v4731, %v4730
    %v4825 = vpack.c.b16 %v4733, %v4732
    %v4826 = vpack.c.b16 %v4735, %v4734
    %v4827 = vpack.c.b16 %v4737, %v4736
    %v4828 = vpack.c.b16 %v4739, %v4738
    %v4829 = vpack.c.b16 %v4741, %v4740
    %v4830 = vpack.c.b16 %v4743, %v4742
    %v4831 = vpack.c.b16 %v4745, %v4744
    %v4832 = vpack.c.b16 %v4747, %v4746
    %v4833 = vpack.c.b16 %v4749, %v4748
    %v4834 = vpack.c.b16 %v4751, %v4750
    %v4835 = vpack.c.b16 %v4753, %v4752
    %v4836 = vpack.c.b16 %v4755, %v4754
    %v4837 = vpack.c.b16 %v4757, %v4756
    %v4838 = vpack.c.b16 %v4759, %v4758
    %v4839 = vpack.c.b16 %v4761, %v4760
    %v4840 = vpack.c.b16 %v4763, %v4762
    %v4841 = vpack.c.b16 %v4765, %v4764
    %v4842 = vpack.c.b16 %v4767, %v4766
    %v4843 = vpack.c.b16 %v4769, %v4768
    %v4844 = vpack.c.b16 %v4771, %v4770
    %v4845 = vpack.c.b16 %v4773, %v4772
    %v4846 = vpack.c.b16 %v4775, %v4774
    %v4847 = vpack.c.b16 %v4777, %v4776
    %v4848 = vpack.c.b16 %v4779, %v4778
    %v4849 = vpack.c.b16 %v4781, %v4780
    %v4850 = vpack.c.b16 %v4783, %v4782
    %v4851 = vpack.c.b16 %v4785, %v4784
    %v4852 = vpack.c.b16 %v4787, %v4786
    %v4853 = vpack.c.b16 %v4789, %v4788
    %4918 = vmatpush.bf16.msra.mxu0 %v4797
    %4919 = vmatpush.bf16.msra.mxu0 %v4796
    %4920 = vmatpush.bf16.msra.mxu0 %v4795
    %4921 = vmatpush.bf16.msra.mxu0 %v4794
    %4922 = vmatpush.bf16.msra.mxu0 %v4793
    %4923 = vmatpush.bf16.msra.mxu0 %v4792
    %4924 = vmatpush.bf16.msra.mxu0 %v4791
    %4925 = vmatpush.bf16.msra.mxu0 %v4790
    %4926 = vmatmul.bf16.gmra.mxu0 %v4394
    %v4927 = vpop.f32.mrf.mxu0
    %v4928 = vadd.f32 %v4532, %v4927
    %v4929 = vpop.f32.mrf.mxu0
    %v4930 = vadd.f32 %v4532, %v4929
    %4931 = vdwg.mxu0
    %4932 = vmatpush.bf16.msra.mxu0 %v4805
    %4933 = vmatpush.bf16.msra.mxu0 %v4804
    %4934 = vmatpush.bf16.msra.mxu0 %v4803
    %4935 = vmatpush.bf16.msra.mxu0 %v4802
    %4936 = vmatpush.bf16.msra.mxu0 %v4801
    %4937 = vmatpush.bf16.msra.mxu0 %v4800
    %4938 = vmatpush.bf16.msra.mxu0 %v4799
    %4939 = vmatpush.bf16.msra.mxu0 %v4798
    %4940 = vmatmul.bf16.gmra.mxu0 %v4395
    %v4941 = vpop.f32.mrf.mxu0
    %v4942 = vadd.f32 %v4928, %v4941
    %v4943 = vpop.f32.mrf.mxu0
    %v4944 = vadd.f32 %v4930, %v4943
    %4945 = vdwg.mxu0
    %4946 = vmatpush.bf16.msra.mxu0 %v4813
    %4947 = vmatpush.bf16.msra.mxu0 %v4812
    %4948 = vmatpush.bf16.msra.mxu0 %v4811
    %4949 = vmatpush.bf16.msra.mxu0 %v4810
    %4950 = vmatpush.bf16.msra.mxu0 %v4809
    %4951 = vmatpush.bf16.msra.mxu0 %v4808
    %4952 = vmatpush.bf16.msra.mxu0 %v4807
    %4953 = vmatpush.bf16.msra.mxu0 %v4806
    %4954 = vmatmul.bf16.gmra.mxu0 %v4396
    %v4955 = vpop.f32.mrf.mxu0
    %v4956 = vadd.f32 %v4942, %v4955
    %v4957 = vpop.f32.mrf.mxu0
    %v4958 = vadd.f32 %v4944, %v4957
    %4959 = vdwg.mxu0
    %4960 = vmatpush.bf16.msra.mxu0 %v4821
    %4961 = vmatpush.bf16.msra.mxu0 %v4820
    %4962 = vmatpush.bf16.msra.mxu0 %v4819
    %4963 = vmatpush.bf16.msra.mxu0 %v4818
    %4964 = vmatpush.bf16.msra.mxu0 %v4817
    %4965 = vmatpush.bf16.msra.mxu0 %v4816
    %4966 = vmatpush.bf16.msra.mxu0 %v4815
    %4967 = vmatpush.bf16.msra.mxu0 %v4814
    %4968 = vmatmul.bf16.gmra.mxu0 %v4397
    %v4969 = vpop.f32.mrf.mxu0
    %v4970 = vadd.f32 %v4956, %v4969
    %v4971 = vpop.f32.mrf.mxu0
    %v4972 = vadd.f32 %v4958, %v4971
    %4973 = vdwg.mxu0
    %4974 = vmatpush.bf16.msra.mxu0 %v4829
    %4975 = vmatpush.bf16.msra.mxu0 %v4828
    %4976 = vmatpush.bf16.msra.mxu0 %v4827
    %4977 = vmatpush.bf16.msra.mxu0 %v4826
    %4978 = vmatpush.bf16.msra.mxu0 %v4825
    %4979 = vmatpush.bf16.msra.mxu0 %v4824
    %4980 = vmatpush.bf16.msra.mxu0 %v4823
    %4981 = vmatpush.bf16.msra.mxu0 %v4822
    %4982 = vmatmul.bf16.gmra.mxu0 %v4398
    %v4983 = vpop.f32.mrf.mxu0
    %v4984 = vadd.f32 %v4970, %v4983
    %v4985 = vpop.f32.mrf.mxu0
    %v4986 = vadd.f32 %v4972, %v4985
    %4987 = vdwg.mxu0
    %4988 = vmatpush.bf16.msra.mxu0 %v4837
    %4989 = vmatpush.bf16.msra.mxu0 %v4836
    %4990 = vmatpush.bf16.msra.mxu0 %v4835
    %4991 = vmatpush.bf16.msra.mxu0 %v4834
    %4992 = vmatpush.bf16.msra.mxu0 %v4833
    %4993 = vmatpush.bf16.msra.mxu0 %v4832
    %4994 = vmatpush.bf16.msra.mxu0 %v4831
    %4995 = vmatpush.bf16.msra.mxu0 %v4830
    %4996 = vmatmul.bf16.gmra.mxu0 %v4399
    %v4997 = vpop.f32.mrf.mxu0
    %v4998 = vadd.f32 %v4984, %v4997
    %v4999 = vpop.f32.mrf.mxu0
    %v5000 = vadd.f32 %v4986, %v4999
    %5001 = vdwg.mxu0
    %5002 = vmatpush.bf16.msra.mxu0 %v4845
    %5003 = vmatpush.bf16.msra.mxu0 %v4844
    %5004 = vmatpush.bf16.msra.mxu0 %v4843
    %5005 = vmatpush.bf16.msra.mxu0 %v4842
    %5006 = vmatpush.bf16.msra.mxu0 %v4841
    %5007 = vmatpush.bf16.msra.mxu0 %v4840
    %5008 = vmatpush.bf16.msra.mxu0 %v4839
    %5009 = vmatpush.bf16.msra.mxu0 %v4838
    %5010 = vmatmul.bf16.gmra.mxu0 %v4400
    %v5011 = vpop.f32.mrf.mxu0
    %v5012 = vadd.f32 %v4998, %v5011
    %v5013 = vpop.f32.mrf.mxu0
    %v5014 = vadd.f32 %v5000, %v5013
    %5015 = vdwg.mxu0
    %5016 = vmatpush.bf16.msra.mxu0 %v4853
    %5017 = vmatpush.bf16.msra.mxu0 %v4852
    %5018 = vmatpush.bf16.msra.mxu0 %v4851
    %5019 = vmatpush.bf16.msra.mxu0 %v4850
    %5020 = vmatpush.bf16.msra.mxu0 %v4849
    %5021 = vmatpush.bf16.msra.mxu0 %v4848
    %5022 = vmatpush.bf16.msra.mxu0 %v4847
    %5023 = vmatpush.bf16.msra.mxu0 %v4846
    %5024 = vmatmul.bf16.gmra.mxu0 %v4401
    %v5025 = vpop.f32.mrf.mxu0
    %v5026 = vadd.f32 %v5012, %v5025
    %v5027 = vpop.f32.mrf.mxu0
    %v5028 = vadd.f32 %v5014, %v5027
    %5029 = vdwg.mxu0
    %5030 = vst [vmem:[#allocation14] sm:$0xff] %v5026
    %5031 = vst [vmem:[#allocation14 + $0x8] sm:$0xff] %v5028
    // Predicated region
    $region58: #{tpu_custom_call.1} parent=1 // pred_check
      _
    $region59: #{tpu_custom_call.1} parent=1 // pred_check_branch
      %5033 = sbr.rel (0) target = $region61
    $region60: #{tpu_custom_call.1} parent=1 // pred_region
      %5035 = vsyncadd [#allocation4], 0
      %s5036 = sshll.u32 [#allocation14], 4
      %s5037 = int_to_ptr.vmem [resolvable:$true] %s5036
      %s5038 = sshll.u32 %s7, 4
      %s5039 = int_to_ptr.hbm [resolvable:$true] %s5038
      %5044 = dma.vmem_to_hbm [thread:$0]  %s5037, 256, %s5039, [#allocation4], 128, 128, 8
    $region61: #{tpu_custom_call.1} parent=1 // pred_fallthru
      _
    // Predicated region
    $region62: #{tpu_custom_call.1} parent=1 // pred_check
      _
    $region63: #{tpu_custom_call.1} parent=1 // pred_check_branch
      %5046 = sbr.rel (0) target = $region65
    $region64: #{tpu_custom_call.1} parent=1 // pred_region
      %5048 = dma.done [#allocation4], 256
    $region65: #{tpu_custom_call.1} parent=1 // pred_fallthru
      _
    %5049 = vsyncpa [#allocation3], 1
    %5050 = vsyncpa [#allocation6], 1
    %5051 = vsyncpa [#allocation9], 1
    %5052 = vsyncpa [#allocation12], 1
    %5053 = vsyncpa [#allocation4], 1

</llo_original>
